<compile_context>
chip_gen: v7x
topology: tpu7x:2x2x1
jax: 0.10.0
libtpu: 0.0.40
codegen_flags: <defaults>
</compile_context>

<pallas_src>
import functools

import jax
import jax.numpy as jnp
from jax.experimental import pallas as pl
from jax.experimental.pallas import tpu as pltpu

HIDDEN_DIMS = [32, 64, 128, 256, 512]
BN_EPS = 1e-5
LRELU_SLOPE = 0.01
LANES = 128


def _conv_bn_lrelu_kernel(p_ref, w_ref, g_ref, be_ref, o_ref, *,
                          m_true, eps, neg_slope):
    # Single invocation: GEMM (MXU, bf16 in / f32 acc) + BN(batch stats) + LeakyReLU.
    # p_ref: (M, K) bf16; w_ref: (K, Cp) bf16; g_ref/be_ref: (1, Cp) f32; o_ref: (M, Cp) f32
    y = jnp.dot(p_ref[...], w_ref[...], preferred_element_type=jnp.float32)
    inv_m = 1.0 / m_true
    mean = jnp.sum(y, axis=0, keepdims=True) * inv_m          # (1, Cp)
    d = y - mean
    var = jnp.sum(d * d, axis=0, keepdims=True) * inv_m       # biased variance
    z = d * jax.lax.rsqrt(var + eps) * g_ref[...] + be_ref[...]
    o_ref[...] = jnp.where(z >= 0, z, neg_slope * z)


def _im2col_nhwc(x, ksize=3, stride=2, pad=1):
    # x: [N, H, W, C] -> patches [N*Ho*Wo, ksize*ksize*C], tap-major (kh, kw, c)
    n, h, w, c = x.shape
    ho = (h + 2 * pad - ksize) // stride + 1
    wo = (w + 2 * pad - ksize) // stride + 1
    xp = jnp.pad(x, ((0, 0), (pad, pad), (pad, pad), (0, 0)))
    taps = [xp[:, kh:kh + stride * ho:stride, kw:kw + stride * wo:stride, :]
            for kh in range(ksize) for kw in range(ksize)]
    patches = jnp.concatenate(taps, axis=-1)                  # [N, Ho, Wo, 9*C]
    return patches.reshape(n * ho * wo, ksize * ksize * c), ho, wo


def conv_bn_lrelu_layer(x_nhwc, w, gamma, beta):
    # x_nhwc: [N, H, W, Cin] f32; w: [Cout, Cin, 3, 3]; gamma/beta: [Cout]
    n = x_nhwc.shape[0]
    cout, cin = w.shape[0], w.shape[1]
    patches, ho, wo = _im2col_nhwc(x_nhwc)
    m, k = patches.shape

    # Lane-dense output channels (pad Cout up to 128 for the early layers).
    cp = max(cout, LANES)
    wk = w.transpose(2, 3, 1, 0).reshape(k, cout)             # (kh,kw,cin) x Cout
    if cp != cout:
        wk = jnp.pad(wk, ((0, 0), (0, cp - cout)))
        gamma = jnp.pad(gamma, (0, cp - cout))
        beta = jnp.pad(beta, (0, cp - cout))

    kernel = functools.partial(_conv_bn_lrelu_kernel, m_true=float(m),
                               eps=BN_EPS, neg_slope=LRELU_SLOPE)

    out = pl.pallas_call(
        kernel,
        out_shape=jax.ShapeDtypeStruct((m, cp), jnp.float32),
        grid=(1,),
        in_specs=[
            pl.BlockSpec((m, k), lambda i: (0, 0)),            # patches (bf16)
            pl.BlockSpec((k, cp), lambda i: (0, 0)),           # weights (bf16)
            pl.BlockSpec((1, cp), lambda i: (0, 0)),           # BN gamma
            pl.BlockSpec((1, cp), lambda i: (0, 0)),           # BN beta
        ],
        out_specs=pl.BlockSpec((m, cp), lambda i: (0, 0)),
        compiler_params=pltpu.CompilerParams(
            dimension_semantics=("arbitrary",)),
    )(patches.astype(jnp.bfloat16), wk.astype(jnp.bfloat16),
      gamma.reshape(1, cp).astype(jnp.float32),
      beta.reshape(1, cp).astype(jnp.float32))

    out = out.reshape(n, ho, wo, cp)
    if cp != cout:
        out = out[..., :cout]
    return out


def init_params(key, in_channels=3):
    params = []
    cin = in_channels
    for h_dim in HIDDEN_DIMS:
        key, kw, kb, kg, kbe = jax.random.split(key, 5)
        fan_in = cin * 9
        w = jax.random.normal(kw, (h_dim, cin, 3, 3), jnp.float32) / jnp.sqrt(fan_in)
        b = 0.01 * jax.random.normal(kb, (h_dim,), jnp.float32)   # kept for module parity
        gamma = 1.0 + 0.01 * jax.random.normal(kg, (h_dim,), jnp.float32)
        beta = 0.01 * jax.random.normal(kbe, (h_dim,), jnp.float32)
        params.append((w, b, gamma, beta))
        cin = h_dim
    return params


@jax.jit
def encoder_forward(x_nchw, params):
    # NHWC across all 5 layers; convert NCHW only at entry/exit.
    x = jnp.transpose(x_nchw, (0, 2, 3, 1))
    for (w, _b, gamma, beta) in params:
        # conv bias _b is omitted: it cancels exactly under train-mode BN mean subtraction.
        x = conv_bn_lrelu_layer(x, w, gamma, beta)
    return jnp.transpose(x, (0, 3, 1, 2))


if __name__ == "__main__":
    key = jax.random.PRNGKey(0)
    key, kx = jax.random.split(key)
    x = jax.random.normal(kx, (2, 3, 16, 16), jnp.float32)   # N, C, H, W
    params = init_params(key, in_channels=3)

    y = jax.block_until_ready(encoder_forward(x, params))
    assert y.shape == (2, 512, 1, 1), y.shape
    print("KERNEL_OK")
</pallas_src>

<mosaic_0001>
module attributes {stable_mosaic.version = 11 : i64} {
  func.func @_conv_bn_lrelu_kernel(%arg0: i32, %arg1: memref<128x27xbf16, #tpu.memory_space<vmem>>, %arg2: memref<27x128xbf16, #tpu.memory_space<vmem>>, %arg3: memref<1x128xf32, #tpu.memory_space<vmem>>, %arg4: memref<1x128xf32, #tpu.memory_space<vmem>>, %arg5: memref<128x128xf32, #tpu.memory_space<vmem>>) attributes {dimension_semantics = [#tpu.dimension_semantics<arbitrary>], iteration_bounds = array<i64: 1>, scalar_prefetch = 0 : i64, scratch_operands = 0 : i64, tpu.core_type = #tpu.core_type<tc>, window_params = [{pipeline_mode = #tpu.pipeline_mode<synchronous>, transform_indices = @transform_0, window_bounds = array<i64: 128, 27>}, {pipeline_mode = #tpu.pipeline_mode<synchronous>, transform_indices = @transform_1, window_bounds = array<i64: 27, 128>}, {pipeline_mode = #tpu.pipeline_mode<synchronous>, transform_indices = @transform_2, window_bounds = array<i64: 1, 128>}, {pipeline_mode = #tpu.pipeline_mode<synchronous>, transform_indices = @transform_3, window_bounds = array<i64: 1, 128>}, {pipeline_mode = #tpu.pipeline_mode<synchronous>, transform_indices = @transform_4, window_bounds = array<i64: 128, 128>}]} {
    %c0 = arith.constant 0 : index
    %c0_0 = arith.constant 0 : index
    %0 = vector.load %arg1[%c0, %c0_0] : memref<128x27xbf16, #tpu.memory_space<vmem>>, vector<128x27xbf16>
    %c0_1 = arith.constant 0 : index
    %c0_2 = arith.constant 0 : index
    %1 = vector.load %arg2[%c0_1, %c0_2] : memref<27x128xbf16, #tpu.memory_space<vmem>>, vector<27x128xbf16>
    %cst = arith.constant dense<0.000000e+00> : vector<128x128xf32>
    %2 = tpu.matmul %0, %1, %cst {dimension_numbers = #tpu.dot_dimension_numbers<[1], [0], [0], [1], [0, 0, 1, 1], [], []>} : vector<128x27xbf16>, vector<27x128xbf16>, vector<128x128xf32> -> vector<128x128xf32>
    %cst_3 = arith.constant dense<0.000000e+00> : vector<128xf32>
    %3 = vector.multi_reduction <add>, %2, %cst_3 [0] : vector<128x128xf32> to vector<128xf32>
    %4 = vector.shape_cast %3 : vector<128xf32> to vector<1x128xf32>
    %cst_4 = arith.constant 7.812500e-03 : f32
    %5 = vector.broadcast %cst_4 : f32 to vector<1x128xf32>
    %6 = arith.mulf %4, %5 : vector<1x128xf32>
    %7 = vector.broadcast %6 : vector<1x128xf32> to vector<128x128xf32>
    %8 = arith.subf %2, %7 : vector<128x128xf32>
    %9 = arith.mulf %8, %8 : vector<128x128xf32>
    %cst_5 = arith.constant dense<0.000000e+00> : vector<128xf32>
    %10 = vector.multi_reduction <add>, %9, %cst_5 [0] : vector<128x128xf32> to vector<128xf32>
    %11 = vector.shape_cast %10 : vector<128xf32> to vector<1x128xf32>
    %cst_6 = arith.constant 7.812500e-03 : f32
    %12 = vector.broadcast %cst_6 : f32 to vector<1x128xf32>
    %13 = arith.mulf %11, %12 : vector<1x128xf32>
    %cst_7 = arith.constant 9.99999974E-6 : f32
    %14 = vector.broadcast %cst_7 : f32 to vector<1x128xf32>
    %15 = arith.addf %13, %14 : vector<1x128xf32>
    %16 = math.rsqrt %15 : vector<1x128xf32>
    %17 = vector.broadcast %16 : vector<1x128xf32> to vector<128x128xf32>
    %18 = arith.mulf %8, %17 : vector<128x128xf32>
    %c0_8 = arith.constant 0 : index
    %c0_9 = arith.constant 0 : index
    %19 = vector.load %arg3[%c0_8, %c0_9] : memref<1x128xf32, #tpu.memory_space<vmem>>, vector<1x128xf32>
    %20 = vector.broadcast %19 : vector<1x128xf32> to vector<128x128xf32>
    %21 = arith.mulf %18, %20 : vector<128x128xf32>
    %c0_10 = arith.constant 0 : index
    %c0_11 = arith.constant 0 : index
    %22 = vector.load %arg4[%c0_10, %c0_11] : memref<1x128xf32, #tpu.memory_space<vmem>>, vector<1x128xf32>
    %23 = vector.broadcast %22 : vector<1x128xf32> to vector<128x128xf32>
    %24 = arith.addf %21, %23 : vector<128x128xf32>
    %cst_12 = arith.constant 0.000000e+00 : f32
    %25 = vector.broadcast %cst_12 : f32 to vector<128x128xf32>
    %26 = arith.cmpf oge, %24, %25 : vector<128x128xf32>
    %cst_13 = arith.constant 0.00999999977 : f32
    %27 = vector.broadcast %cst_13 : f32 to vector<128x128xf32>
    %28 = arith.mulf %27, %24 : vector<128x128xf32>
    %29 = arith.select %26, %24, %28 : vector<128x128xi1>, vector<128x128xf32>
    %c0_14 = arith.constant 0 : index
    %c0_15 = arith.constant 0 : index
    %30 = vector.load %arg5[%c0_14, %c0_15] : memref<128x128xf32, #tpu.memory_space<vmem>>, vector<128x128xf32>
    tpu.vector_store %arg5[%c0_14, %c0_15], %29 {strides = array<i32>} : memref<128x128xf32, #tpu.memory_space<vmem>>, vector<128x128xf32>,
    return
  }
  func.func @transform_0(%arg0: i32) -> (i32, i32) {
    %c0_i32 = arith.constant 0 : i32
    %c0_i32_0 = arith.constant 0 : i32
    %c0_i32_1 = arith.constant 0 : i32
    return %c0_i32, %c0_i32_0 : i32, i32
  }
  func.func @transform_1(%arg0: i32) -> (i32, i32) {
    %c0_i32 = arith.constant 0 : i32
    %c0_i32_0 = arith.constant 0 : i32
    %c0_i32_1 = arith.constant 0 : i32
    return %c0_i32, %c0_i32_0 : i32, i32
  }
  func.func @transform_2(%arg0: i32) -> (i32, i32) {
    %c0_i32 = arith.constant 0 : i32
    %c0_i32_0 = arith.constant 0 : i32
    %c0_i32_1 = arith.constant 0 : i32
    return %c0_i32, %c0_i32_0 : i32, i32
  }
  func.func @transform_3(%arg0: i32) -> (i32, i32) {
    %c0_i32 = arith.constant 0 : i32
    %c0_i32_0 = arith.constant 0 : i32
    %c0_i32_1 = arith.constant 0 : i32
    return %c0_i32, %c0_i32_0 : i32, i32
  }
  func.func @transform_4(%arg0: i32) -> (i32, i32) {
    %c0_i32 = arith.constant 0 : i32
    %c0_i32_0 = arith.constant 0 : i32
    %c0_i32_1 = arith.constant 0 : i32
    return %c0_i32, %c0_i32_0 : i32, i32
  }
}

module attributes {stable_mosaic.version = 11 : i64} {
  func.func @_conv_bn_lrelu_kernel(%arg0: i32, %arg1: memref<32x288xbf16, #tpu.memory_space<vmem>>, %arg2: memref<288x128xbf16, #tpu.memory_space<vmem>>, %arg3: memref<1x128xf32, #tpu.memory_space<vmem>>, %arg4: memref<1x128xf32, #tpu.memory_space<vmem>>, %arg5: memref<32x128xf32, #tpu.memory_space<vmem>>) attributes {dimension_semantics = [#tpu.dimension_semantics<arbitrary>], iteration_bounds = array<i64: 1>, scalar_prefetch = 0 : i64, scratch_operands = 0 : i64, tpu.core_type = #tpu.core_type<tc>, window_params = [{pipeline_mode = #tpu.pipeline_mode<synchronous>, transform_indices = @transform_0, window_bounds = array<i64: 32, 288>}, {pipeline_mode = #tpu.pipeline_mode<synchronous>, transform_indices = @transform_1, window_bounds = array<i64: 288, 128>}, {pipeline_mode = #tpu.pipeline_mode<synchronous>, transform_indices = @transform_2, window_bounds = array<i64: 1, 128>}, {pipeline_mode = #tpu.pipeline_mode<synchronous>, transform_indices = @transform_3, window_bounds = array<i64: 1, 128>}, {pipeline_mode = #tpu.pipeline_mode<synchronous>, transform_indices = @transform_4, window_bounds = array<i64: 32, 128>}]} {
    %c0 = arith.constant 0 : index
    %c0_0 = arith.constant 0 : index
    %0 = vector.load %arg1[%c0, %c0_0] : memref<32x288xbf16, #tpu.memory_space<vmem>>, vector<32x288xbf16>
    %c0_1 = arith.constant 0 : index
    %c0_2 = arith.constant 0 : index
    %1 = vector.load %arg2[%c0_1, %c0_2] : memref<288x128xbf16, #tpu.memory_space<vmem>>, vector<288x128xbf16>
    %cst = arith.constant dense<0.000000e+00> : vector<32x128xf32>
    %2 = tpu.matmul %0, %1, %cst {dimension_numbers = #tpu.dot_dimension_numbers<[1], [0], [0], [1], [0, 0, 1, 1], [], []>} : vector<32x288xbf16>, vector<288x128xbf16>, vector<32x128xf32> -> vector<32x128xf32>
    %cst_3 = arith.constant dense<0.000000e+00> : vector<128xf32>
    %3 = vector.multi_reduction <add>, %2, %cst_3 [0] : vector<32x128xf32> to vector<128xf32>
    %4 = vector.shape_cast %3 : vector<128xf32> to vector<1x128xf32>
    %cst_4 = arith.constant 3.125000e-02 : f32
    %5 = vector.broadcast %cst_4 : f32 to vector<1x128xf32>
    %6 = arith.mulf %4, %5 : vector<1x128xf32>
    %7 = vector.broadcast %6 : vector<1x128xf32> to vector<32x128xf32>
    %8 = arith.subf %2, %7 : vector<32x128xf32>
    %9 = arith.mulf %8, %8 : vector<32x128xf32>
    %cst_5 = arith.constant dense<0.000000e+00> : vector<128xf32>
    %10 = vector.multi_reduction <add>, %9, %cst_5 [0] : vector<32x128xf32> to vector<128xf32>
    %11 = vector.shape_cast %10 : vector<128xf32> to vector<1x128xf32>
    %cst_6 = arith.constant 3.125000e-02 : f32
    %12 = vector.broadcast %cst_6 : f32 to vector<1x128xf32>
    %13 = arith.mulf %11, %12 : vector<1x128xf32>
    %cst_7 = arith.constant 9.99999974E-6 : f32
    %14 = vector.broadcast %cst_7 : f32 to vector<1x128xf32>
    %15 = arith.addf %13, %14 : vector<1x128xf32>
    %16 = math.rsqrt %15 : vector<1x128xf32>
    %17 = vector.broadcast %16 : vector<1x128xf32> to vector<32x128xf32>
    %18 = arith.mulf %8, %17 : vector<32x128xf32>
    %c0_8 = arith.constant 0 : index
    %c0_9 = arith.constant 0 : index
    %19 = vector.load %arg3[%c0_8, %c0_9] : memref<1x128xf32, #tpu.memory_space<vmem>>, vector<1x128xf32>
    %20 = vector.broadcast %19 : vector<1x128xf32> to vector<32x128xf32>
    %21 = arith.mulf %18, %20 : vector<32x128xf32>
    %c0_10 = arith.constant 0 : index
    %c0_11 = arith.constant 0 : index
    %22 = vector.load %arg4[%c0_10, %c0_11] : memref<1x128xf32, #tpu.memory_space<vmem>>, vector<1x128xf32>
    %23 = vector.broadcast %22 : vector<1x128xf32> to vector<32x128xf32>
    %24 = arith.addf %21, %23 : vector<32x128xf32>
    %cst_12 = arith.constant 0.000000e+00 : f32
    %25 = vector.broadcast %cst_12 : f32 to vector<32x128xf32>
    %26 = arith.cmpf oge, %24, %25 : vector<32x128xf32>
    %cst_13 = arith.constant 0.00999999977 : f32
    %27 = vector.broadcast %cst_13 : f32 to vector<32x128xf32>
    %28 = arith.mulf %27, %24 : vector<32x128xf32>
    %29 = arith.select %26, %24, %28 : vector<32x128xi1>, vector<32x128xf32>
    %c0_14 = arith.constant 0 : index
    %c0_15 = arith.constant 0 : index
    %30 = vector.load %arg5[%c0_14, %c0_15] : memref<32x128xf32, #tpu.memory_space<vmem>>, vector<32x128xf32>
    tpu.vector_store %arg5[%c0_14, %c0_15], %29 {strides = array<i32>} : memref<32x128xf32, #tpu.memory_space<vmem>>, vector<32x128xf32>,
    return
  }
  func.func @transform_0(%arg0: i32) -> (i32, i32) {
    %c0_i32 = arith.constant 0 : i32
    %c0_i32_0 = arith.constant 0 : i32
    %c0_i32_1 = arith.constant 0 : i32
    return %c0_i32, %c0_i32_0 : i32, i32
  }
  func.func @transform_1(%arg0: i32) -> (i32, i32) {
    %c0_i32 = arith.constant 0 : i32
    %c0_i32_0 = arith.constant 0 : i32
    %c0_i32_1 = arith.constant 0 : i32
    return %c0_i32, %c0_i32_0 : i32, i32
  }
  func.func @transform_2(%arg0: i32) -> (i32, i32) {
    %c0_i32 = arith.constant 0 : i32
    %c0_i32_0 = arith.constant 0 : i32
    %c0_i32_1 = arith.constant 0 : i32
    return %c0_i32, %c0_i32_0 : i32, i32
  }
  func.func @transform_3(%arg0: i32) -> (i32, i32) {
    %c0_i32 = arith.constant 0 : i32
    %c0_i32_0 = arith.constant 0 : i32
    %c0_i32_1 = arith.constant 0 : i32
    return %c0_i32, %c0_i32_0 : i32, i32
  }
  func.func @transform_4(%arg0: i32) -> (i32, i32) {
    %c0_i32 = arith.constant 0 : i32
    %c0_i32_0 = arith.constant 0 : i32
    %c0_i32_1 = arith.constant 0 : i32
    return %c0_i32, %c0_i32_0 : i32, i32
  }
}

module attributes {stable_mosaic.version = 11 : i64} {
  func.func @_conv_bn_lrelu_kernel(%arg0: i32, %arg1: memref<8x576xbf16, #tpu.memory_space<vmem>>, %arg2: memref<576x128xbf16, #tpu.memory_space<vmem>>, %arg3: memref<1x128xf32, #tpu.memory_space<vmem>>, %arg4: memref<1x128xf32, #tpu.memory_space<vmem>>, %arg5: memref<8x128xf32, #tpu.memory_space<vmem>>) attributes {dimension_semantics = [#tpu.dimension_semantics<arbitrary>], iteration_bounds = array<i64: 1>, scalar_prefetch = 0 : i64, scratch_operands = 0 : i64, tpu.core_type = #tpu.core_type<tc>, window_params = [{pipeline_mode = #tpu.pipeline_mode<synchronous>, transform_indices = @transform_0, window_bounds = array<i64: 8, 576>}, {pipeline_mode = #tpu.pipeline_mode<synchronous>, transform_indices = @transform_1, window_bounds = array<i64: 576, 128>}, {pipeline_mode = #tpu.pipeline_mode<synchronous>, transform_indices = @transform_2, window_bounds = array<i64: 1, 128>}, {pipeline_mode = #tpu.pipeline_mode<synchronous>, transform_indices = @transform_3, window_bounds = array<i64: 1, 128>}, {pipeline_mode = #tpu.pipeline_mode<synchronous>, transform_indices = @transform_4, window_bounds = array<i64: 8, 128>}]} {
    %c0 = arith.constant 0 : index
    %c0_0 = arith.constant 0 : index
    %0 = vector.load %arg1[%c0, %c0_0] : memref<8x576xbf16, #tpu.memory_space<vmem>>, vector<8x576xbf16>
    %c0_1 = arith.constant 0 : index
    %c0_2 = arith.constant 0 : index
    %1 = vector.load %arg2[%c0_1, %c0_2] : memref<576x128xbf16, #tpu.memory_space<vmem>>, vector<576x128xbf16>
    %cst = arith.constant dense<0.000000e+00> : vector<8x128xf32>
    %2 = tpu.matmul %0, %1, %cst {dimension_numbers = #tpu.dot_dimension_numbers<[1], [0], [0], [1], [0, 0, 1, 1], [], []>} : vector<8x576xbf16>, vector<576x128xbf16>, vector<8x128xf32> -> vector<8x128xf32>
    %cst_3 = arith.constant dense<0.000000e+00> : vector<128xf32>
    %3 = vector.multi_reduction <add>, %2, %cst_3 [0] : vector<8x128xf32> to vector<128xf32>
    %4 = vector.shape_cast %3 : vector<128xf32> to vector<1x128xf32>
    %cst_4 = arith.constant 1.250000e-01 : f32
    %5 = vector.broadcast %cst_4 : f32 to vector<1x128xf32>
    %6 = arith.mulf %4, %5 : vector<1x128xf32>
    %7 = vector.broadcast %6 : vector<1x128xf32> to vector<8x128xf32>
    %8 = arith.subf %2, %7 : vector<8x128xf32>
    %9 = arith.mulf %8, %8 : vector<8x128xf32>
    %cst_5 = arith.constant dense<0.000000e+00> : vector<128xf32>
    %10 = vector.multi_reduction <add>, %9, %cst_5 [0] : vector<8x128xf32> to vector<128xf32>
    %11 = vector.shape_cast %10 : vector<128xf32> to vector<1x128xf32>
    %cst_6 = arith.constant 1.250000e-01 : f32
    %12 = vector.broadcast %cst_6 : f32 to vector<1x128xf32>
    %13 = arith.mulf %11, %12 : vector<1x128xf32>
    %cst_7 = arith.constant 9.99999974E-6 : f32
    %14 = vector.broadcast %cst_7 : f32 to vector<1x128xf32>
    %15 = arith.addf %13, %14 : vector<1x128xf32>
    %16 = math.rsqrt %15 : vector<1x128xf32>
    %17 = vector.broadcast %16 : vector<1x128xf32> to vector<8x128xf32>
    %18 = arith.mulf %8, %17 : vector<8x128xf32>
    %c0_8 = arith.constant 0 : index
    %c0_9 = arith.constant 0 : index
    %19 = vector.load %arg3[%c0_8, %c0_9] : memref<1x128xf32, #tpu.memory_space<vmem>>, vector<1x128xf32>
    %20 = vector.broadcast %19 : vector<1x128xf32> to vector<8x128xf32>
    %21 = arith.mulf %18, %20 : vector<8x128xf32>
    %c0_10 = arith.constant 0 : index
    %c0_11 = arith.constant 0 : index
    %22 = vector.load %arg4[%c0_10, %c0_11] : memref<1x128xf32, #tpu.memory_space<vmem>>, vector<1x128xf32>
    %23 = vector.broadcast %22 : vector<1x128xf32> to vector<8x128xf32>
    %24 = arith.addf %21, %23 : vector<8x128xf32>
    %cst_12 = arith.constant 0.000000e+00 : f32
    %25 = vector.broadcast %cst_12 : f32 to vector<8x128xf32>
    %26 = arith.cmpf oge, %24, %25 : vector<8x128xf32>
    %cst_13 = arith.constant 0.00999999977 : f32
    %27 = vector.broadcast %cst_13 : f32 to vector<8x128xf32>
    %28 = arith.mulf %27, %24 : vector<8x128xf32>
    %29 = arith.select %26, %24, %28 : vector<8x128xi1>, vector<8x128xf32>
    %c0_14 = arith.constant 0 : index
    %c0_15 = arith.constant 0 : index
    %30 = vector.load %arg5[%c0_14, %c0_15] : memref<8x128xf32, #tpu.memory_space<vmem>>, vector<8x128xf32>
    tpu.vector_store %arg5[%c0_14, %c0_15], %29 {strides = array<i32>} : memref<8x128xf32, #tpu.memory_space<vmem>>, vector<8x128xf32>,
    return
  }
  func.func @transform_0(%arg0: i32) -> (i32, i32) {
    %c0_i32 = arith.constant 0 : i32
    %c0_i32_0 = arith.constant 0 : i32
    %c0_i32_1 = arith.constant 0 : i32
    return %c0_i32, %c0_i32_0 : i32, i32
  }
  func.func @transform_1(%arg0: i32) -> (i32, i32) {
    %c0_i32 = arith.constant 0 : i32
    %c0_i32_0 = arith.constant 0 : i32
    %c0_i32_1 = arith.constant 0 : i32
    return %c0_i32, %c0_i32_0 : i32, i32
  }
  func.func @transform_2(%arg0: i32) -> (i32, i32) {
    %c0_i32 = arith.constant 0 : i32
    %c0_i32_0 = arith.constant 0 : i32
    %c0_i32_1 = arith.constant 0 : i32
    return %c0_i32, %c0_i32_0 : i32, i32
  }
  func.func @transform_3(%arg0: i32) -> (i32, i32) {
    %c0_i32 = arith.constant 0 : i32
    %c0_i32_0 = arith.constant 0 : i32
    %c0_i32_1 = arith.constant 0 : i32
    return %c0_i32, %c0_i32_0 : i32, i32
  }
  func.func @transform_4(%arg0: i32) -> (i32, i32) {
    %c0_i32 = arith.constant 0 : i32
    %c0_i32_0 = arith.constant 0 : i32
    %c0_i32_1 = arith.constant 0 : i32
    return %c0_i32, %c0_i32_0 : i32, i32
  }
}

module attributes {stable_mosaic.version = 11 : i64} {
  func.func @_conv_bn_lrelu_kernel(%arg0: i32, %arg1: memref<2x1152xbf16, #tpu.memory_space<vmem>>, %arg2: memref<1152x256xbf16, #tpu.memory_space<vmem>>, %arg3: memref<1x256xf32, #tpu.memory_space<vmem>>, %arg4: memref<1x256xf32, #tpu.memory_space<vmem>>, %arg5: memref<2x256xf32, #tpu.memory_space<vmem>>) attributes {dimension_semantics = [#tpu.dimension_semantics<arbitrary>], iteration_bounds = array<i64: 1>, scalar_prefetch = 0 : i64, scratch_operands = 0 : i64, tpu.core_type = #tpu.core_type<tc>, window_params = [{pipeline_mode = #tpu.pipeline_mode<synchronous>, transform_indices = @transform_0, window_bounds = array<i64: 2, 1152>}, {pipeline_mode = #tpu.pipeline_mode<synchronous>, transform_indices = @transform_1, window_bounds = array<i64: 1152, 256>}, {pipeline_mode = #tpu.pipeline_mode<synchronous>, transform_indices = @transform_2, window_bounds = array<i64: 1, 256>}, {pipeline_mode = #tpu.pipeline_mode<synchronous>, transform_indices = @transform_3, window_bounds = array<i64: 1, 256>}, {pipeline_mode = #tpu.pipeline_mode<synchronous>, transform_indices = @transform_4, window_bounds = array<i64: 2, 256>}]} {
    %c0 = arith.constant 0 : index
    %c0_0 = arith.constant 0 : index
    %0 = vector.load %arg1[%c0, %c0_0] : memref<2x1152xbf16, #tpu.memory_space<vmem>>, vector<2x1152xbf16>
    %c0_1 = arith.constant 0 : index
    %c0_2 = arith.constant 0 : index
    %1 = vector.load %arg2[%c0_1, %c0_2] : memref<1152x256xbf16, #tpu.memory_space<vmem>>, vector<1152x256xbf16>
    %cst = arith.constant dense<0.000000e+00> : vector<2x256xf32>
    %2 = tpu.matmul %0, %1, %cst {dimension_numbers = #tpu.dot_dimension_numbers<[1], [0], [0], [1], [0, 0, 1, 1], [], []>} : vector<2x1152xbf16>, vector<1152x256xbf16>, vector<2x256xf32> -> vector<2x256xf32>
    %cst_3 = arith.constant dense<0.000000e+00> : vector<256xf32>
    %3 = vector.multi_reduction <add>, %2, %cst_3 [0] : vector<2x256xf32> to vector<256xf32>
    %4 = vector.shape_cast %3 : vector<256xf32> to vector<1x256xf32>
    %cst_4 = arith.constant 5.000000e-01 : f32
    %5 = vector.broadcast %cst_4 : f32 to vector<1x256xf32>
    %6 = arith.mulf %4, %5 : vector<1x256xf32>
    %7 = vector.broadcast %6 : vector<1x256xf32> to vector<2x256xf32>
    %8 = arith.subf %2, %7 : vector<2x256xf32>
    %9 = arith.mulf %8, %8 : vector<2x256xf32>
    %cst_5 = arith.constant dense<0.000000e+00> : vector<256xf32>
    %10 = vector.multi_reduction <add>, %9, %cst_5 [0] : vector<2x256xf32> to vector<256xf32>
    %11 = vector.shape_cast %10 : vector<256xf32> to vector<1x256xf32>
    %cst_6 = arith.constant 5.000000e-01 : f32
    %12 = vector.broadcast %cst_6 : f32 to vector<1x256xf32>
    %13 = arith.mulf %11, %12 : vector<1x256xf32>
    %cst_7 = arith.constant 9.99999974E-6 : f32
    %14 = vector.broadcast %cst_7 : f32 to vector<1x256xf32>
    %15 = arith.addf %13, %14 : vector<1x256xf32>
    %16 = math.rsqrt %15 : vector<1x256xf32>
    %17 = vector.broadcast %16 : vector<1x256xf32> to vector<2x256xf32>
    %18 = arith.mulf %8, %17 : vector<2x256xf32>
    %c0_8 = arith.constant 0 : index
    %c0_9 = arith.constant 0 : index
    %19 = vector.load %arg3[%c0_8, %c0_9] : memref<1x256xf32, #tpu.memory_space<vmem>>, vector<1x256xf32>
    %20 = vector.broadcast %19 : vector<1x256xf32> to vector<2x256xf32>
    %21 = arith.mulf %18, %20 : vector<2x256xf32>
    %c0_10 = arith.constant 0 : index
    %c0_11 = arith.constant 0 : index
    %22 = vector.load %arg4[%c0_10, %c0_11] : memref<1x256xf32, #tpu.memory_space<vmem>>, vector<1x256xf32>
    %23 = vector.broadcast %22 : vector<1x256xf32> to vector<2x256xf32>
    %24 = arith.addf %21, %23 : vector<2x256xf32>
    %cst_12 = arith.constant 0.000000e+00 : f32
    %25 = vector.broadcast %cst_12 : f32 to vector<2x256xf32>
    %26 = arith.cmpf oge, %24, %25 : vector<2x256xf32>
    %cst_13 = arith.constant 0.00999999977 : f32
    %27 = vector.broadcast %cst_13 : f32 to vector<2x256xf32>
    %28 = arith.mulf %27, %24 : vector<2x256xf32>
    %29 = arith.select %26, %24, %28 : vector<2x256xi1>, vector<2x256xf32>
    %c0_14 = arith.constant 0 : index
    %c0_15 = arith.constant 0 : index
    %30 = vector.load %arg5[%c0_14, %c0_15] : memref<2x256xf32, #tpu.memory_space<vmem>>, vector<2x256xf32>
    tpu.vector_store %arg5[%c0_14, %c0_15], %29 {strides = array<i32>} : memref<2x256xf32, #tpu.memory_space<vmem>>, vector<2x256xf32>,
    return
  }
  func.func @transform_0(%arg0: i32) -> (i32, i32) {
    %c0_i32 = arith.constant 0 : i32
    %c0_i32_0 = arith.constant 0 : i32
    %c0_i32_1 = arith.constant 0 : i32
    return %c0_i32, %c0_i32_0 : i32, i32
  }
  func.func @transform_1(%arg0: i32) -> (i32, i32) {
    %c0_i32 = arith.constant 0 : i32
    %c0_i32_0 = arith.constant 0 : i32
    %c0_i32_1 = arith.constant 0 : i32
    return %c0_i32, %c0_i32_0 : i32, i32
  }
  func.func @transform_2(%arg0: i32) -> (i32, i32) {
    %c0_i32 = arith.constant 0 : i32
    %c0_i32_0 = arith.constant 0 : i32
    %c0_i32_1 = arith.constant 0 : i32
    return %c0_i32, %c0_i32_0 : i32, i32
  }
  func.func @transform_3(%arg0: i32) -> (i32, i32) {
    %c0_i32 = arith.constant 0 : i32
    %c0_i32_0 = arith.constant 0 : i32
    %c0_i32_1 = arith.constant 0 : i32
    return %c0_i32, %c0_i32_0 : i32, i32
  }
  func.func @transform_4(%arg0: i32) -> (i32, i32) {
    %c0_i32 = arith.constant 0 : i32
    %c0_i32_0 = arith.constant 0 : i32
    %c0_i32_1 = arith.constant 0 : i32
    return %c0_i32, %c0_i32_0 : i32, i32
  }
}

module attributes {stable_mosaic.version = 11 : i64} {
  func.func @_conv_bn_lrelu_kernel(%arg0: i32, %arg1: memref<2x2304xbf16, #tpu.memory_space<vmem>>, %arg2: memref<2304x512xbf16, #tpu.memory_space<vmem>>, %arg3: memref<1x512xf32, #tpu.memory_space<vmem>>, %arg4: memref<1x512xf32, #tpu.memory_space<vmem>>, %arg5: memref<2x512xf32, #tpu.memory_space<vmem>>) attributes {dimension_semantics = [#tpu.dimension_semantics<arbitrary>], iteration_bounds = array<i64: 1>, scalar_prefetch = 0 : i64, scratch_operands = 0 : i64, tpu.core_type = #tpu.core_type<tc>, window_params = [{pipeline_mode = #tpu.pipeline_mode<synchronous>, transform_indices = @transform_0, window_bounds = array<i64: 2, 2304>}, {pipeline_mode = #tpu.pipeline_mode<synchronous>, transform_indices = @transform_1, window_bounds = array<i64: 2304, 512>}, {pipeline_mode = #tpu.pipeline_mode<synchronous>, transform_indices = @transform_2, window_bounds = array<i64: 1, 512>}, {pipeline_mode = #tpu.pipeline_mode<synchronous>, transform_indices = @transform_3, window_bounds = array<i64: 1, 512>}, {pipeline_mode = #tpu.pipeline_mode<synchronous>, transform_indices = @transform_4, window_bounds = array<i64: 2, 512>}]} {
    %c0 = arith.constant 0 : index
    %c0_0 = arith.constant 0 : index
    %0 = vector.load %arg1[%c0, %c0_0] : memref<2x2304xbf16, #tpu.memory_space<vmem>>, vector<2x2304xbf16>
    %c0_1 = arith.constant 0 : index
    %c0_2 = arith.constant 0 : index
    %1 = vector.load %arg2[%c0_1, %c0_2] : memref<2304x512xbf16, #tpu.memory_space<vmem>>, vector<2304x512xbf16>
    %cst = arith.constant dense<0.000000e+00> : vector<2x512xf32>
    %2 = tpu.matmul %0, %1, %cst {dimension_numbers = #tpu.dot_dimension_numbers<[1], [0], [0], [1], [0, 0, 1, 1], [], []>} : vector<2x2304xbf16>, vector<2304x512xbf16>, vector<2x512xf32> -> vector<2x512xf32>
    %cst_3 = arith.constant dense<0.000000e+00> : vector<512xf32>
    %3 = vector.multi_reduction <add>, %2, %cst_3 [0] : vector<2x512xf32> to vector<512xf32>
    %4 = vector.shape_cast %3 : vector<512xf32> to vector<1x512xf32>
    %cst_4 = arith.constant 5.000000e-01 : f32
    %5 = vector.broadcast %cst_4 : f32 to vector<1x512xf32>
    %6 = arith.mulf %4, %5 : vector<1x512xf32>
    %7 = vector.broadcast %6 : vector<1x512xf32> to vector<2x512xf32>
    %8 = arith.subf %2, %7 : vector<2x512xf32>
    %9 = arith.mulf %8, %8 : vector<2x512xf32>
    %cst_5 = arith.constant dense<0.000000e+00> : vector<512xf32>
    %10 = vector.multi_reduction <add>, %9, %cst_5 [0] : vector<2x512xf32> to vector<512xf32>
    %11 = vector.shape_cast %10 : vector<512xf32> to vector<1x512xf32>
    %cst_6 = arith.constant 5.000000e-01 : f32
    %12 = vector.broadcast %cst_6 : f32 to vector<1x512xf32>
    %13 = arith.mulf %11, %12 : vector<1x512xf32>
    %cst_7 = arith.constant 9.99999974E-6 : f32
    %14 = vector.broadcast %cst_7 : f32 to vector<1x512xf32>
    %15 = arith.addf %13, %14 : vector<1x512xf32>
    %16 = math.rsqrt %15 : vector<1x512xf32>
    %17 = vector.broadcast %16 : vector<1x512xf32> to vector<2x512xf32>
    %18 = arith.mulf %8, %17 : vector<2x512xf32>
    %c0_8 = arith.constant 0 : index
    %c0_9 = arith.constant 0 : index
    %19 = vector.load %arg3[%c0_8, %c0_9] : memref<1x512xf32, #tpu.memory_space<vmem>>, vector<1x512xf32>
    %20 = vector.broadcast %19 : vector<1x512xf32> to vector<2x512xf32>
    %21 = arith.mulf %18, %20 : vector<2x512xf32>
    %c0_10 = arith.constant 0 : index
    %c0_11 = arith.constant 0 : index
    %22 = vector.load %arg4[%c0_10, %c0_11] : memref<1x512xf32, #tpu.memory_space<vmem>>, vector<1x512xf32>
    %23 = vector.broadcast %22 : vector<1x512xf32> to vector<2x512xf32>
    %24 = arith.addf %21, %23 : vector<2x512xf32>
    %cst_12 = arith.constant 0.000000e+00 : f32
    %25 = vector.broadcast %cst_12 : f32 to vector<2x512xf32>
    %26 = arith.cmpf oge, %24, %25 : vector<2x512xf32>
    %cst_13 = arith.constant 0.00999999977 : f32
    %27 = vector.broadcast %cst_13 : f32 to vector<2x512xf32>
    %28 = arith.mulf %27, %24 : vector<2x512xf32>
    %29 = arith.select %26, %24, %28 : vector<2x512xi1>, vector<2x512xf32>
    %c0_14 = arith.constant 0 : index
    %c0_15 = arith.constant 0 : index
    %30 = vector.load %arg5[%c0_14, %c0_15] : memref<2x512xf32, #tpu.memory_space<vmem>>, vector<2x512xf32>
    tpu.vector_store %arg5[%c0_14, %c0_15], %29 {strides = array<i32>} : memref<2x512xf32, #tpu.memory_space<vmem>>, vector<2x512xf32>,
    return
  }
  func.func @transform_0(%arg0: i32) -> (i32, i32) {
    %c0_i32 = arith.constant 0 : i32
    %c0_i32_0 = arith.constant 0 : i32
    %c0_i32_1 = arith.constant 0 : i32
    return %c0_i32, %c0_i32_0 : i32, i32
  }
  func.func @transform_1(%arg0: i32) -> (i32, i32) {
    %c0_i32 = arith.constant 0 : i32
    %c0_i32_0 = arith.constant 0 : i32
    %c0_i32_1 = arith.constant 0 : i32
    return %c0_i32, %c0_i32_0 : i32, i32
  }
  func.func @transform_2(%arg0: i32) -> (i32, i32) {
    %c0_i32 = arith.constant 0 : i32
    %c0_i32_0 = arith.constant 0 : i32
    %c0_i32_1 = arith.constant 0 : i32
    return %c0_i32, %c0_i32_0 : i32, i32
  }
  func.func @transform_3(%arg0: i32) -> (i32, i32) {
    %c0_i32 = arith.constant 0 : i32
    %c0_i32_0 = arith.constant 0 : i32
    %c0_i32_1 = arith.constant 0 : i32
    return %c0_i32, %c0_i32_0 : i32, i32
  }
  func.func @transform_4(%arg0: i32) -> (i32, i32) {
    %c0_i32 = arith.constant 0 : i32
    %c0_i32_0 = arith.constant 0 : i32
    %c0_i32_1 = arith.constant 0 : i32
    return %c0_i32, %c0_i32_0 : i32, i32
  }
}

</mosaic_0001>

<llo_original>
// kernel: encoder_forward.5
$region0: #{encoder_forward.5}
  #allocation0 [shape = 'u32[]', space=smem, size = 0x4, offset = 0x4, fixed_abs, tag = 'smem constant byte address 0x4 - core index']
  #allocation1 [shape = 'u32[144,128]{1,0:T(1,128)}', space=vmem, size = 0x12000, scoped, tag = 'internal scratch']
  %s0 = inlined_call_operand.vmem [shape: bf16[128,27], index: 0, kind: input, shape index: {}]
  %s1 = inlined_call_operand.vmem [shape: bf16[27,128], index: 1, kind: input, shape index: {}]
  %s2 = inlined_call_operand.vmem [shape: f32[1,128], index: 2, kind: input, shape index: {}]
  %s3 = inlined_call_operand.vmem [shape: f32[1,128], index: 3, kind: input, shape index: {}]
  %s4 = inlined_call_operand.vmem [shape: f32[128,128], index: 4, kind: output, shape index: {}]
  %s5 = sld [smem:[#allocation0]]
  $region26: #{encoder_forward.5} parent=0
    _
  %s7 = ssub.s32 1, %s5
  %s8 = scalar_select 0, %s7, %s5
  // Predicated region
  $region2: #{encoder_forward.5} parent=0 // pred_check
    _
  $region3: #{encoder_forward.5} parent=0 // pred_check_branch
    %10 = sbr.rel (0) target = $region5
  $region4: #{encoder_forward.5} parent=0 // pred_region
    _
  $region5: #{encoder_forward.5} parent=0 // pred_fallthru
    _
  // Predicated region
  $region6: #{encoder_forward.5} parent=0 // pred_check
    _
  $region7: #{encoder_forward.5} parent=0 // pred_check_branch
    %12 = sbr.rel (0) target = $region9
  $region8: #{encoder_forward.5} parent=0 // pred_region
    _
  $region9: #{encoder_forward.5} parent=0 // pred_fallthru
    _
  // Predicated region
  $region10: #{encoder_forward.5} parent=0 // pred_check
    _
  $region11: #{encoder_forward.5} parent=0 // pred_check_branch
    %14 = sbr.rel (0) target = $region13
  $region12: #{encoder_forward.5} parent=0 // pred_region
    _
  $region13: #{encoder_forward.5} parent=0 // pred_fallthru
    _
  // Predicated region
  $region14: #{encoder_forward.5} parent=0 // pred_check
    _
  $region15: #{encoder_forward.5} parent=0 // pred_check_branch
    %16 = sbr.rel (0) target = $region17
  $region16: #{encoder_forward.5} parent=0 // pred_region
    _
  $region17: #{encoder_forward.5} parent=0 // pred_fallthru
    _
  %v18 = vld [vmem:[%s0] sm:$0xf]
  %v19 = vld [vmem:[%s0 + $0x4] sm:$0xf]
  %v20 = vld [vmem:[%s0 + $0x8] sm:$0xf]
  %v21 = vld [vmem:[%s0 + $0xc] sm:$0xf]
  %v22 = vld [vmem:[%s0 + $0x10] sm:$0xf]
  %v23 = vld [vmem:[%s0 + $0x14] sm:$0xf]
  %v24 = vld [vmem:[%s0 + $0x18] sm:$0xf]
  %v25 = vld [vmem:[%s0 + $0x1c] sm:$0xf]
  %v26 = vld [vmem:[%s0 + $0x20] sm:$0xf]
  %v27 = vld [vmem:[%s0 + $0x24] sm:$0xf]
  %v28 = vld [vmem:[%s0 + $0x28] sm:$0xf]
  %v29 = vld [vmem:[%s0 + $0x2c] sm:$0xf]
  %v30 = vld [vmem:[%s0 + $0x30] sm:$0xf]
  %v31 = vld [vmem:[%s0 + $0x34] sm:$0xf]
  %v32 = vld [vmem:[%s0 + $0x38] sm:$0xf]
  %v33 = vld [vmem:[%s0 + $0x3c] sm:$0xf]
  %v34 = vld [vmem:[%s1] sm:$0xf]
  %v35 = vld [vmem:[%s1 + $0x4] sm:$0xf]
  %v36 = vld [vmem:[%s1 + $0x8] sm:$0xf]
  %v37 = vld [vmem:[%s1 + $0xc] sm:$0x3]
  %v54 = vunpack.c.l.b16 %v18
  %v55 = vunpack.c.l.b16 %v19
  %v56 = vunpack.c.l.b16 %v20
  %v57 = vunpack.c.l.b16 %v21
  %v58 = vunpack.c.l.b16 %v22
  %v59 = vunpack.c.l.b16 %v23
  %v60 = vunpack.c.l.b16 %v24
  %v61 = vunpack.c.l.b16 %v25
  %v62 = vunpack.c.l.b16 %v26
  %v63 = vunpack.c.l.b16 %v27
  %v64 = vunpack.c.l.b16 %v28
  %v65 = vunpack.c.l.b16 %v29
  %v66 = vunpack.c.l.b16 %v30
  %v67 = vunpack.c.l.b16 %v31
  %v68 = vunpack.c.l.b16 %v32
  %v69 = vunpack.c.l.b16 %v33
  %v70 = vpack.c.b16 %v55, %v54
  %v71 = vpack.c.b16 %v57, %v56
  %v72 = vpack.c.b16 %v59, %v58
  %v73 = vpack.c.b16 %v61, %v60
  %v74 = vpack.c.b16 %v63, %v62
  %v75 = vpack.c.b16 %v65, %v64
  %v76 = vpack.c.b16 %v67, %v66
  %v77 = vpack.c.b16 %v69, %v68
  %v82 = vunpack.c.l.b16 %v34
  %v83 = vunpack.c.l.b16 %v35
  %v84 = vunpack.c.l.b16 %v36
  %v85 = vunpack.c.l.b16 %v37
  %v86 = vpack.c.b16 %v83, %v82
  %v87 = vpack.c.b16 %v85, %v84
  %vm89 = vcmask 220160
  %v91 = vsel %vm89, %v70, 0
  %v94 = vsel %vm89, %v71, 0
  %v97 = vsel %vm89, %v72, 0
  %v100 = vsel %vm89, %v73, 0
  %v103 = vsel %vm89, %v74, 0
  %v106 = vsel %vm89, %v75, 0
  %v109 = vsel %vm89, %v76, 0
  %v112 = vsel %vm89, %v77, 0
  %vm114 = vcmask 1044480
  %vm115 = vcmask 1045504
  %v116 = vsel %vm114, 4294967295, 65535
  %v117 = vsel %vm115, %v116, 0
  %v119 = vand.u32 %v87, %v117
  %121 = vmatprep.subr.bf16.mxu0 0
  %122 = vmatpush1.bf16.msra.mxu0 %v86
  %123 = vmatprep.subr.bf16.mxu0 0
  %124 = vmatpush1.bf16.msra.mxu0 %v119
  %125 = vmatprep.subr.bf16.mxu0 0
  %126 = vmatpush1.bf16.msra.mxu0 0
  %127 = vmatprep.subr.bf16.mxu0 0
  %128 = vmatpush1.bf16.msra.mxu0 0
  %129 = vmatprep.subr.bf16.mxu0 0
  %130 = vmatpush1.bf16.msra.mxu0 0
  %131 = vmatprep.subr.bf16.mxu0 0
  %132 = vmatpush1.bf16.msra.mxu0 0
  %133 = vmatprep.subr.bf16.mxu0 0
  %134 = vmatpush1.bf16.msra.mxu0 0
  %135 = vmatprep.subr.bf16.mxu0 0
  %136 = vmatpush1.bf16.msra.mxu0 0
  %137 = vmatprep.subr.bf16.mxu0 0
  %138 = vmatpush1.bf16.msra.mxu0 0
  %139 = vmatprep.subr.bf16.mxu0 0
  %140 = vmatpush1.bf16.msra.mxu0 0
  %141 = vmatprep.subr.bf16.mxu0 0
  %142 = vmatpush1.bf16.msra.mxu0 0
  %143 = vmatprep.subr.bf16.mxu0 0
  %144 = vmatpush1.bf16.msra.mxu0 0
  %145 = vmatprep.subr.bf16.mxu0 0
  %146 = vmatpush1.bf16.msra.mxu0 0
  %147 = vmatprep.subr.bf16.mxu0 0
  %148 = vmatpush1.bf16.msra.mxu0 0
  %149 = vmatprep.subr.bf16.mxu0 0
  %150 = vmatpush1.bf16.msra.mxu0 0
  %151 = vmatprep.subr.bf16.mxu0 0
  %152 = vmatpush1.bf16.msra.mxu0 0
  %153 = vmatprep.mubr.bf16.mxu0 0
  %154 = vmatmul.mubr.bf16.gmra.mrb[0].mxu0 %v91
  %v155 = vpop.f32.mrb[0].mxu0
  %v156 = vadd.f32 0.0, %v155
  %v157 = vpop.f32.mrb[0].mxu0
  %v158 = vpop.f32.mrb[0].mxu0
  %v159 = vadd.f32 0.0, %v158
  %v160 = vpop.f32.mrb[0].mxu0
  %161 = vmatprep.mubr.bf16.mxu0 0
  %162 = vmatmul.mubr.bf16.gmra.mrb[0].mxu0 %v94
  %v163 = vpop.f32.mrb[0].mxu0
  %v164 = vadd.f32 0.0, %v163
  %v165 = vpop.f32.mrb[0].mxu0
  %v166 = vpop.f32.mrb[0].mxu0
  %v167 = vadd.f32 0.0, %v166
  %v168 = vpop.f32.mrb[0].mxu0
  %169 = vmatprep.mubr.bf16.mxu0 0
  %170 = vmatmul.mubr.bf16.gmra.mrb[0].mxu0 %v97
  %v171 = vpop.f32.mrb[0].mxu0
  %v172 = vadd.f32 0.0, %v171
  %v173 = vpop.f32.mrb[0].mxu0
  %v174 = vpop.f32.mrb[0].mxu0
  %v175 = vadd.f32 0.0, %v174
  %v176 = vpop.f32.mrb[0].mxu0
  %177 = vmatprep.mubr.bf16.mxu0 0
  %178 = vmatmul.mubr.bf16.gmra.mrb[0].mxu0 %v100
  %v179 = vpop.f32.mrb[0].mxu0
  %v180 = vadd.f32 0.0, %v179
  %v181 = vpop.f32.mrb[0].mxu0
  %v182 = vpop.f32.mrb[0].mxu0
  %v183 = vadd.f32 0.0, %v182
  %v184 = vpop.f32.mrb[0].mxu0
  %185 = vmatprep.mubr.bf16.mxu0 0
  %186 = vmatmul.mubr.bf16.gmra.mrb[0].mxu0 %v103
  %v187 = vpop.f32.mrb[0].mxu0
  %v188 = vadd.f32 0.0, %v187
  %v189 = vpop.f32.mrb[0].mxu0
  %v190 = vpop.f32.mrb[0].mxu0
  %v191 = vadd.f32 0.0, %v190
  %v192 = vpop.f32.mrb[0].mxu0
  %193 = vmatprep.mubr.bf16.mxu0 0
  %194 = vmatmul.mubr.bf16.gmra.mrb[0].mxu0 %v106
  %v195 = vpop.f32.mrb[0].mxu0
  %v196 = vadd.f32 0.0, %v195
  %v197 = vpop.f32.mrb[0].mxu0
  %v198 = vpop.f32.mrb[0].mxu0
  %v199 = vadd.f32 0.0, %v198
  %v200 = vpop.f32.mrb[0].mxu0
  %201 = vmatprep.mubr.bf16.mxu0 0
  %202 = vmatmul.mubr.bf16.gmra.mrb[0].mxu0 %v109
  %v203 = vpop.f32.mrb[0].mxu0
  %v204 = vadd.f32 0.0, %v203
  %v205 = vpop.f32.mrb[0].mxu0
  %v206 = vpop.f32.mrb[0].mxu0
  %v207 = vadd.f32 0.0, %v206
  %v208 = vpop.f32.mrb[0].mxu0
  %209 = vmatprep.mubr.bf16.mxu0 0
  %210 = vmatmul.mubr.bf16.gmra.mrb[0].mxu0 %v112
  %v211 = vpop.f32.mrb[0].mxu0
  %v212 = vadd.f32 0.0, %v211
  %v213 = vpop.f32.mrb[0].mxu0
  %v214 = vpop.f32.mrb[0].mxu0
  %v215 = vadd.f32 0.0, %v214
  %v216 = vpop.f32.mrb[0].mxu0
  %217 = vdwg.mxu0
  %v218 = vadd.f32 %v156, %v159
  %v219 = vadd.f32 %v218, %v164
  %v220 = vadd.f32 %v219, %v167
  %v221 = vadd.f32 %v220, %v172
  %v222 = vadd.f32 %v221, %v175
  %v223 = vadd.f32 %v222, %v180
  %v224 = vadd.f32 %v223, %v183
  %v225 = vadd.f32 %v224, %v188
  %v226 = vadd.f32 %v225, %v191
  %v227 = vadd.f32 %v226, %v196
  %v228 = vadd.f32 %v227, %v199
  %v229 = vadd.f32 %v228, %v204
  %v230 = vadd.f32 %v229, %v207
  %v231 = vadd.f32 %v230, %v212
  %v232 = vadd.f32 %v231, %v215
  %v233 = vrot.slane %v232, 4
  %v234 = vadd.f32 %v232, %v233
  %v235 = vrot.slane %v234, 2
  %v236 = vadd.f32 %v234, %v235
  %v237 = vrot.slane %v236, 1
  %v238 = vadd.f32 %v236, %v237
  %v239 = vmul.f32 %v238, 0.0078125
  %v240 = vsub.f32 %v156, %v239
  %v241 = vsub.f32 %v159, %v239
  %v242 = vsub.f32 %v164, %v239
  %v243 = vsub.f32 %v167, %v239
  %v244 = vsub.f32 %v172, %v239
  %v245 = vsub.f32 %v175, %v239
  %v246 = vsub.f32 %v180, %v239
  %v247 = vsub.f32 %v183, %v239
  %v248 = vsub.f32 %v188, %v239
  %v249 = vsub.f32 %v191, %v239
  %v250 = vsub.f32 %v196, %v239
  %v251 = vsub.f32 %v199, %v239
  %v252 = vsub.f32 %v204, %v239
  %v253 = vsub.f32 %v207, %v239
  %v254 = vsub.f32 %v212, %v239
  %v255 = vsub.f32 %v215, %v239
  %v256 = vmul.f32 %v240, %v240
  %v257 = vmul.f32 %v241, %v241
  %v258 = vmul.f32 %v242, %v242
  %v259 = vmul.f32 %v243, %v243
  %v260 = vmul.f32 %v244, %v244
  %v261 = vmul.f32 %v245, %v245
  %v262 = vmul.f32 %v246, %v246
  %v263 = vmul.f32 %v247, %v247
  %v264 = vmul.f32 %v248, %v248
  %v265 = vmul.f32 %v249, %v249
  %v266 = vmul.f32 %v250, %v250
  %v267 = vmul.f32 %v251, %v251
  %v268 = vmul.f32 %v252, %v252
  %v269 = vmul.f32 %v253, %v253
  %v270 = vmul.f32 %v254, %v254
  %v271 = vmul.f32 %v255, %v255
  %v272 = vadd.f32 %v256, %v257
  %v273 = vadd.f32 %v272, %v258
  %v274 = vadd.f32 %v273, %v259
  %v275 = vadd.f32 %v274, %v260
  %v276 = vadd.f32 %v275, %v261
  %v277 = vadd.f32 %v276, %v262
  %v278 = vadd.f32 %v277, %v263
  %v279 = vadd.f32 %v278, %v264
  %v280 = vadd.f32 %v279, %v265
  %v281 = vadd.f32 %v280, %v266
  %v282 = vadd.f32 %v281, %v267
  %v283 = vadd.f32 %v282, %v268
  %v284 = vadd.f32 %v283, %v269
  %v285 = vadd.f32 %v284, %v270
  %v286 = vadd.f32 %v285, %v271
  %v287 = vrot.slane %v286, 4
  %v288 = vadd.f32 %v286, %v287
  %v289 = vrot.slane %v288, 2
  %v290 = vadd.f32 %v288, %v289
  %v291 = vrot.slane %v290, 1
  %v292 = vadd.f32 %v290, %v291
  %v293 = vmul.f32 %v292, 0.0078125
  %v294 = vadd.f32 %v293, 1e-05
  %v295 = vrsqrt.pop %v294
  %v296 = vmul.f32 %v240, %v295
  %v297 = vmul.f32 %v241, %v295
  %v298 = vmul.f32 %v242, %v295
  %v299 = vmul.f32 %v243, %v295
  %v300 = vmul.f32 %v244, %v295
  %v301 = vmul.f32 %v245, %v295
  %v302 = vmul.f32 %v246, %v295
  %v303 = vmul.f32 %v247, %v295
  %v304 = vmul.f32 %v248, %v295
  %v305 = vmul.f32 %v249, %v295
  %v306 = vmul.f32 %v250, %v295
  %v307 = vmul.f32 %v251, %v295
  %v308 = vmul.f32 %v252, %v295
  %v309 = vmul.f32 %v253, %v295
  %v310 = vmul.f32 %v254, %v295
  %v311 = vmul.f32 %v255, %v295
  %v312 = vld [vmem:[%s2] sm:$0x1]
  %v314 = vlaneseq
  %v315 = vshrl.u32 %v314, 7
  %v316 = vsub.s32 0, %v315
  %v317 = vrot.slane %v312, %v316
  %v319 = vmul.f32 %v296, %v317
  %v320 = vmul.f32 %v297, %v317
  %v321 = vmul.f32 %v298, %v317
  %v322 = vmul.f32 %v299, %v317
  %v323 = vmul.f32 %v300, %v317
  %v324 = vmul.f32 %v301, %v317
  %v325 = vmul.f32 %v302, %v317
  %v326 = vmul.f32 %v303, %v317
  %v327 = vmul.f32 %v304, %v317
  %v328 = vmul.f32 %v305, %v317
  %v329 = vmul.f32 %v306, %v317
  %v330 = vmul.f32 %v307, %v317
  %v331 = vmul.f32 %v308, %v317
  %v332 = vmul.f32 %v309, %v317
  %v333 = vmul.f32 %v310, %v317
  %v334 = vmul.f32 %v311, %v317
  %v335 = vld [vmem:[%s3] sm:$0x1]
  %v337 = vlaneseq
  %v338 = vshrl.u32 %v337, 7
  %v339 = vsub.s32 0, %v338
  %v340 = vrot.slane %v335, %v339
  %v342 = vadd.f32 %v319, %v340
  %v343 = vadd.f32 %v320, %v340
  %v344 = vadd.f32 %v321, %v340
  %v345 = vadd.f32 %v322, %v340
  %v346 = vadd.f32 %v323, %v340
  %v347 = vadd.f32 %v324, %v340
  %v348 = vadd.f32 %v325, %v340
  %v349 = vadd.f32 %v326, %v340
  %v350 = vadd.f32 %v327, %v340
  %v351 = vadd.f32 %v328, %v340
  %v352 = vadd.f32 %v329, %v340
  %v353 = vadd.f32 %v330, %v340
  %v354 = vadd.f32 %v331, %v340
  %v355 = vadd.f32 %v332, %v340
  %v356 = vadd.f32 %v333, %v340
  %v357 = vadd.f32 %v334, %v340
  %vm358 = vcmp.ge.f32.partialorder %v342, 0.0
  %vm359 = vcmp.ge.f32.partialorder %v343, 0.0
  %vm360 = vcmp.ge.f32.partialorder %v344, 0.0
  %vm361 = vcmp.ge.f32.partialorder %v345, 0.0
  %vm362 = vcmp.ge.f32.partialorder %v346, 0.0
  %vm363 = vcmp.ge.f32.partialorder %v347, 0.0
  %vm364 = vcmp.ge.f32.partialorder %v348, 0.0
  %vm365 = vcmp.ge.f32.partialorder %v349, 0.0
  %vm366 = vcmp.ge.f32.partialorder %v350, 0.0
  %vm367 = vcmp.ge.f32.partialorder %v351, 0.0
  %vm368 = vcmp.ge.f32.partialorder %v352, 0.0
  %vm369 = vcmp.ge.f32.partialorder %v353, 0.0
  %vm370 = vcmp.ge.f32.partialorder %v354, 0.0
  %vm371 = vcmp.ge.f32.partialorder %v355, 0.0
  %vm372 = vcmp.ge.f32.partialorder %v356, 0.0
  %vm373 = vcmp.ge.f32.partialorder %v357, 0.0
  %v374 = vmul.f32 %v342, 0.01
  %v375 = vmul.f32 %v343, 0.01
  %v376 = vmul.f32 %v344, 0.01
  %v377 = vmul.f32 %v345, 0.01
  %v378 = vmul.f32 %v346, 0.01
  %v379 = vmul.f32 %v347, 0.01
  %v380 = vmul.f32 %v348, 0.01
  %v381 = vmul.f32 %v349, 0.01
  %v382 = vmul.f32 %v350, 0.01
  %v383 = vmul.f32 %v351, 0.01
  %v384 = vmul.f32 %v352, 0.01
  %v385 = vmul.f32 %v353, 0.01
  %v386 = vmul.f32 %v354, 0.01
  %v387 = vmul.f32 %v355, 0.01
  %v388 = vmul.f32 %v356, 0.01
  %v389 = vmul.f32 %v357, 0.01
  %v390 = vsel %vm358, %v342, %v374
  %v391 = vsel %vm359, %v343, %v375
  %v392 = vsel %vm360, %v344, %v376
  %v393 = vsel %vm361, %v345, %v377
  %v394 = vsel %vm362, %v346, %v378
  %v395 = vsel %vm363, %v347, %v379
  %v396 = vsel %vm364, %v348, %v380
  %v397 = vsel %vm365, %v349, %v381
  %v398 = vsel %vm366, %v350, %v382
  %v399 = vsel %vm367, %v351, %v383
  %v400 = vsel %vm368, %v352, %v384
  %v401 = vsel %vm369, %v353, %v385
  %v402 = vsel %vm370, %v354, %v386
  %v403 = vsel %vm371, %v355, %v387
  %v404 = vsel %vm372, %v356, %v388
  %v405 = vsel %vm373, %v357, %v389
  %406 = vst [vmem:[%s4] sm:$0xff] %v390
  %407 = vst [vmem:[%s4 + $0x8] sm:$0xff] %v391
  %408 = vst [vmem:[%s4 + $0x10] sm:$0xff] %v392
  %409 = vst [vmem:[%s4 + $0x18] sm:$0xff] %v393
  %410 = vst [vmem:[%s4 + $0x20] sm:$0xff] %v394
  %411 = vst [vmem:[%s4 + $0x28] sm:$0xff] %v395
  %412 = vst [vmem:[%s4 + $0x30] sm:$0xff] %v396
  %413 = vst [vmem:[%s4 + $0x38] sm:$0xff] %v397
  %414 = vst [vmem:[%s4 + $0x40] sm:$0xff] %v398
  %415 = vst [vmem:[%s4 + $0x48] sm:$0xff] %v399
  %416 = vst [vmem:[%s4 + $0x50] sm:$0xff] %v400
  %417 = vst [vmem:[%s4 + $0x58] sm:$0xff] %v401
  %418 = vst [vmem:[%s4 + $0x60] sm:$0xff] %v402
  %419 = vst [vmem:[%s4 + $0x68] sm:$0xff] %v403
  %420 = vst [vmem:[%s4 + $0x70] sm:$0xff] %v404
  %421 = vst [vmem:[%s4 + $0x78] sm:$0xff] %v405
  // Predicated region
  $region18: #{encoder_forward.5} parent=0 // pred_check
    _
  $region19: #{encoder_forward.5} parent=0 // pred_check_branch
    %423 = sbr.rel (0) target = $region21
  $region20: #{encoder_forward.5} parent=0 // pred_region
    _
  $region21: #{encoder_forward.5} parent=0 // pred_fallthru
    _
  // Predicated region
  $region22: #{encoder_forward.5} parent=0 // pred_check
    _
  $region23: #{encoder_forward.5} parent=0 // pred_check_branch
    %425 = sbr.rel (0) target = $region25
  $region24: #{encoder_forward.5} parent=0 // pred_region
    _
  $region25: #{encoder_forward.5} parent=0 // pred_fallthru
    _

// kernel: encoder_forward.6
$region0: #{encoder_forward.6}
  #allocation0 [shape = 'u32[]', space=smem, size = 0x4, offset = 0x4, fixed_abs, tag = 'smem constant byte address 0x4 - core index']
  #allocation1 [shape = 'u32[144,128]{1,0:T(1,128)}', space=vmem, size = 0x12000, scoped, tag = 'internal scratch']
  %s0 = inlined_call_operand.vmem [shape: bf16[32,288], index: 0, kind: input, shape index: {}]
  %s1 = inlined_call_operand.vmem [shape: bf16[288,128], index: 1, kind: input, shape index: {}]
  %s2 = inlined_call_operand.vmem [shape: f32[1,128], index: 2, kind: input, shape index: {}]
  %s3 = inlined_call_operand.vmem [shape: f32[1,128], index: 3, kind: input, shape index: {}]
  %s4 = inlined_call_operand.vmem [shape: f32[32,128], index: 4, kind: output, shape index: {}]
  %s5 = sld [smem:[#allocation0]]
  $region26: #{encoder_forward.6} parent=0
    _
  %s7 = ssub.s32 1, %s5
  %s8 = scalar_select 0, %s7, %s5
  // Predicated region
  $region2: #{encoder_forward.6} parent=0 // pred_check
    _
  $region3: #{encoder_forward.6} parent=0 // pred_check_branch
    %10 = sbr.rel (0) target = $region5
  $region4: #{encoder_forward.6} parent=0 // pred_region
    _
  $region5: #{encoder_forward.6} parent=0 // pred_fallthru
    _
  // Predicated region
  $region6: #{encoder_forward.6} parent=0 // pred_check
    _
  $region7: #{encoder_forward.6} parent=0 // pred_check_branch
    %12 = sbr.rel (0) target = $region9
  $region8: #{encoder_forward.6} parent=0 // pred_region
    _
  $region9: #{encoder_forward.6} parent=0 // pred_fallthru
    _
  // Predicated region
  $region10: #{encoder_forward.6} parent=0 // pred_check
    _
  $region11: #{encoder_forward.6} parent=0 // pred_check_branch
    %14 = sbr.rel (0) target = $region13
  $region12: #{encoder_forward.6} parent=0 // pred_region
    _
  $region13: #{encoder_forward.6} parent=0 // pred_fallthru
    _
  // Predicated region
  $region14: #{encoder_forward.6} parent=0 // pred_check
    _
  $region15: #{encoder_forward.6} parent=0 // pred_check_branch
    %16 = sbr.rel (0) target = $region17
  $region16: #{encoder_forward.6} parent=0 // pred_region
    _
  $region17: #{encoder_forward.6} parent=0 // pred_fallthru
    _
  %v18 = vld [vmem:[%s0] sm:$0xff]
  %v19 = vld [vmem:[%s0 + $0x8] sm:$0xf]
  %v20 = vld [vmem:[%s0 + $0xc] sm:$0xff]
  %v21 = vld [vmem:[%s0 + $0x14] sm:$0xf]
  %v22 = vld [vmem:[%s0 + $0x18] sm:$0xff]
  %v23 = vld [vmem:[%s0 + $0x20] sm:$0xf]
  %v24 = vld [vmem:[%s0 + $0x24] sm:$0xff]
  %v25 = vld [vmem:[%s0 + $0x2c] sm:$0xf]
  %v26 = vld [vmem:[%s1] sm:$0xf]
  %v27 = vld [vmem:[%s1 + $0x4] sm:$0xf]
  %v28 = vld [vmem:[%s1 + $0x8] sm:$0xf]
  %v29 = vld [vmem:[%s1 + $0xc] sm:$0xf]
  %v30 = vld [vmem:[%s1 + $0x10] sm:$0xf]
  %v31 = vld [vmem:[%s1 + $0x14] sm:$0xf]
  %v32 = vld [vmem:[%s1 + $0x18] sm:$0xf]
  %v33 = vld [vmem:[%s1 + $0x1c] sm:$0xf]
  %v34 = vld [vmem:[%s1 + $0x20] sm:$0xf]
  %v35 = vld [vmem:[%s1 + $0x24] sm:$0xf]
  %v36 = vld [vmem:[%s1 + $0x28] sm:$0xf]
  %v37 = vld [vmem:[%s1 + $0x2c] sm:$0xf]
  %v38 = vld [vmem:[%s1 + $0x30] sm:$0xf]
  %v39 = vld [vmem:[%s1 + $0x34] sm:$0xf]
  %v40 = vld [vmem:[%s1 + $0x38] sm:$0xf]
  %v41 = vld [vmem:[%s1 + $0x3c] sm:$0xf]
  %v42 = vld [vmem:[%s1 + $0x40] sm:$0xf]
  %v43 = vld [vmem:[%s1 + $0x44] sm:$0xf]
  %v44 = vld [vmem:[%s1 + $0x48] sm:$0xf]
  %v45 = vld [vmem:[%s1 + $0x4c] sm:$0xf]
  %v46 = vld [vmem:[%s1 + $0x50] sm:$0xf]
  %v47 = vld [vmem:[%s1 + $0x54] sm:$0xf]
  %v48 = vld [vmem:[%s1 + $0x58] sm:$0xf]
  %v49 = vld [vmem:[%s1 + $0x5c] sm:$0xf]
  %v50 = vld [vmem:[%s1 + $0x60] sm:$0xf]
  %v51 = vld [vmem:[%s1 + $0x64] sm:$0xf]
  %v52 = vld [vmem:[%s1 + $0x68] sm:$0xf]
  %v53 = vld [vmem:[%s1 + $0x6c] sm:$0xf]
  %v54 = vld [vmem:[%s1 + $0x70] sm:$0xf]
  %v55 = vld [vmem:[%s1 + $0x74] sm:$0xf]
  %v56 = vld [vmem:[%s1 + $0x78] sm:$0xf]
  %v57 = vld [vmem:[%s1 + $0x7c] sm:$0xf]
  %v58 = vld [vmem:[%s1 + $0x80] sm:$0xf]
  %v59 = vld [vmem:[%s1 + $0x84] sm:$0xf]
  %v60 = vld [vmem:[%s1 + $0x88] sm:$0xf]
  %v61 = vld [vmem:[%s1 + $0x8c] sm:$0xf]
  %v70 = vunpack.c.l.b16 %v18
  %v71 = vunpack.c.h.b16 %v18
  %v72 = vunpack.c.l.b16 %v19
  %v73 = vunpack.c.l.b16 %v20
  %v74 = vunpack.c.h.b16 %v20
  %v75 = vunpack.c.l.b16 %v21
  %v76 = vunpack.c.l.b16 %v22
  %v77 = vunpack.c.h.b16 %v22
  %v78 = vunpack.c.l.b16 %v23
  %v79 = vunpack.c.l.b16 %v24
  %v80 = vunpack.c.h.b16 %v24
  %v81 = vunpack.c.l.b16 %v25
  %v82 = vpack.c.b16 %v73, %v70
  %v83 = vpack.c.b16 %v74, %v71
  %v84 = vpack.c.b16 %v75, %v72
  %v85 = vpack.c.b16 %v79, %v76
  %v86 = vpack.c.b16 %v80, %v77
  %v87 = vpack.c.b16 %v81, %v78
  %v128 = vunpack.c.l.b16 %v26
  %v129 = vunpack.c.l.b16 %v27
  %v130 = vunpack.c.l.b16 %v28
  %v131 = vunpack.c.l.b16 %v29
  %v132 = vunpack.c.l.b16 %v30
  %v133 = vunpack.c.l.b16 %v31
  %v134 = vunpack.c.l.b16 %v32
  %v135 = vunpack.c.l.b16 %v33
  %v136 = vunpack.c.l.b16 %v34
  %v137 = vunpack.c.l.b16 %v35
  %v138 = vunpack.c.l.b16 %v36
  %v139 = vunpack.c.l.b16 %v37
  %v140 = vunpack.c.l.b16 %v38
  %v141 = vunpack.c.l.b16 %v39
  %v142 = vunpack.c.l.b16 %v40
  %v143 = vunpack.c.l.b16 %v41
  %v144 = vunpack.c.l.b16 %v42
  %v145 = vunpack.c.l.b16 %v43
  %v146 = vunpack.c.l.b16 %v44
  %v147 = vunpack.c.l.b16 %v45
  %v148 = vunpack.c.l.b16 %v46
  %v149 = vunpack.c.l.b16 %v47
  %v150 = vunpack.c.l.b16 %v48
  %v151 = vunpack.c.l.b16 %v49
  %v152 = vunpack.c.l.b16 %v50
  %v153 = vunpack.c.l.b16 %v51
  %v154 = vunpack.c.l.b16 %v52
  %v155 = vunpack.c.l.b16 %v53
  %v156 = vunpack.c.l.b16 %v54
  %v157 = vunpack.c.l.b16 %v55
  %v158 = vunpack.c.l.b16 %v56
  %v159 = vunpack.c.l.b16 %v57
  %v160 = vunpack.c.l.b16 %v58
  %v161 = vunpack.c.l.b16 %v59
  %v162 = vunpack.c.l.b16 %v60
  %v163 = vunpack.c.l.b16 %v61
  %v164 = vpack.c.b16 %v129, %v128
  %v165 = vpack.c.b16 %v131, %v130
  %v166 = vpack.c.b16 %v133, %v132
  %v167 = vpack.c.b16 %v135, %v134
  %v168 = vpack.c.b16 %v137, %v136
  %v169 = vpack.c.b16 %v139, %v138
  %v170 = vpack.c.b16 %v141, %v140
  %v171 = vpack.c.b16 %v143, %v142
  %v172 = vpack.c.b16 %v145, %v144
  %v173 = vpack.c.b16 %v147, %v146
  %v174 = vpack.c.b16 %v149, %v148
  %v175 = vpack.c.b16 %v151, %v150
  %v176 = vpack.c.b16 %v153, %v152
  %v177 = vpack.c.b16 %v155, %v154
  %v178 = vpack.c.b16 %v157, %v156
  %v179 = vpack.c.b16 %v159, %v158
  %v180 = vpack.c.b16 %v161, %v160
  %v181 = vpack.c.b16 %v163, %v162
  %vm200 = vcmask 261120
  %v202 = vsel %vm200, %v84, 0
  %v205 = vsel %vm200, %v87, 0
  %207 = vmatprep.subr.bf16.mxu0 0
  %208 = vmatpush1.bf16.msra.mxu0 %v164
  %209 = vmatprep.subr.bf16.mxu0 0
  %210 = vmatpush1.bf16.msra.mxu0 %v165
  %211 = vmatprep.subr.bf16.mxu0 0
  %212 = vmatpush1.bf16.msra.mxu0 %v166
  %213 = vmatprep.subr.bf16.mxu0 0
  %214 = vmatpush1.bf16.msra.mxu0 %v167
  %215 = vmatprep.subr.bf16.mxu0 0
  %216 = vmatpush1.bf16.msra.mxu0 %v168
  %217 = vmatprep.subr.bf16.mxu0 0
  %218 = vmatpush1.bf16.msra.mxu0 %v169
  %219 = vmatprep.subr.bf16.mxu0 0
  %220 = vmatpush1.bf16.msra.mxu0 %v170
  %221 = vmatprep.subr.bf16.mxu0 0
  %222 = vmatpush1.bf16.msra.mxu0 %v171
  %223 = vmatprep.subr.bf16.mxu0 0
  %224 = vmatpush1.bf16.msra.mxu0 %v172
  %225 = vmatprep.subr.bf16.mxu0 0
  %226 = vmatpush1.bf16.msra.mxu0 %v173
  %227 = vmatprep.subr.bf16.mxu0 0
  %228 = vmatpush1.bf16.msra.mxu0 %v174
  %229 = vmatprep.subr.bf16.mxu0 0
  %230 = vmatpush1.bf16.msra.mxu0 %v175
  %231 = vmatprep.subr.bf16.mxu0 0
  %232 = vmatpush1.bf16.msra.mxu0 %v176
  %233 = vmatprep.subr.bf16.mxu0 0
  %234 = vmatpush1.bf16.msra.mxu0 %v177
  %235 = vmatprep.subr.bf16.mxu0 0
  %236 = vmatpush1.bf16.msra.mxu0 %v178
  %237 = vmatprep.subr.bf16.mxu0 0
  %238 = vmatpush1.bf16.msra.mxu0 %v179
  %239 = vmatprep.mubr.bf16.mxu0 %v83
  %240 = vmatmul.mubr.bf16.gmra.mrb[0].mxu0 %v82
  %v241 = vpop.f32.mrb[0].mxu0
  %v242 = vadd.f32 0.0, %v241
  %v243 = vpop.f32.mrb[0].mxu0
  %v244 = vpop.f32.mrb[0].mxu0
  %v245 = vadd.f32 0.0, %v244
  %v246 = vpop.f32.mrb[0].mxu0
  %247 = vmatprep.mubr.bf16.mxu0 %v86
  %248 = vmatmul.mubr.bf16.gmra.mrb[0].mxu0 %v85
  %v249 = vpop.f32.mrb[0].mxu0
  %v250 = vadd.f32 0.0, %v249
  %v251 = vpop.f32.mrb[0].mxu0
  %v252 = vpop.f32.mrb[0].mxu0
  %v253 = vadd.f32 0.0, %v252
  %v254 = vpop.f32.mrb[0].mxu0
  %255 = vdwg.mxu0
  %256 = vmatprep.subr.bf16.mxu0 0
  %257 = vmatpush1.bf16.msra.mxu0 %v180
  %258 = vmatprep.subr.bf16.mxu0 0
  %259 = vmatpush1.bf16.msra.mxu0 %v181
  %260 = vmatprep.subr.bf16.mxu0 0
  %261 = vmatpush1.bf16.msra.mxu0 0
  %262 = vmatprep.subr.bf16.mxu0 0
  %263 = vmatpush1.bf16.msra.mxu0 0
  %264 = vmatprep.subr.bf16.mxu0 0
  %265 = vmatpush1.bf16.msra.mxu0 0
  %266 = vmatprep.subr.bf16.mxu0 0
  %267 = vmatpush1.bf16.msra.mxu0 0
  %268 = vmatprep.subr.bf16.mxu0 0
  %269 = vmatpush1.bf16.msra.mxu0 0
  %270 = vmatprep.subr.bf16.mxu0 0
  %271 = vmatpush1.bf16.msra.mxu0 0
  %272 = vmatprep.subr.bf16.mxu0 0
  %273 = vmatpush1.bf16.msra.mxu0 0
  %274 = vmatprep.subr.bf16.mxu0 0
  %275 = vmatpush1.bf16.msra.mxu0 0
  %276 = vmatprep.subr.bf16.mxu0 0
  %277 = vmatpush1.bf16.msra.mxu0 0
  %278 = vmatprep.subr.bf16.mxu0 0
  %279 = vmatpush1.bf16.msra.mxu0 0
  %280 = vmatprep.subr.bf16.mxu0 0
  %281 = vmatpush1.bf16.msra.mxu0 0
  %282 = vmatprep.subr.bf16.mxu0 0
  %283 = vmatpush1.bf16.msra.mxu0 0
  %284 = vmatprep.subr.bf16.mxu0 0
  %285 = vmatpush1.bf16.msra.mxu0 0
  %286 = vmatprep.subr.bf16.mxu0 0
  %287 = vmatpush1.bf16.msra.mxu0 0
  %288 = vmatprep.mubr.bf16.mxu0 0
  %289 = vmatmul.mubr.bf16.gmra.mrb[0].mxu0 %v202
  %v290 = vpop.f32.mrb[0].mxu0
  %v291 = vadd.f32 %v242, %v290
  %v292 = vpop.f32.mrb[0].mxu0
  %v293 = vpop.f32.mrb[0].mxu0
  %v294 = vadd.f32 %v245, %v293
  %v295 = vpop.f32.mrb[0].mxu0
  %296 = vmatprep.mubr.bf16.mxu0 0
  %297 = vmatmul.mubr.bf16.gmra.mrb[0].mxu0 %v205
  %v298 = vpop.f32.mrb[0].mxu0
  %v299 = vadd.f32 %v250, %v298
  %v300 = vpop.f32.mrb[0].mxu0
  %v301 = vpop.f32.mrb[0].mxu0
  %v302 = vadd.f32 %v253, %v301
  %v303 = vpop.f32.mrb[0].mxu0
  %304 = vdwg.mxu0
  %v305 = vadd.f32 %v291, %v294
  %v306 = vadd.f32 %v305, %v299
  %v307 = vadd.f32 %v306, %v302
  %v308 = vrot.slane %v307, 4
  %v309 = vadd.f32 %v307, %v308
  %v310 = vrot.slane %v309, 2
  %v311 = vadd.f32 %v309, %v310
  %v312 = vrot.slane %v311, 1
  %v313 = vadd.f32 %v311, %v312
  %v314 = vmul.f32 %v313, 0.03125
  %v315 = vsub.f32 %v291, %v314
  %v316 = vsub.f32 %v294, %v314
  %v317 = vsub.f32 %v299, %v314
  %v318 = vsub.f32 %v302, %v314
  %v319 = vmul.f32 %v315, %v315
  %v320 = vmul.f32 %v316, %v316
  %v321 = vmul.f32 %v317, %v317
  %v322 = vmul.f32 %v318, %v318
  %v323 = vadd.f32 %v319, %v320
  %v324 = vadd.f32 %v323, %v321
  %v325 = vadd.f32 %v324, %v322
  %v326 = vrot.slane %v325, 4
  %v327 = vadd.f32 %v325, %v326
  %v328 = vrot.slane %v327, 2
  %v329 = vadd.f32 %v327, %v328
  %v330 = vrot.slane %v329, 1
  %v331 = vadd.f32 %v329, %v330
  %v332 = vmul.f32 %v331, 0.03125
  %v333 = vadd.f32 %v332, 1e-05
  %v334 = vrsqrt.pop %v333
  %v335 = vmul.f32 %v315, %v334
  %v336 = vmul.f32 %v316, %v334
  %v337 = vmul.f32 %v317, %v334
  %v338 = vmul.f32 %v318, %v334
  %v339 = vld [vmem:[%s2] sm:$0x1]
  %v341 = vlaneseq
  %v342 = vshrl.u32 %v341, 7
  %v343 = vsub.s32 0, %v342
  %v344 = vrot.slane %v339, %v343
  %v346 = vmul.f32 %v335, %v344
  %v347 = vmul.f32 %v336, %v344
  %v348 = vmul.f32 %v337, %v344
  %v349 = vmul.f32 %v338, %v344
  %v350 = vld [vmem:[%s3] sm:$0x1]
  %v352 = vlaneseq
  %v353 = vshrl.u32 %v352, 7
  %v354 = vsub.s32 0, %v353
  %v355 = vrot.slane %v350, %v354
  %v357 = vadd.f32 %v346, %v355
  %v358 = vadd.f32 %v347, %v355
  %v359 = vadd.f32 %v348, %v355
  %v360 = vadd.f32 %v349, %v355
  %vm361 = vcmp.ge.f32.partialorder %v357, 0.0
  %vm362 = vcmp.ge.f32.partialorder %v358, 0.0
  %vm363 = vcmp.ge.f32.partialorder %v359, 0.0
  %vm364 = vcmp.ge.f32.partialorder %v360, 0.0
  %v365 = vmul.f32 %v357, 0.01
  %v366 = vmul.f32 %v358, 0.01
  %v367 = vmul.f32 %v359, 0.01
  %v368 = vmul.f32 %v360, 0.01
  %v369 = vsel %vm361, %v357, %v365
  %v370 = vsel %vm362, %v358, %v366
  %v371 = vsel %vm363, %v359, %v367
  %v372 = vsel %vm364, %v360, %v368
  %373 = vst [vmem:[%s4] sm:$0xff] %v369
  %374 = vst [vmem:[%s4 + $0x8] sm:$0xff] %v370
  %375 = vst [vmem:[%s4 + $0x10] sm:$0xff] %v371
  %376 = vst [vmem:[%s4 + $0x18] sm:$0xff] %v372
  // Predicated region
  $region18: #{encoder_forward.6} parent=0 // pred_check
    _
  $region19: #{encoder_forward.6} parent=0 // pred_check_branch
    %378 = sbr.rel (0) target = $region21
  $region20: #{encoder_forward.6} parent=0 // pred_region
    _
  $region21: #{encoder_forward.6} parent=0 // pred_fallthru
    _
  // Predicated region
  $region22: #{encoder_forward.6} parent=0 // pred_check
    _
  $region23: #{encoder_forward.6} parent=0 // pred_check_branch
    %380 = sbr.rel (0) target = $region25
  $region24: #{encoder_forward.6} parent=0 // pred_region
    _
  $region25: #{encoder_forward.6} parent=0 // pred_fallthru
    _

// kernel: encoder_forward.7
$region0: #{encoder_forward.7}
  #allocation0 [shape = 'u32[]', space=smem, size = 0x4, offset = 0x4, fixed_abs, tag = 'smem constant byte address 0x4 - core index']
  #allocation1 [shape = 'u32[144,128]{1,0:T(1,128)}', space=vmem, size = 0x12000, scoped, tag = 'internal scratch']
  %s0 = inlined_call_operand.vmem [shape: bf16[8,576], index: 0, kind: input, shape index: {}]
  %s1 = inlined_call_operand.vmem [shape: bf16[576,128], index: 1, kind: input, shape index: {}]
  %s2 = inlined_call_operand.vmem [shape: f32[1,128], index: 2, kind: input, shape index: {}]
  %s3 = inlined_call_operand.vmem [shape: f32[1,128], index: 3, kind: input, shape index: {}]
  %s4 = inlined_call_operand.vmem [shape: f32[8,128], index: 4, kind: output, shape index: {}]
  %s5 = sld [smem:[#allocation0]]
  $region26: #{encoder_forward.7} parent=0
    _
  %s7 = ssub.s32 1, %s5
  %s8 = scalar_select 0, %s7, %s5
  // Predicated region
  $region2: #{encoder_forward.7} parent=0 // pred_check
    _
  $region3: #{encoder_forward.7} parent=0 // pred_check_branch
    %10 = sbr.rel (0) target = $region5
  $region4: #{encoder_forward.7} parent=0 // pred_region
    _
  $region5: #{encoder_forward.7} parent=0 // pred_fallthru
    _
  // Predicated region
  $region6: #{encoder_forward.7} parent=0 // pred_check
    _
  $region7: #{encoder_forward.7} parent=0 // pred_check_branch
    %12 = sbr.rel (0) target = $region9
  $region8: #{encoder_forward.7} parent=0 // pred_region
    _
  $region9: #{encoder_forward.7} parent=0 // pred_fallthru
    _
  // Predicated region
  $region10: #{encoder_forward.7} parent=0 // pred_check
    _
  $region11: #{encoder_forward.7} parent=0 // pred_check_branch
    %14 = sbr.rel (0) target = $region13
  $region12: #{encoder_forward.7} parent=0 // pred_region
    _
  $region13: #{encoder_forward.7} parent=0 // pred_fallthru
    _
  // Predicated region
  $region14: #{encoder_forward.7} parent=0 // pred_check
    _
  $region15: #{encoder_forward.7} parent=0 // pred_check_branch
    %16 = sbr.rel (0) target = $region17
  $region16: #{encoder_forward.7} parent=0 // pred_region
    _
  $region17: #{encoder_forward.7} parent=0 // pred_fallthru
    _
  %v18 = vld [vmem:[%s0] sm:$0xff]
  %v19 = vld [vmem:[%s0 + $0x8] sm:$0xff]
  %v20 = vld [vmem:[%s0 + $0x10] sm:$0xf]
  %v21 = vld [vmem:[%s1] sm:$0xf]
  %v22 = vld [vmem:[%s1 + $0x4] sm:$0xf]
  %v23 = vld [vmem:[%s1 + $0x8] sm:$0xf]
  %v24 = vld [vmem:[%s1 + $0xc] sm:$0xf]
  %v25 = vld [vmem:[%s1 + $0x10] sm:$0xf]
  %v26 = vld [vmem:[%s1 + $0x14] sm:$0xf]
  %v27 = vld [vmem:[%s1 + $0x18] sm:$0xf]
  %v28 = vld [vmem:[%s1 + $0x1c] sm:$0xf]
  %v29 = vld [vmem:[%s1 + $0x20] sm:$0xf]
  %v30 = vld [vmem:[%s1 + $0x24] sm:$0xf]
  %v31 = vld [vmem:[%s1 + $0x28] sm:$0xf]
  %v32 = vld [vmem:[%s1 + $0x2c] sm:$0xf]
  %v33 = vld [vmem:[%s1 + $0x30] sm:$0xf]
  %v34 = vld [vmem:[%s1 + $0x34] sm:$0xf]
  %v35 = vld [vmem:[%s1 + $0x38] sm:$0xf]
  %v36 = vld [vmem:[%s1 + $0x3c] sm:$0xf]
  %v37 = vld [vmem:[%s1 + $0x40] sm:$0xf]
  %v38 = vld [vmem:[%s1 + $0x44] sm:$0xf]
  %v39 = vld [vmem:[%s1 + $0x48] sm:$0xf]
  %v40 = vld [vmem:[%s1 + $0x4c] sm:$0xf]
  %v41 = vld [vmem:[%s1 + $0x50] sm:$0xf]
  %v42 = vld [vmem:[%s1 + $0x54] sm:$0xf]
  %v43 = vld [vmem:[%s1 + $0x58] sm:$0xf]
  %v44 = vld [vmem:[%s1 + $0x5c] sm:$0xf]
  %v45 = vld [vmem:[%s1 + $0x60] sm:$0xf]
  %v46 = vld [vmem:[%s1 + $0x64] sm:$0xf]
  %v47 = vld [vmem:[%s1 + $0x68] sm:$0xf]
  %v48 = vld [vmem:[%s1 + $0x6c] sm:$0xf]
  %v49 = vld [vmem:[%s1 + $0x70] sm:$0xf]
  %v50 = vld [vmem:[%s1 + $0x74] sm:$0xf]
  %v51 = vld [vmem:[%s1 + $0x78] sm:$0xf]
  %v52 = vld [vmem:[%s1 + $0x7c] sm:$0xf]
  %v53 = vld [vmem:[%s1 + $0x80] sm:$0xf]
  %v54 = vld [vmem:[%s1 + $0x84] sm:$0xf]
  %v55 = vld [vmem:[%s1 + $0x88] sm:$0xf]
  %v56 = vld [vmem:[%s1 + $0x8c] sm:$0xf]
  %v57 = vld [vmem:[%s1 + $0x90] sm:$0xf]
  %v58 = vld [vmem:[%s1 + $0x94] sm:$0xf]
  %v59 = vld [vmem:[%s1 + $0x98] sm:$0xf]
  %v60 = vld [vmem:[%s1 + $0x9c] sm:$0xf]
  %v61 = vld [vmem:[%s1 + $0xa0] sm:$0xf]
  %v62 = vld [vmem:[%s1 + $0xa4] sm:$0xf]
  %v63 = vld [vmem:[%s1 + $0xa8] sm:$0xf]
  %v64 = vld [vmem:[%s1 + $0xac] sm:$0xf]
  %v65 = vld [vmem:[%s1 + $0xb0] sm:$0xf]
  %v66 = vld [vmem:[%s1 + $0xb4] sm:$0xf]
  %v67 = vld [vmem:[%s1 + $0xb8] sm:$0xf]
  %v68 = vld [vmem:[%s1 + $0xbc] sm:$0xf]
  %v69 = vld [vmem:[%s1 + $0xc0] sm:$0xf]
  %v70 = vld [vmem:[%s1 + $0xc4] sm:$0xf]
  %v71 = vld [vmem:[%s1 + $0xc8] sm:$0xf]
  %v72 = vld [vmem:[%s1 + $0xcc] sm:$0xf]
  %v73 = vld [vmem:[%s1 + $0xd0] sm:$0xf]
  %v74 = vld [vmem:[%s1 + $0xd4] sm:$0xf]
  %v75 = vld [vmem:[%s1 + $0xd8] sm:$0xf]
  %v76 = vld [vmem:[%s1 + $0xdc] sm:$0xf]
  %v77 = vld [vmem:[%s1 + $0xe0] sm:$0xf]
  %v78 = vld [vmem:[%s1 + $0xe4] sm:$0xf]
  %v79 = vld [vmem:[%s1 + $0xe8] sm:$0xf]
  %v80 = vld [vmem:[%s1 + $0xec] sm:$0xf]
  %v81 = vld [vmem:[%s1 + $0xf0] sm:$0xf]
  %v82 = vld [vmem:[%s1 + $0xf4] sm:$0xf]
  %v83 = vld [vmem:[%s1 + $0xf8] sm:$0xf]
  %v84 = vld [vmem:[%s1 + $0xfc] sm:$0xf]
  %v85 = vld [vmem:[%s1 + $0x100] sm:$0xf]
  %v86 = vld [vmem:[%s1 + $0x104] sm:$0xf]
  %v87 = vld [vmem:[%s1 + $0x108] sm:$0xf]
  %v88 = vld [vmem:[%s1 + $0x10c] sm:$0xf]
  %v89 = vld [vmem:[%s1 + $0x110] sm:$0xf]
  %v90 = vld [vmem:[%s1 + $0x114] sm:$0xf]
  %v91 = vld [vmem:[%s1 + $0x118] sm:$0xf]
  %v92 = vld [vmem:[%s1 + $0x11c] sm:$0xf]
  %v96 = vunpack.c.l.b16 %v18
  %v97 = vunpack.c.h.b16 %v18
  %v98 = vunpack.c.l.b16 %v19
  %v99 = vunpack.c.h.b16 %v19
  %v100 = vunpack.c.l.b16 %v20
  %v101 = vpack.c.b16 %v96, %v96
  %v102 = vpack.c.b16 %v97, %v97
  %v103 = vpack.c.b16 %v98, %v98
  %v104 = vpack.c.b16 %v99, %v99
  %v105 = vpack.c.b16 %v100, %v100
  %v182 = vunpack.c.l.b16 %v21
  %v183 = vunpack.c.l.b16 %v22
  %v184 = vunpack.c.l.b16 %v23
  %v185 = vunpack.c.l.b16 %v24
  %v186 = vunpack.c.l.b16 %v25
  %v187 = vunpack.c.l.b16 %v26
  %v188 = vunpack.c.l.b16 %v27
  %v189 = vunpack.c.l.b16 %v28
  %v190 = vunpack.c.l.b16 %v29
  %v191 = vunpack.c.l.b16 %v30
  %v192 = vunpack.c.l.b16 %v31
  %v193 = vunpack.c.l.b16 %v32
  %v194 = vunpack.c.l.b16 %v33
  %v195 = vunpack.c.l.b16 %v34
  %v196 = vunpack.c.l.b16 %v35
  %v197 = vunpack.c.l.b16 %v36
  %v198 = vunpack.c.l.b16 %v37
  %v199 = vunpack.c.l.b16 %v38
  %v200 = vunpack.c.l.b16 %v39
  %v201 = vunpack.c.l.b16 %v40
  %v202 = vunpack.c.l.b16 %v41
  %v203 = vunpack.c.l.b16 %v42
  %v204 = vunpack.c.l.b16 %v43
  %v205 = vunpack.c.l.b16 %v44
  %v206 = vunpack.c.l.b16 %v45
  %v207 = vunpack.c.l.b16 %v46
  %v208 = vunpack.c.l.b16 %v47
  %v209 = vunpack.c.l.b16 %v48
  %v210 = vunpack.c.l.b16 %v49
  %v211 = vunpack.c.l.b16 %v50
  %v212 = vunpack.c.l.b16 %v51
  %v213 = vunpack.c.l.b16 %v52
  %v214 = vunpack.c.l.b16 %v53
  %v215 = vunpack.c.l.b16 %v54
  %v216 = vunpack.c.l.b16 %v55
  %v217 = vunpack.c.l.b16 %v56
  %v218 = vunpack.c.l.b16 %v57
  %v219 = vunpack.c.l.b16 %v58
  %v220 = vunpack.c.l.b16 %v59
  %v221 = vunpack.c.l.b16 %v60
  %v222 = vunpack.c.l.b16 %v61
  %v223 = vunpack.c.l.b16 %v62
  %v224 = vunpack.c.l.b16 %v63
  %v225 = vunpack.c.l.b16 %v64
  %v226 = vunpack.c.l.b16 %v65
  %v227 = vunpack.c.l.b16 %v66
  %v228 = vunpack.c.l.b16 %v67
  %v229 = vunpack.c.l.b16 %v68
  %v230 = vunpack.c.l.b16 %v69
  %v231 = vunpack.c.l.b16 %v70
  %v232 = vunpack.c.l.b16 %v71
  %v233 = vunpack.c.l.b16 %v72
  %v234 = vunpack.c.l.b16 %v73
  %v235 = vunpack.c.l.b16 %v74
  %v236 = vunpack.c.l.b16 %v75
  %v237 = vunpack.c.l.b16 %v76
  %v238 = vunpack.c.l.b16 %v77
  %v239 = vunpack.c.l.b16 %v78
  %v240 = vunpack.c.l.b16 %v79
  %v241 = vunpack.c.l.b16 %v80
  %v242 = vunpack.c.l.b16 %v81
  %v243 = vunpack.c.l.b16 %v82
  %v244 = vunpack.c.l.b16 %v83
  %v245 = vunpack.c.l.b16 %v84
  %v246 = vunpack.c.l.b16 %v85
  %v247 = vunpack.c.l.b16 %v86
  %v248 = vunpack.c.l.b16 %v87
  %v249 = vunpack.c.l.b16 %v88
  %v250 = vunpack.c.l.b16 %v89
  %v251 = vunpack.c.l.b16 %v90
  %v252 = vunpack.c.l.b16 %v91
  %v253 = vunpack.c.l.b16 %v92
  %v254 = vpack.c.b16 %v183, %v182
  %v255 = vpack.c.b16 %v185, %v184
  %v256 = vpack.c.b16 %v187, %v186
  %v257 = vpack.c.b16 %v189, %v188
  %v258 = vpack.c.b16 %v191, %v190
  %v259 = vpack.c.b16 %v193, %v192
  %v260 = vpack.c.b16 %v195, %v194
  %v261 = vpack.c.b16 %v197, %v196
  %v262 = vpack.c.b16 %v199, %v198
  %v263 = vpack.c.b16 %v201, %v200
  %v264 = vpack.c.b16 %v203, %v202
  %v265 = vpack.c.b16 %v205, %v204
  %v266 = vpack.c.b16 %v207, %v206
  %v267 = vpack.c.b16 %v209, %v208
  %v268 = vpack.c.b16 %v211, %v210
  %v269 = vpack.c.b16 %v213, %v212
  %v270 = vpack.c.b16 %v215, %v214
  %v271 = vpack.c.b16 %v217, %v216
  %v272 = vpack.c.b16 %v219, %v218
  %v273 = vpack.c.b16 %v221, %v220
  %v274 = vpack.c.b16 %v223, %v222
  %v275 = vpack.c.b16 %v225, %v224
  %v276 = vpack.c.b16 %v227, %v226
  %v277 = vpack.c.b16 %v229, %v228
  %v278 = vpack.c.b16 %v231, %v230
  %v279 = vpack.c.b16 %v233, %v232
  %v280 = vpack.c.b16 %v235, %v234
  %v281 = vpack.c.b16 %v237, %v236
  %v282 = vpack.c.b16 %v239, %v238
  %v283 = vpack.c.b16 %v241, %v240
  %v284 = vpack.c.b16 %v243, %v242
  %v285 = vpack.c.b16 %v245, %v244
  %v286 = vpack.c.b16 %v247, %v246
  %v287 = vpack.c.b16 %v249, %v248
  %v288 = vpack.c.b16 %v251, %v250
  %v289 = vpack.c.b16 %v253, %v252
  %vm326 = vcmask 523264
  %v328 = vsel %vm326, %v105, 0
  %330 = vmatprep.subr.bf16.mxu0 0
  %331 = vmatpush1.bf16.msra.mxu0 %v254
  %332 = vmatprep.subr.bf16.mxu0 0
  %333 = vmatpush1.bf16.msra.mxu0 %v255
  %334 = vmatprep.subr.bf16.mxu0 0
  %335 = vmatpush1.bf16.msra.mxu0 %v256
  %336 = vmatprep.subr.bf16.mxu0 0
  %337 = vmatpush1.bf16.msra.mxu0 %v257
  %338 = vmatprep.subr.bf16.mxu0 0
  %339 = vmatpush1.bf16.msra.mxu0 %v258
  %340 = vmatprep.subr.bf16.mxu0 0
  %341 = vmatpush1.bf16.msra.mxu0 %v259
  %342 = vmatprep.subr.bf16.mxu0 0
  %343 = vmatpush1.bf16.msra.mxu0 %v260
  %344 = vmatprep.subr.bf16.mxu0 0
  %345 = vmatpush1.bf16.msra.mxu0 %v261
  %346 = vmatprep.subr.bf16.mxu0 0
  %347 = vmatpush1.bf16.msra.mxu0 %v262
  %348 = vmatprep.subr.bf16.mxu0 0
  %349 = vmatpush1.bf16.msra.mxu0 %v263
  %350 = vmatprep.subr.bf16.mxu0 0
  %351 = vmatpush1.bf16.msra.mxu0 %v264
  %352 = vmatprep.subr.bf16.mxu0 0
  %353 = vmatpush1.bf16.msra.mxu0 %v265
  %354 = vmatprep.subr.bf16.mxu0 0
  %355 = vmatpush1.bf16.msra.mxu0 %v266
  %356 = vmatprep.subr.bf16.mxu0 0
  %357 = vmatpush1.bf16.msra.mxu0 %v267
  %358 = vmatprep.subr.bf16.mxu0 0
  %359 = vmatpush1.bf16.msra.mxu0 %v268
  %360 = vmatprep.subr.bf16.mxu0 0
  %361 = vmatpush1.bf16.msra.mxu0 %v269
  %362 = vmatprep.mubr.bf16.mxu0 %v102
  %363 = vmatmul.mubr.bf16.gmra.mrb[0].mxu0 %v101
  %v364 = vpop.f32.mrb[0].mxu0
  %v365 = vadd.f32 0.0, %v364
  %v366 = vpop.f32.mrb[0].mxu0
  %v367 = vpop.f32.mrb[0].mxu0
  %v368 = vpop.f32.mrb[0].mxu0
  %369 = vdwg.mxu0
  %370 = vmatprep.subr.bf16.mxu0 0
  %371 = vmatpush1.bf16.msra.mxu0 %v270
  %372 = vmatprep.subr.bf16.mxu0 0
  %373 = vmatpush1.bf16.msra.mxu0 %v271
  %374 = vmatprep.subr.bf16.mxu0 0
  %375 = vmatpush1.bf16.msra.mxu0 %v272
  %376 = vmatprep.subr.bf16.mxu0 0
  %377 = vmatpush1.bf16.msra.mxu0 %v273
  %378 = vmatprep.subr.bf16.mxu0 0
  %379 = vmatpush1.bf16.msra.mxu0 %v274
  %380 = vmatprep.subr.bf16.mxu0 0
  %381 = vmatpush1.bf16.msra.mxu0 %v275
  %382 = vmatprep.subr.bf16.mxu0 0
  %383 = vmatpush1.bf16.msra.mxu0 %v276
  %384 = vmatprep.subr.bf16.mxu0 0
  %385 = vmatpush1.bf16.msra.mxu0 %v277
  %386 = vmatprep.subr.bf16.mxu0 0
  %387 = vmatpush1.bf16.msra.mxu0 %v278
  %388 = vmatprep.subr.bf16.mxu0 0
  %389 = vmatpush1.bf16.msra.mxu0 %v279
  %390 = vmatprep.subr.bf16.mxu0 0
  %391 = vmatpush1.bf16.msra.mxu0 %v280
  %392 = vmatprep.subr.bf16.mxu0 0
  %393 = vmatpush1.bf16.msra.mxu0 %v281
  %394 = vmatprep.subr.bf16.mxu0 0
  %395 = vmatpush1.bf16.msra.mxu0 %v282
  %396 = vmatprep.subr.bf16.mxu0 0
  %397 = vmatpush1.bf16.msra.mxu0 %v283
  %398 = vmatprep.subr.bf16.mxu0 0
  %399 = vmatpush1.bf16.msra.mxu0 %v284
  %400 = vmatprep.subr.bf16.mxu0 0
  %401 = vmatpush1.bf16.msra.mxu0 %v285
  %402 = vmatprep.mubr.bf16.mxu0 %v104
  %403 = vmatmul.mubr.bf16.gmra.mrb[0].mxu0 %v103
  %v404 = vpop.f32.mrb[0].mxu0
  %v405 = vadd.f32 %v365, %v404
  %v406 = vpop.f32.mrb[0].mxu0
  %v407 = vpop.f32.mrb[0].mxu0
  %v408 = vpop.f32.mrb[0].mxu0
  %409 = vdwg.mxu0
  %410 = vmatprep.subr.bf16.mxu0 0
  %411 = vmatpush1.bf16.msra.mxu0 %v286
  %412 = vmatprep.subr.bf16.mxu0 0
  %413 = vmatpush1.bf16.msra.mxu0 %v287
  %414 = vmatprep.subr.bf16.mxu0 0
  %415 = vmatpush1.bf16.msra.mxu0 %v288
  %416 = vmatprep.subr.bf16.mxu0 0
  %417 = vmatpush1.bf16.msra.mxu0 %v289
  %418 = vmatprep.subr.bf16.mxu0 0
  %419 = vmatpush1.bf16.msra.mxu0 0
  %420 = vmatprep.subr.bf16.mxu0 0
  %421 = vmatpush1.bf16.msra.mxu0 0
  %422 = vmatprep.subr.bf16.mxu0 0
  %423 = vmatpush1.bf16.msra.mxu0 0
  %424 = vmatprep.subr.bf16.mxu0 0
  %425 = vmatpush1.bf16.msra.mxu0 0
  %426 = vmatprep.subr.bf16.mxu0 0
  %427 = vmatpush1.bf16.msra.mxu0 0
  %428 = vmatprep.subr.bf16.mxu0 0
  %429 = vmatpush1.bf16.msra.mxu0 0
  %430 = vmatprep.subr.bf16.mxu0 0
  %431 = vmatpush1.bf16.msra.mxu0 0
  %432 = vmatprep.subr.bf16.mxu0 0
  %433 = vmatpush1.bf16.msra.mxu0 0
  %434 = vmatprep.subr.bf16.mxu0 0
  %435 = vmatpush1.bf16.msra.mxu0 0
  %436 = vmatprep.subr.bf16.mxu0 0
  %437 = vmatpush1.bf16.msra.mxu0 0
  %438 = vmatprep.subr.bf16.mxu0 0
  %439 = vmatpush1.bf16.msra.mxu0 0
  %440 = vmatprep.subr.bf16.mxu0 0
  %441 = vmatpush1.bf16.msra.mxu0 0
  %442 = vmatprep.mubr.bf16.mxu0 0
  %443 = vmatmul.mubr.bf16.gmra.mrb[0].mxu0 %v328
  %v444 = vpop.f32.mrb[0].mxu0
  %v445 = vadd.f32 %v405, %v444
  %v446 = vpop.f32.mrb[0].mxu0
  %v447 = vpop.f32.mrb[0].mxu0
  %v448 = vpop.f32.mrb[0].mxu0
  %449 = vdwg.mxu0
  %v450 = vrot.slane %v445, 4
  %v451 = vadd.f32 %v445, %v450
  %v452 = vrot.slane %v451, 2
  %v453 = vadd.f32 %v451, %v452
  %v454 = vrot.slane %v453, 1
  %v455 = vadd.f32 %v453, %v454
  %v456 = vmul.f32 %v455, 0.125
  %v457 = vsub.f32 %v445, %v456
  %v458 = vmul.f32 %v457, %v457
  %v459 = vrot.slane %v458, 4
  %v460 = vadd.f32 %v458, %v459
  %v461 = vrot.slane %v460, 2
  %v462 = vadd.f32 %v460, %v461
  %v463 = vrot.slane %v462, 1
  %v464 = vadd.f32 %v462, %v463
  %v465 = vmul.f32 %v464, 0.125
  %v466 = vadd.f32 %v465, 1e-05
  %v467 = vrsqrt.pop %v466
  %v468 = vmul.f32 %v457, %v467
  %v469 = vld [vmem:[%s2] sm:$0x1]
  %v471 = vlaneseq
  %v472 = vshrl.u32 %v471, 7
  %v473 = vsub.s32 0, %v472
  %v474 = vrot.slane %v469, %v473
  %v476 = vmul.f32 %v468, %v474
  %v477 = vld [vmem:[%s3] sm:$0x1]
  %v479 = vlaneseq
  %v480 = vshrl.u32 %v479, 7
  %v481 = vsub.s32 0, %v480
  %v482 = vrot.slane %v477, %v481
  %v484 = vadd.f32 %v476, %v482
  %vm485 = vcmp.ge.f32.partialorder %v484, 0.0
  %v486 = vmul.f32 %v484, 0.01
  %v487 = vsel %vm485, %v484, %v486
  %488 = vst [vmem:[%s4] sm:$0xff] %v487
  // Predicated region
  $region18: #{encoder_forward.7} parent=0 // pred_check
    _
  $region19: #{encoder_forward.7} parent=0 // pred_check_branch
    %490 = sbr.rel (0) target = $region21
  $region20: #{encoder_forward.7} parent=0 // pred_region
    _
  $region21: #{encoder_forward.7} parent=0 // pred_fallthru
    _
  // Predicated region
  $region22: #{encoder_forward.7} parent=0 // pred_check
    _
  $region23: #{encoder_forward.7} parent=0 // pred_check_branch
    %492 = sbr.rel (0) target = $region25
  $region24: #{encoder_forward.7} parent=0 // pred_region
    _
  $region25: #{encoder_forward.7} parent=0 // pred_fallthru
    _

// kernel: encoder_forward.8
$region0: #{encoder_forward.8}
  #allocation0 [shape = 'u32[]', space=smem, size = 0x4, offset = 0x4, fixed_abs, tag = 'smem constant byte address 0x4 - core index']
  #allocation1 [shape = 'u32[144,128]{1,0:T(1,128)}', space=vmem, size = 0x12000, scoped, tag = 'internal scratch']
  %s0 = inlined_call_operand.vmem [shape: bf16[2,1152], index: 0, kind: input, shape index: {}]
  %s1 = inlined_call_operand.vmem [shape: bf16[1152,256], index: 1, kind: input, shape index: {}]
  %s2 = inlined_call_operand.vmem [shape: f32[1,256], index: 2, kind: input, shape index: {}]
  %s3 = inlined_call_operand.vmem [shape: f32[1,256], index: 3, kind: input, shape index: {}]
  %s4 = inlined_call_operand.vmem [shape: f32[2,256], index: 4, kind: output, shape index: {}]
  %s5 = sld [smem:[#allocation0]]
  $region26: #{encoder_forward.8} parent=0
    _
  %s7 = ssub.s32 1, %s5
  %s8 = scalar_select 0, %s7, %s5
  // Predicated region
  $region2: #{encoder_forward.8} parent=0 // pred_check
    _
  $region3: #{encoder_forward.8} parent=0 // pred_check_branch
    %10 = sbr.rel (0) target = $region5
  $region4: #{encoder_forward.8} parent=0 // pred_region
    _
  $region5: #{encoder_forward.8} parent=0 // pred_fallthru
    _
  // Predicated region
  $region6: #{encoder_forward.8} parent=0 // pred_check
    _
  $region7: #{encoder_forward.8} parent=0 // pred_check_branch
    %12 = sbr.rel (0) target = $region9
  $region8: #{encoder_forward.8} parent=0 // pred_region
    _
  $region9: #{encoder_forward.8} parent=0 // pred_fallthru
    _
  // Predicated region
  $region10: #{encoder_forward.8} parent=0 // pred_check
    _
  $region11: #{encoder_forward.8} parent=0 // pred_check_branch
    %14 = sbr.rel (0) target = $region13
  $region12: #{encoder_forward.8} parent=0 // pred_region
    _
  $region13: #{encoder_forward.8} parent=0 // pred_fallthru
    _
  // Predicated region
  $region14: #{encoder_forward.8} parent=0 // pred_check
    _
  $region15: #{encoder_forward.8} parent=0 // pred_check_branch
    %16 = sbr.rel (0) target = $region17
  $region16: #{encoder_forward.8} parent=0 // pred_region
    _
  $region17: #{encoder_forward.8} parent=0 // pred_fallthru
    _
  %v18 = vld [vmem:[%s0] sm:$0xff]
  %v19 = vld [vmem:[%s0 + $0x8] sm:$0x1]
  %v20 = vld [vmem:[%s1] sm:$0xff]
  %v21 = vld [vmem:[%s1 + $0x8] sm:$0xff]
  %v22 = vld [vmem:[%s1 + $0x10] sm:$0xff]
  %v23 = vld [vmem:[%s1 + $0x18] sm:$0xff]
  %v24 = vld [vmem:[%s1 + $0x20] sm:$0xff]
  %v25 = vld [vmem:[%s1 + $0x28] sm:$0xff]
  %v26 = vld [vmem:[%s1 + $0x30] sm:$0xff]
  %v27 = vld [vmem:[%s1 + $0x38] sm:$0xff]
  %v28 = vld [vmem:[%s1 + $0x40] sm:$0xff]
  %v29 = vld [vmem:[%s1 + $0x48] sm:$0xff]
  %v30 = vld [vmem:[%s1 + $0x50] sm:$0xff]
  %v31 = vld [vmem:[%s1 + $0x58] sm:$0xff]
  %v32 = vld [vmem:[%s1 + $0x60] sm:$0xff]
  %v33 = vld [vmem:[%s1 + $0x68] sm:$0xff]
  %v34 = vld [vmem:[%s1 + $0x70] sm:$0xff]
  %v35 = vld [vmem:[%s1 + $0x78] sm:$0xff]
  %v36 = vld [vmem:[%s1 + $0x80] sm:$0xff]
  %v37 = vld [vmem:[%s1 + $0x88] sm:$0xff]
  %v38 = vld [vmem:[%s1 + $0x90] sm:$0xff]
  %v39 = vld [vmem:[%s1 + $0x98] sm:$0xff]
  %v40 = vld [vmem:[%s1 + $0xa0] sm:$0xff]
  %v41 = vld [vmem:[%s1 + $0xa8] sm:$0xff]
  %v42 = vld [vmem:[%s1 + $0xb0] sm:$0xff]
  %v43 = vld [vmem:[%s1 + $0xb8] sm:$0xff]
  %v44 = vld [vmem:[%s1 + $0xc0] sm:$0xff]
  %v45 = vld [vmem:[%s1 + $0xc8] sm:$0xff]
  %v46 = vld [vmem:[%s1 + $0xd0] sm:$0xff]
  %v47 = vld [vmem:[%s1 + $0xd8] sm:$0xff]
  %v48 = vld [vmem:[%s1 + $0xe0] sm:$0xff]
  %v49 = vld [vmem:[%s1 + $0xe8] sm:$0xff]
  %v50 = vld [vmem:[%s1 + $0xf0] sm:$0xff]
  %v51 = vld [vmem:[%s1 + $0xf8] sm:$0xff]
  %v52 = vld [vmem:[%s1 + $0x100] sm:$0xff]
  %v53 = vld [vmem:[%s1 + $0x108] sm:$0xff]
  %v54 = vld [vmem:[%s1 + $0x110] sm:$0xff]
  %v55 = vld [vmem:[%s1 + $0x118] sm:$0xff]
  %v56 = vld [vmem:[%s1 + $0x120] sm:$0xff]
  %v57 = vld [vmem:[%s1 + $0x128] sm:$0xff]
  %v58 = vld [vmem:[%s1 + $0x130] sm:$0xff]
  %v59 = vld [vmem:[%s1 + $0x138] sm:$0xff]
  %v60 = vld [vmem:[%s1 + $0x140] sm:$0xff]
  %v61 = vld [vmem:[%s1 + $0x148] sm:$0xff]
  %v62 = vld [vmem:[%s1 + $0x150] sm:$0xff]
  %v63 = vld [vmem:[%s1 + $0x158] sm:$0xff]
  %v64 = vld [vmem:[%s1 + $0x160] sm:$0xff]
  %v65 = vld [vmem:[%s1 + $0x168] sm:$0xff]
  %v66 = vld [vmem:[%s1 + $0x170] sm:$0xff]
  %v67 = vld [vmem:[%s1 + $0x178] sm:$0xff]
  %v68 = vld [vmem:[%s1 + $0x180] sm:$0xff]
  %v69 = vld [vmem:[%s1 + $0x188] sm:$0xff]
  %v70 = vld [vmem:[%s1 + $0x190] sm:$0xff]
  %v71 = vld [vmem:[%s1 + $0x198] sm:$0xff]
  %v72 = vld [vmem:[%s1 + $0x1a0] sm:$0xff]
  %v73 = vld [vmem:[%s1 + $0x1a8] sm:$0xff]
  %v74 = vld [vmem:[%s1 + $0x1b0] sm:$0xff]
  %v75 = vld [vmem:[%s1 + $0x1b8] sm:$0xff]
  %v76 = vld [vmem:[%s1 + $0x1c0] sm:$0xff]
  %v77 = vld [vmem:[%s1 + $0x1c8] sm:$0xff]
  %v78 = vld [vmem:[%s1 + $0x1d0] sm:$0xff]
  %v79 = vld [vmem:[%s1 + $0x1d8] sm:$0xff]
  %v80 = vld [vmem:[%s1 + $0x1e0] sm:$0xff]
  %v81 = vld [vmem:[%s1 + $0x1e8] sm:$0xff]
  %v82 = vld [vmem:[%s1 + $0x1f0] sm:$0xff]
  %v83 = vld [vmem:[%s1 + $0x1f8] sm:$0xff]
  %v84 = vld [vmem:[%s1 + $0x200] sm:$0xff]
  %v85 = vld [vmem:[%s1 + $0x208] sm:$0xff]
  %v86 = vld [vmem:[%s1 + $0x210] sm:$0xff]
  %v87 = vld [vmem:[%s1 + $0x218] sm:$0xff]
  %v88 = vld [vmem:[%s1 + $0x220] sm:$0xff]
  %v89 = vld [vmem:[%s1 + $0x228] sm:$0xff]
  %v90 = vld [vmem:[%s1 + $0x230] sm:$0xff]
  %v91 = vld [vmem:[%s1 + $0x238] sm:$0xff]
  %v92 = vld [vmem:[%s1 + $0x240] sm:$0xff]
  %v93 = vld [vmem:[%s1 + $0x248] sm:$0xff]
  %v94 = vld [vmem:[%s1 + $0x250] sm:$0xff]
  %v95 = vld [vmem:[%s1 + $0x258] sm:$0xff]
  %v96 = vld [vmem:[%s1 + $0x260] sm:$0xff]
  %v97 = vld [vmem:[%s1 + $0x268] sm:$0xff]
  %v98 = vld [vmem:[%s1 + $0x270] sm:$0xff]
  %v99 = vld [vmem:[%s1 + $0x278] sm:$0xff]
  %v100 = vld [vmem:[%s1 + $0x280] sm:$0xff]
  %v101 = vld [vmem:[%s1 + $0x288] sm:$0xff]
  %v102 = vld [vmem:[%s1 + $0x290] sm:$0xff]
  %v103 = vld [vmem:[%s1 + $0x298] sm:$0xff]
  %v104 = vld [vmem:[%s1 + $0x2a0] sm:$0xff]
  %v105 = vld [vmem:[%s1 + $0x2a8] sm:$0xff]
  %v106 = vld [vmem:[%s1 + $0x2b0] sm:$0xff]
  %v107 = vld [vmem:[%s1 + $0x2b8] sm:$0xff]
  %v108 = vld [vmem:[%s1 + $0x2c0] sm:$0xff]
  %v109 = vld [vmem:[%s1 + $0x2c8] sm:$0xff]
  %v110 = vld [vmem:[%s1 + $0x2d0] sm:$0xff]
  %v111 = vld [vmem:[%s1 + $0x2d8] sm:$0xff]
  %v112 = vld [vmem:[%s1 + $0x2e0] sm:$0xff]
  %v113 = vld [vmem:[%s1 + $0x2e8] sm:$0xff]
  %v114 = vld [vmem:[%s1 + $0x2f0] sm:$0xff]
  %v115 = vld [vmem:[%s1 + $0x2f8] sm:$0xff]
  %v116 = vld [vmem:[%s1 + $0x300] sm:$0xff]
  %v117 = vld [vmem:[%s1 + $0x308] sm:$0xff]
  %v118 = vld [vmem:[%s1 + $0x310] sm:$0xff]
  %v119 = vld [vmem:[%s1 + $0x318] sm:$0xff]
  %v120 = vld [vmem:[%s1 + $0x320] sm:$0xff]
  %v121 = vld [vmem:[%s1 + $0x328] sm:$0xff]
  %v122 = vld [vmem:[%s1 + $0x330] sm:$0xff]
  %v123 = vld [vmem:[%s1 + $0x338] sm:$0xff]
  %v124 = vld [vmem:[%s1 + $0x340] sm:$0xff]
  %v125 = vld [vmem:[%s1 + $0x348] sm:$0xff]
  %v126 = vld [vmem:[%s1 + $0x350] sm:$0xff]
  %v127 = vld [vmem:[%s1 + $0x358] sm:$0xff]
  %v128 = vld [vmem:[%s1 + $0x360] sm:$0xff]
  %v129 = vld [vmem:[%s1 + $0x368] sm:$0xff]
  %v130 = vld [vmem:[%s1 + $0x370] sm:$0xff]
  %v131 = vld [vmem:[%s1 + $0x378] sm:$0xff]
  %v132 = vld [vmem:[%s1 + $0x380] sm:$0xff]
  %v133 = vld [vmem:[%s1 + $0x388] sm:$0xff]
  %v134 = vld [vmem:[%s1 + $0x390] sm:$0xff]
  %v135 = vld [vmem:[%s1 + $0x398] sm:$0xff]
  %v136 = vld [vmem:[%s1 + $0x3a0] sm:$0xff]
  %v137 = vld [vmem:[%s1 + $0x3a8] sm:$0xff]
  %v138 = vld [vmem:[%s1 + $0x3b0] sm:$0xff]
  %v139 = vld [vmem:[%s1 + $0x3b8] sm:$0xff]
  %v140 = vld [vmem:[%s1 + $0x3c0] sm:$0xff]
  %v141 = vld [vmem:[%s1 + $0x3c8] sm:$0xff]
  %v142 = vld [vmem:[%s1 + $0x3d0] sm:$0xff]
  %v143 = vld [vmem:[%s1 + $0x3d8] sm:$0xff]
  %v144 = vld [vmem:[%s1 + $0x3e0] sm:$0xff]
  %v145 = vld [vmem:[%s1 + $0x3e8] sm:$0xff]
  %v146 = vld [vmem:[%s1 + $0x3f0] sm:$0xff]
  %v147 = vld [vmem:[%s1 + $0x3f8] sm:$0xff]
  %v148 = vld [vmem:[%s1 + $0x400] sm:$0xff]
  %v149 = vld [vmem:[%s1 + $0x408] sm:$0xff]
  %v150 = vld [vmem:[%s1 + $0x410] sm:$0xff]
  %v151 = vld [vmem:[%s1 + $0x418] sm:$0xff]
  %v152 = vld [vmem:[%s1 + $0x420] sm:$0xff]
  %v153 = vld [vmem:[%s1 + $0x428] sm:$0xff]
  %v154 = vld [vmem:[%s1 + $0x430] sm:$0xff]
  %v155 = vld [vmem:[%s1 + $0x438] sm:$0xff]
  %v156 = vld [vmem:[%s1 + $0x440] sm:$0xff]
  %v157 = vld [vmem:[%s1 + $0x448] sm:$0xff]
  %v158 = vld [vmem:[%s1 + $0x450] sm:$0xff]
  %v159 = vld [vmem:[%s1 + $0x458] sm:$0xff]
  %v160 = vld [vmem:[%s1 + $0x460] sm:$0xff]
  %v161 = vld [vmem:[%s1 + $0x468] sm:$0xff]
  %v162 = vld [vmem:[%s1 + $0x470] sm:$0xff]
  %v163 = vld [vmem:[%s1 + $0x478] sm:$0xff]
  %v166 = vcombine.high %v18, %v18
  %v168 = vunpack.c.l.s4 1966171168
  %v169 = vunpack.c.0.s8 %v168
  %v170 = vlaneseq
  %v171 = vshrl.u32 %v170, 7
  %v172 = vsub.s32 %v169, %v171
  %v173 = vrot.slane %v18, %v172
  %v175 = vunpack.c.l.s4 1966171168
  %v176 = vunpack.c.0.s8 %v175
  %v177 = vlaneseq
  %v178 = vshrl.u32 %v177, 7
  %v179 = vsub.s32 %v176, %v178
  %v180 = vrot.slane %v166, %v179
  %v181 = vcombine.high %v173, %v173
  %v182 = vcombine.high %v180, %v180
  %v184 = vunpack.c.l.s4 1966171168
  %v185 = vunpack.c.0.s8 %v184
  %v186 = vlaneseq
  %v187 = vshrl.u32 %v186, 7
  %v188 = vsub.s32 %v185, %v187
  %v189 = vrot.slane %v173, %v188
  %v191 = vunpack.c.l.s4 1966171168
  %v192 = vunpack.c.0.s8 %v191
  %v193 = vlaneseq
  %v194 = vshrl.u32 %v193, 7
  %v195 = vsub.s32 %v192, %v194
  %v196 = vrot.slane %v180, %v195
  %v198 = vunpack.c.l.s4 1966171168
  %v199 = vunpack.c.0.s8 %v198
  %v200 = vlaneseq
  %v201 = vshrl.u32 %v200, 7
  %v202 = vsub.s32 %v199, %v201
  %v203 = vrot.slane %v181, %v202
  %v205 = vunpack.c.l.s4 1966171168
  %v206 = vunpack.c.0.s8 %v205
  %v207 = vlaneseq
  %v208 = vshrl.u32 %v207, 7
  %v209 = vsub.s32 %v206, %v208
  %v210 = vrot.slane %v182, %v209
  %v211 = vcombine.high %v189, %v189
  %v212 = vcombine.high %v196, %v196
  %v213 = vcombine.high %v203, %v203
  %v214 = vcombine.high %v210, %v210
  %v216 = vunpack.c.l.s4 1966171168
  %v217 = vunpack.c.0.s8 %v216
  %v218 = vlaneseq
  %v219 = vshrl.u32 %v218, 7
  %v220 = vsub.s32 %v217, %v219
  %v221 = vrot.slane %v19, %v220
  %v223 = vunpack.c.l.s4 1966171168
  %v224 = vunpack.c.0.s8 %v223
  %v225 = vlaneseq
  %v226 = vshrl.u32 %v225, 7
  %v227 = vsub.s32 %v224, %v226
  %v228 = vrot.slane %v221, %v227
  %v382 = vunpack.c.l.b16 %v20
  %v383 = vunpack.c.h.b16 %v20
  %v384 = vunpack.c.l.b16 %v21
  %v385 = vunpack.c.h.b16 %v21
  %v386 = vunpack.c.l.b16 %v22
  %v387 = vunpack.c.h.b16 %v22
  %v388 = vunpack.c.l.b16 %v23
  %v389 = vunpack.c.h.b16 %v23
  %v390 = vunpack.c.l.b16 %v24
  %v391 = vunpack.c.h.b16 %v24
  %v392 = vunpack.c.l.b16 %v25
  %v393 = vunpack.c.h.b16 %v25
  %v394 = vunpack.c.l.b16 %v26
  %v395 = vunpack.c.h.b16 %v26
  %v396 = vunpack.c.l.b16 %v27
  %v397 = vunpack.c.h.b16 %v27
  %v398 = vunpack.c.l.b16 %v28
  %v399 = vunpack.c.h.b16 %v28
  %v400 = vunpack.c.l.b16 %v29
  %v401 = vunpack.c.h.b16 %v29
  %v402 = vunpack.c.l.b16 %v30
  %v403 = vunpack.c.h.b16 %v30
  %v404 = vunpack.c.l.b16 %v31
  %v405 = vunpack.c.h.b16 %v31
  %v406 = vunpack.c.l.b16 %v32
  %v407 = vunpack.c.h.b16 %v32
  %v408 = vunpack.c.l.b16 %v33
  %v409 = vunpack.c.h.b16 %v33
  %v410 = vunpack.c.l.b16 %v34
  %v411 = vunpack.c.h.b16 %v34
  %v412 = vunpack.c.l.b16 %v35
  %v413 = vunpack.c.h.b16 %v35
  %v414 = vunpack.c.l.b16 %v36
  %v415 = vunpack.c.h.b16 %v36
  %v416 = vunpack.c.l.b16 %v37
  %v417 = vunpack.c.h.b16 %v37
  %v418 = vunpack.c.l.b16 %v38
  %v419 = vunpack.c.h.b16 %v38
  %v420 = vunpack.c.l.b16 %v39
  %v421 = vunpack.c.h.b16 %v39
  %v422 = vunpack.c.l.b16 %v40
  %v423 = vunpack.c.h.b16 %v40
  %v424 = vunpack.c.l.b16 %v41
  %v425 = vunpack.c.h.b16 %v41
  %v426 = vunpack.c.l.b16 %v42
  %v427 = vunpack.c.h.b16 %v42
  %v428 = vunpack.c.l.b16 %v43
  %v429 = vunpack.c.h.b16 %v43
  %v430 = vunpack.c.l.b16 %v44
  %v431 = vunpack.c.h.b16 %v44
  %v432 = vunpack.c.l.b16 %v45
  %v433 = vunpack.c.h.b16 %v45
  %v434 = vunpack.c.l.b16 %v46
  %v435 = vunpack.c.h.b16 %v46
  %v436 = vunpack.c.l.b16 %v47
  %v437 = vunpack.c.h.b16 %v47
  %v438 = vunpack.c.l.b16 %v48
  %v439 = vunpack.c.h.b16 %v48
  %v440 = vunpack.c.l.b16 %v49
  %v441 = vunpack.c.h.b16 %v49
  %v442 = vunpack.c.l.b16 %v50
  %v443 = vunpack.c.h.b16 %v50
  %v444 = vunpack.c.l.b16 %v51
  %v445 = vunpack.c.h.b16 %v51
  %v446 = vunpack.c.l.b16 %v52
  %v447 = vunpack.c.h.b16 %v52
  %v448 = vunpack.c.l.b16 %v53
  %v449 = vunpack.c.h.b16 %v53
  %v450 = vunpack.c.l.b16 %v54
  %v451 = vunpack.c.h.b16 %v54
  %v452 = vunpack.c.l.b16 %v55
  %v453 = vunpack.c.h.b16 %v55
  %v454 = vunpack.c.l.b16 %v56
  %v455 = vunpack.c.h.b16 %v56
  %v456 = vunpack.c.l.b16 %v57
  %v457 = vunpack.c.h.b16 %v57
  %v458 = vunpack.c.l.b16 %v58
  %v459 = vunpack.c.h.b16 %v58
  %v460 = vunpack.c.l.b16 %v59
  %v461 = vunpack.c.h.b16 %v59
  %v462 = vunpack.c.l.b16 %v60
  %v463 = vunpack.c.h.b16 %v60
  %v464 = vunpack.c.l.b16 %v61
  %v465 = vunpack.c.h.b16 %v61
  %v466 = vunpack.c.l.b16 %v62
  %v467 = vunpack.c.h.b16 %v62
  %v468 = vunpack.c.l.b16 %v63
  %v469 = vunpack.c.h.b16 %v63
  %v470 = vunpack.c.l.b16 %v64
  %v471 = vunpack.c.h.b16 %v64
  %v472 = vunpack.c.l.b16 %v65
  %v473 = vunpack.c.h.b16 %v65
  %v474 = vunpack.c.l.b16 %v66
  %v475 = vunpack.c.h.b16 %v66
  %v476 = vunpack.c.l.b16 %v67
  %v477 = vunpack.c.h.b16 %v67
  %v478 = vunpack.c.l.b16 %v68
  %v479 = vunpack.c.h.b16 %v68
  %v480 = vunpack.c.l.b16 %v69
  %v481 = vunpack.c.h.b16 %v69
  %v482 = vunpack.c.l.b16 %v70
  %v483 = vunpack.c.h.b16 %v70
  %v484 = vunpack.c.l.b16 %v71
  %v485 = vunpack.c.h.b16 %v71
  %v486 = vunpack.c.l.b16 %v72
  %v487 = vunpack.c.h.b16 %v72
  %v488 = vunpack.c.l.b16 %v73
  %v489 = vunpack.c.h.b16 %v73
  %v490 = vunpack.c.l.b16 %v74
  %v491 = vunpack.c.h.b16 %v74
  %v492 = vunpack.c.l.b16 %v75
  %v493 = vunpack.c.h.b16 %v75
  %v494 = vunpack.c.l.b16 %v76
  %v495 = vunpack.c.h.b16 %v76
  %v496 = vunpack.c.l.b16 %v77
  %v497 = vunpack.c.h.b16 %v77
  %v498 = vunpack.c.l.b16 %v78
  %v499 = vunpack.c.h.b16 %v78
  %v500 = vunpack.c.l.b16 %v79
  %v501 = vunpack.c.h.b16 %v79
  %v502 = vunpack.c.l.b16 %v80
  %v503 = vunpack.c.h.b16 %v80
  %v504 = vunpack.c.l.b16 %v81
  %v505 = vunpack.c.h.b16 %v81
  %v506 = vunpack.c.l.b16 %v82
  %v507 = vunpack.c.h.b16 %v82
  %v508 = vunpack.c.l.b16 %v83
  %v509 = vunpack.c.h.b16 %v83
  %v510 = vunpack.c.l.b16 %v84
  %v511 = vunpack.c.h.b16 %v84
  %v512 = vunpack.c.l.b16 %v85
  %v513 = vunpack.c.h.b16 %v85
  %v514 = vunpack.c.l.b16 %v86
  %v515 = vunpack.c.h.b16 %v86
  %v516 = vunpack.c.l.b16 %v87
  %v517 = vunpack.c.h.b16 %v87
  %v518 = vunpack.c.l.b16 %v88
  %v519 = vunpack.c.h.b16 %v88
  %v520 = vunpack.c.l.b16 %v89
  %v521 = vunpack.c.h.b16 %v89
  %v522 = vunpack.c.l.b16 %v90
  %v523 = vunpack.c.h.b16 %v90
  %v524 = vunpack.c.l.b16 %v91
  %v525 = vunpack.c.h.b16 %v91
  %v526 = vunpack.c.l.b16 %v92
  %v527 = vunpack.c.h.b16 %v92
  %v528 = vunpack.c.l.b16 %v93
  %v529 = vunpack.c.h.b16 %v93
  %v530 = vunpack.c.l.b16 %v94
  %v531 = vunpack.c.h.b16 %v94
  %v532 = vunpack.c.l.b16 %v95
  %v533 = vunpack.c.h.b16 %v95
  %v534 = vunpack.c.l.b16 %v96
  %v535 = vunpack.c.h.b16 %v96
  %v536 = vunpack.c.l.b16 %v97
  %v537 = vunpack.c.h.b16 %v97
  %v538 = vunpack.c.l.b16 %v98
  %v539 = vunpack.c.h.b16 %v98
  %v540 = vunpack.c.l.b16 %v99
  %v541 = vunpack.c.h.b16 %v99
  %v542 = vunpack.c.l.b16 %v100
  %v543 = vunpack.c.h.b16 %v100
  %v544 = vunpack.c.l.b16 %v101
  %v545 = vunpack.c.h.b16 %v101
  %v546 = vunpack.c.l.b16 %v102
  %v547 = vunpack.c.h.b16 %v102
  %v548 = vunpack.c.l.b16 %v103
  %v549 = vunpack.c.h.b16 %v103
  %v550 = vunpack.c.l.b16 %v104
  %v551 = vunpack.c.h.b16 %v104
  %v552 = vunpack.c.l.b16 %v105
  %v553 = vunpack.c.h.b16 %v105
  %v554 = vunpack.c.l.b16 %v106
  %v555 = vunpack.c.h.b16 %v106
  %v556 = vunpack.c.l.b16 %v107
  %v557 = vunpack.c.h.b16 %v107
  %v558 = vunpack.c.l.b16 %v108
  %v559 = vunpack.c.h.b16 %v108
  %v560 = vunpack.c.l.b16 %v109
  %v561 = vunpack.c.h.b16 %v109
  %v562 = vunpack.c.l.b16 %v110
  %v563 = vunpack.c.h.b16 %v110
  %v564 = vunpack.c.l.b16 %v111
  %v565 = vunpack.c.h.b16 %v111
  %v566 = vunpack.c.l.b16 %v112
  %v567 = vunpack.c.h.b16 %v112
  %v568 = vunpack.c.l.b16 %v113
  %v569 = vunpack.c.h.b16 %v113
  %v570 = vunpack.c.l.b16 %v114
  %v571 = vunpack.c.h.b16 %v114
  %v572 = vunpack.c.l.b16 %v115
  %v573 = vunpack.c.h.b16 %v115
  %v574 = vunpack.c.l.b16 %v116
  %v575 = vunpack.c.h.b16 %v116
  %v576 = vunpack.c.l.b16 %v117
  %v577 = vunpack.c.h.b16 %v117
  %v578 = vunpack.c.l.b16 %v118
  %v579 = vunpack.c.h.b16 %v118
  %v580 = vunpack.c.l.b16 %v119
  %v581 = vunpack.c.h.b16 %v119
  %v582 = vunpack.c.l.b16 %v120
  %v583 = vunpack.c.h.b16 %v120
  %v584 = vunpack.c.l.b16 %v121
  %v585 = vunpack.c.h.b16 %v121
  %v586 = vunpack.c.l.b16 %v122
  %v587 = vunpack.c.h.b16 %v122
  %v588 = vunpack.c.l.b16 %v123
  %v589 = vunpack.c.h.b16 %v123
  %v590 = vunpack.c.l.b16 %v124
  %v591 = vunpack.c.h.b16 %v124
  %v592 = vunpack.c.l.b16 %v125
  %v593 = vunpack.c.h.b16 %v125
  %v594 = vunpack.c.l.b16 %v126
  %v595 = vunpack.c.h.b16 %v126
  %v596 = vunpack.c.l.b16 %v127
  %v597 = vunpack.c.h.b16 %v127
  %v598 = vunpack.c.l.b16 %v128
  %v599 = vunpack.c.h.b16 %v128
  %v600 = vunpack.c.l.b16 %v129
  %v601 = vunpack.c.h.b16 %v129
  %v602 = vunpack.c.l.b16 %v130
  %v603 = vunpack.c.h.b16 %v130
  %v604 = vunpack.c.l.b16 %v131
  %v605 = vunpack.c.h.b16 %v131
  %v606 = vunpack.c.l.b16 %v132
  %v607 = vunpack.c.h.b16 %v132
  %v608 = vunpack.c.l.b16 %v133
  %v609 = vunpack.c.h.b16 %v133
  %v610 = vunpack.c.l.b16 %v134
  %v611 = vunpack.c.h.b16 %v134
  %v612 = vunpack.c.l.b16 %v135
  %v613 = vunpack.c.h.b16 %v135
  %v614 = vunpack.c.l.b16 %v136
  %v615 = vunpack.c.h.b16 %v136
  %v616 = vunpack.c.l.b16 %v137
  %v617 = vunpack.c.h.b16 %v137
  %v618 = vunpack.c.l.b16 %v138
  %v619 = vunpack.c.h.b16 %v138
  %v620 = vunpack.c.l.b16 %v139
  %v621 = vunpack.c.h.b16 %v139
  %v622 = vunpack.c.l.b16 %v140
  %v623 = vunpack.c.h.b16 %v140
  %v624 = vunpack.c.l.b16 %v141
  %v625 = vunpack.c.h.b16 %v141
  %v626 = vunpack.c.l.b16 %v142
  %v627 = vunpack.c.h.b16 %v142
  %v628 = vunpack.c.l.b16 %v143
  %v629 = vunpack.c.h.b16 %v143
  %v630 = vunpack.c.l.b16 %v144
  %v631 = vunpack.c.h.b16 %v144
  %v632 = vunpack.c.l.b16 %v145
  %v633 = vunpack.c.h.b16 %v145
  %v634 = vunpack.c.l.b16 %v146
  %v635 = vunpack.c.h.b16 %v146
  %v636 = vunpack.c.l.b16 %v147
  %v637 = vunpack.c.h.b16 %v147
  %v638 = vunpack.c.l.b16 %v148
  %v639 = vunpack.c.h.b16 %v148
  %v640 = vunpack.c.l.b16 %v149
  %v641 = vunpack.c.h.b16 %v149
  %v642 = vunpack.c.l.b16 %v150
  %v643 = vunpack.c.h.b16 %v150
  %v644 = vunpack.c.l.b16 %v151
  %v645 = vunpack.c.h.b16 %v151
  %v646 = vunpack.c.l.b16 %v152
  %v647 = vunpack.c.h.b16 %v152
  %v648 = vunpack.c.l.b16 %v153
  %v649 = vunpack.c.h.b16 %v153
  %v650 = vunpack.c.l.b16 %v154
  %v651 = vunpack.c.h.b16 %v154
  %v652 = vunpack.c.l.b16 %v155
  %v653 = vunpack.c.h.b16 %v155
  %v654 = vunpack.c.l.b16 %v156
  %v655 = vunpack.c.h.b16 %v156
  %v656 = vunpack.c.l.b16 %v157
  %v657 = vunpack.c.h.b16 %v157
  %v658 = vunpack.c.l.b16 %v158
  %v659 = vunpack.c.h.b16 %v158
  %v660 = vunpack.c.l.b16 %v159
  %v661 = vunpack.c.h.b16 %v159
  %v662 = vunpack.c.l.b16 %v160
  %v663 = vunpack.c.h.b16 %v160
  %v664 = vunpack.c.l.b16 %v161
  %v665 = vunpack.c.h.b16 %v161
  %v666 = vunpack.c.l.b16 %v162
  %v667 = vunpack.c.h.b16 %v162
  %v668 = vunpack.c.l.b16 %v163
  %v669 = vunpack.c.h.b16 %v163
  %v670 = vpack.c.b16 %v384, %v382
  %v671 = vpack.c.b16 %v385, %v383
  %v672 = vpack.c.b16 %v388, %v386
  %v673 = vpack.c.b16 %v389, %v387
  %v674 = vpack.c.b16 %v392, %v390
  %v675 = vpack.c.b16 %v393, %v391
  %v676 = vpack.c.b16 %v396, %v394
  %v677 = vpack.c.b16 %v397, %v395
  %v678 = vpack.c.b16 %v400, %v398
  %v679 = vpack.c.b16 %v401, %v399
  %v680 = vpack.c.b16 %v404, %v402
  %v681 = vpack.c.b16 %v405, %v403
  %v682 = vpack.c.b16 %v408, %v406
  %v683 = vpack.c.b16 %v409, %v407
  %v684 = vpack.c.b16 %v412, %v410
  %v685 = vpack.c.b16 %v413, %v411
  %v686 = vpack.c.b16 %v416, %v414
  %v687 = vpack.c.b16 %v417, %v415
  %v688 = vpack.c.b16 %v420, %v418
  %v689 = vpack.c.b16 %v421, %v419
  %v690 = vpack.c.b16 %v424, %v422
  %v691 = vpack.c.b16 %v425, %v423
  %v692 = vpack.c.b16 %v428, %v426
  %v693 = vpack.c.b16 %v429, %v427
  %v694 = vpack.c.b16 %v432, %v430
  %v695 = vpack.c.b16 %v433, %v431
  %v696 = vpack.c.b16 %v436, %v434
  %v697 = vpack.c.b16 %v437, %v435
  %v698 = vpack.c.b16 %v440, %v438
  %v699 = vpack.c.b16 %v441, %v439
  %v700 = vpack.c.b16 %v444, %v442
  %v701 = vpack.c.b16 %v445, %v443
  %v702 = vpack.c.b16 %v448, %v446
  %v703 = vpack.c.b16 %v449, %v447
  %v704 = vpack.c.b16 %v452, %v450
  %v705 = vpack.c.b16 %v453, %v451
  %v706 = vpack.c.b16 %v456, %v454
  %v707 = vpack.c.b16 %v457, %v455
  %v708 = vpack.c.b16 %v460, %v458
  %v709 = vpack.c.b16 %v461, %v459
  %v710 = vpack.c.b16 %v464, %v462
  %v711 = vpack.c.b16 %v465, %v463
  %v712 = vpack.c.b16 %v468, %v466
  %v713 = vpack.c.b16 %v469, %v467
  %v714 = vpack.c.b16 %v472, %v470
  %v715 = vpack.c.b16 %v473, %v471
  %v716 = vpack.c.b16 %v476, %v474
  %v717 = vpack.c.b16 %v477, %v475
  %v718 = vpack.c.b16 %v480, %v478
  %v719 = vpack.c.b16 %v481, %v479
  %v720 = vpack.c.b16 %v484, %v482
  %v721 = vpack.c.b16 %v485, %v483
  %v722 = vpack.c.b16 %v488, %v486
  %v723 = vpack.c.b16 %v489, %v487
  %v724 = vpack.c.b16 %v492, %v490
  %v725 = vpack.c.b16 %v493, %v491
  %v726 = vpack.c.b16 %v496, %v494
  %v727 = vpack.c.b16 %v497, %v495
  %v728 = vpack.c.b16 %v500, %v498
  %v729 = vpack.c.b16 %v501, %v499
  %v730 = vpack.c.b16 %v504, %v502
  %v731 = vpack.c.b16 %v505, %v503
  %v732 = vpack.c.b16 %v508, %v506
  %v733 = vpack.c.b16 %v509, %v507
  %v734 = vpack.c.b16 %v512, %v510
  %v735 = vpack.c.b16 %v513, %v511
  %v736 = vpack.c.b16 %v516, %v514
  %v737 = vpack.c.b16 %v517, %v515
  %v738 = vpack.c.b16 %v520, %v518
  %v739 = vpack.c.b16 %v521, %v519
  %v740 = vpack.c.b16 %v524, %v522
  %v741 = vpack.c.b16 %v525, %v523
  %v742 = vpack.c.b16 %v528, %v526
  %v743 = vpack.c.b16 %v529, %v527
  %v744 = vpack.c.b16 %v532, %v530
  %v745 = vpack.c.b16 %v533, %v531
  %v746 = vpack.c.b16 %v536, %v534
  %v747 = vpack.c.b16 %v537, %v535
  %v748 = vpack.c.b16 %v540, %v538
  %v749 = vpack.c.b16 %v541, %v539
  %v750 = vpack.c.b16 %v544, %v542
  %v751 = vpack.c.b16 %v545, %v543
  %v752 = vpack.c.b16 %v548, %v546
  %v753 = vpack.c.b16 %v549, %v547
  %v754 = vpack.c.b16 %v552, %v550
  %v755 = vpack.c.b16 %v553, %v551
  %v756 = vpack.c.b16 %v556, %v554
  %v757 = vpack.c.b16 %v557, %v555
  %v758 = vpack.c.b16 %v560, %v558
  %v759 = vpack.c.b16 %v561, %v559
  %v760 = vpack.c.b16 %v564, %v562
  %v761 = vpack.c.b16 %v565, %v563
  %v762 = vpack.c.b16 %v568, %v566
  %v763 = vpack.c.b16 %v569, %v567
  %v764 = vpack.c.b16 %v572, %v570
  %v765 = vpack.c.b16 %v573, %v571
  %v766 = vpack.c.b16 %v576, %v574
  %v767 = vpack.c.b16 %v577, %v575
  %v768 = vpack.c.b16 %v580, %v578
  %v769 = vpack.c.b16 %v581, %v579
  %v770 = vpack.c.b16 %v584, %v582
  %v771 = vpack.c.b16 %v585, %v583
  %v772 = vpack.c.b16 %v588, %v586
  %v773 = vpack.c.b16 %v589, %v587
  %v774 = vpack.c.b16 %v592, %v590
  %v775 = vpack.c.b16 %v593, %v591
  %v776 = vpack.c.b16 %v596, %v594
  %v777 = vpack.c.b16 %v597, %v595
  %v778 = vpack.c.b16 %v600, %v598
  %v779 = vpack.c.b16 %v601, %v599
  %v780 = vpack.c.b16 %v604, %v602
  %v781 = vpack.c.b16 %v605, %v603
  %v782 = vpack.c.b16 %v608, %v606
  %v783 = vpack.c.b16 %v609, %v607
  %v784 = vpack.c.b16 %v612, %v610
  %v785 = vpack.c.b16 %v613, %v611
  %v786 = vpack.c.b16 %v616, %v614
  %v787 = vpack.c.b16 %v617, %v615
  %v788 = vpack.c.b16 %v620, %v618
  %v789 = vpack.c.b16 %v621, %v619
  %v790 = vpack.c.b16 %v624, %v622
  %v791 = vpack.c.b16 %v625, %v623
  %v792 = vpack.c.b16 %v628, %v626
  %v793 = vpack.c.b16 %v629, %v627
  %v794 = vpack.c.b16 %v632, %v630
  %v795 = vpack.c.b16 %v633, %v631
  %v796 = vpack.c.b16 %v636, %v634
  %v797 = vpack.c.b16 %v637, %v635
  %v798 = vpack.c.b16 %v640, %v638
  %v799 = vpack.c.b16 %v641, %v639
  %v800 = vpack.c.b16 %v644, %v642
  %v801 = vpack.c.b16 %v645, %v643
  %v802 = vpack.c.b16 %v648, %v646
  %v803 = vpack.c.b16 %v649, %v647
  %v804 = vpack.c.b16 %v652, %v650
  %v805 = vpack.c.b16 %v653, %v651
  %v806 = vpack.c.b16 %v656, %v654
  %v807 = vpack.c.b16 %v657, %v655
  %v808 = vpack.c.b16 %v660, %v658
  %v809 = vpack.c.b16 %v661, %v659
  %v810 = vpack.c.b16 %v664, %v662
  %v811 = vpack.c.b16 %v665, %v663
  %v812 = vpack.c.b16 %v668, %v666
  %v813 = vpack.c.b16 %v669, %v667
  %958 = vmatprep.subr.bf16.mxu0 %v671
  %959 = vmatpush1.bf16.msra.mxu0 %v670
  %960 = vmatprep.subr.bf16.mxu0 %v673
  %961 = vmatpush1.bf16.msra.mxu0 %v672
  %962 = vmatprep.subr.bf16.mxu0 %v675
  %963 = vmatpush1.bf16.msra.mxu0 %v674
  %964 = vmatprep.subr.bf16.mxu0 %v677
  %965 = vmatpush1.bf16.msra.mxu0 %v676
  %966 = vmatprep.subr.bf16.mxu0 %v679
  %967 = vmatpush1.bf16.msra.mxu0 %v678
  %968 = vmatprep.subr.bf16.mxu0 %v681
  %969 = vmatpush1.bf16.msra.mxu0 %v680
  %970 = vmatprep.subr.bf16.mxu0 %v683
  %971 = vmatpush1.bf16.msra.mxu0 %v682
  %972 = vmatprep.subr.bf16.mxu0 %v685
  %973 = vmatpush1.bf16.msra.mxu0 %v684
  %974 = vmatprep.subr.bf16.mxu0 %v687
  %975 = vmatpush1.bf16.msra.mxu0 %v686
  %976 = vmatprep.subr.bf16.mxu0 %v689
  %977 = vmatpush1.bf16.msra.mxu0 %v688
  %978 = vmatprep.subr.bf16.mxu0 %v691
  %979 = vmatpush1.bf16.msra.mxu0 %v690
  %980 = vmatprep.subr.bf16.mxu0 %v693
  %981 = vmatpush1.bf16.msra.mxu0 %v692
  %982 = vmatprep.subr.bf16.mxu0 %v695
  %983 = vmatpush1.bf16.msra.mxu0 %v694
  %984 = vmatprep.subr.bf16.mxu0 %v697
  %985 = vmatpush1.bf16.msra.mxu0 %v696
  %986 = vmatprep.subr.bf16.mxu0 %v699
  %987 = vmatpush1.bf16.msra.mxu0 %v698
  %988 = vmatprep.subr.bf16.mxu0 %v701
  %989 = vmatpush1.bf16.msra.mxu0 %v700
  %990 = vmatprep.mubr.bf16.mxu0 %v203
  %991 = vmatmul.mubr.bf16.gmra.mrb[0].mxu0 %v189
  %v992 = vpop.f32.mrb[0].mxu0
  %v993 = vadd.f32 0.0, %v992
  %v994 = vpop.f32.mrb[0].mxu0
  %v995 = vadd.f32 0.0, %v994
  %v996 = vpop.f32.mrb[0].mxu0
  %v997 = vpop.f32.mrb[0].mxu0
  %998 = vdwg.mxu0
  %999 = vmatprep.subr.bf16.mxu0 %v703
  %1000 = vmatpush1.bf16.msra.mxu0 %v702
  %1001 = vmatprep.subr.bf16.mxu0 %v705
  %1002 = vmatpush1.bf16.msra.mxu0 %v704
  %1003 = vmatprep.subr.bf16.mxu0 %v707
  %1004 = vmatpush1.bf16.msra.mxu0 %v706
  %1005 = vmatprep.subr.bf16.mxu0 %v709
  %1006 = vmatpush1.bf16.msra.mxu0 %v708
  %1007 = vmatprep.subr.bf16.mxu0 %v711
  %1008 = vmatpush1.bf16.msra.mxu0 %v710
  %1009 = vmatprep.subr.bf16.mxu0 %v713
  %1010 = vmatpush1.bf16.msra.mxu0 %v712
  %1011 = vmatprep.subr.bf16.mxu0 %v715
  %1012 = vmatpush1.bf16.msra.mxu0 %v714
  %1013 = vmatprep.subr.bf16.mxu0 %v717
  %1014 = vmatpush1.bf16.msra.mxu0 %v716
  %1015 = vmatprep.subr.bf16.mxu0 %v719
  %1016 = vmatpush1.bf16.msra.mxu0 %v718
  %1017 = vmatprep.subr.bf16.mxu0 %v721
  %1018 = vmatpush1.bf16.msra.mxu0 %v720
  %1019 = vmatprep.subr.bf16.mxu0 %v723
  %1020 = vmatpush1.bf16.msra.mxu0 %v722
  %1021 = vmatprep.subr.bf16.mxu0 %v725
  %1022 = vmatpush1.bf16.msra.mxu0 %v724
  %1023 = vmatprep.subr.bf16.mxu0 %v727
  %1024 = vmatpush1.bf16.msra.mxu0 %v726
  %1025 = vmatprep.subr.bf16.mxu0 %v729
  %1026 = vmatpush1.bf16.msra.mxu0 %v728
  %1027 = vmatprep.subr.bf16.mxu0 %v731
  %1028 = vmatpush1.bf16.msra.mxu0 %v730
  %1029 = vmatprep.subr.bf16.mxu0 %v733
  %1030 = vmatpush1.bf16.msra.mxu0 %v732
  %1031 = vmatprep.mubr.bf16.mxu0 %v213
  %1032 = vmatmul.mubr.bf16.gmra.mrb[0].mxu0 %v211
  %v1033 = vpop.f32.mrb[0].mxu0
  %v1034 = vadd.f32 %v993, %v1033
  %v1035 = vpop.f32.mrb[0].mxu0
  %v1036 = vadd.f32 %v995, %v1035
  %v1037 = vpop.f32.mrb[0].mxu0
  %v1038 = vpop.f32.mrb[0].mxu0
  %1039 = vdwg.mxu0
  %1040 = vmatprep.subr.bf16.mxu0 %v735
  %1041 = vmatpush1.bf16.msra.mxu0 %v734
  %1042 = vmatprep.subr.bf16.mxu0 %v737
  %1043 = vmatpush1.bf16.msra.mxu0 %v736
  %1044 = vmatprep.subr.bf16.mxu0 %v739
  %1045 = vmatpush1.bf16.msra.mxu0 %v738
  %1046 = vmatprep.subr.bf16.mxu0 %v741
  %1047 = vmatpush1.bf16.msra.mxu0 %v740
  %1048 = vmatprep.subr.bf16.mxu0 %v743
  %1049 = vmatpush1.bf16.msra.mxu0 %v742
  %1050 = vmatprep.subr.bf16.mxu0 %v745
  %1051 = vmatpush1.bf16.msra.mxu0 %v744
  %1052 = vmatprep.subr.bf16.mxu0 %v747
  %1053 = vmatpush1.bf16.msra.mxu0 %v746
  %1054 = vmatprep.subr.bf16.mxu0 %v749
  %1055 = vmatpush1.bf16.msra.mxu0 %v748
  %1056 = vmatprep.subr.bf16.mxu0 %v751
  %1057 = vmatpush1.bf16.msra.mxu0 %v750
  %1058 = vmatprep.subr.bf16.mxu0 %v753
  %1059 = vmatpush1.bf16.msra.mxu0 %v752
  %1060 = vmatprep.subr.bf16.mxu0 %v755
  %1061 = vmatpush1.bf16.msra.mxu0 %v754
  %1062 = vmatprep.subr.bf16.mxu0 %v757
  %1063 = vmatpush1.bf16.msra.mxu0 %v756
  %1064 = vmatprep.subr.bf16.mxu0 %v759
  %1065 = vmatpush1.bf16.msra.mxu0 %v758
  %1066 = vmatprep.subr.bf16.mxu0 %v761
  %1067 = vmatpush1.bf16.msra.mxu0 %v760
  %1068 = vmatprep.subr.bf16.mxu0 %v763
  %1069 = vmatpush1.bf16.msra.mxu0 %v762
  %1070 = vmatprep.subr.bf16.mxu0 %v765
  %1071 = vmatpush1.bf16.msra.mxu0 %v764
  %1072 = vmatprep.mubr.bf16.mxu0 %v210
  %1073 = vmatmul.mubr.bf16.gmra.mrb[0].mxu0 %v196
  %v1074 = vpop.f32.mrb[0].mxu0
  %v1075 = vadd.f32 %v1034, %v1074
  %v1076 = vpop.f32.mrb[0].mxu0
  %v1077 = vadd.f32 %v1036, %v1076
  %v1078 = vpop.f32.mrb[0].mxu0
  %v1079 = vpop.f32.mrb[0].mxu0
  %1080 = vdwg.mxu0
  %1081 = vmatprep.subr.bf16.mxu0 %v767
  %1082 = vmatpush1.bf16.msra.mxu0 %v766
  %1083 = vmatprep.subr.bf16.mxu0 %v769
  %1084 = vmatpush1.bf16.msra.mxu0 %v768
  %1085 = vmatprep.subr.bf16.mxu0 %v771
  %1086 = vmatpush1.bf16.msra.mxu0 %v770
  %1087 = vmatprep.subr.bf16.mxu0 %v773
  %1088 = vmatpush1.bf16.msra.mxu0 %v772
  %1089 = vmatprep.subr.bf16.mxu0 %v775
  %1090 = vmatpush1.bf16.msra.mxu0 %v774
  %1091 = vmatprep.subr.bf16.mxu0 %v777
  %1092 = vmatpush1.bf16.msra.mxu0 %v776
  %1093 = vmatprep.subr.bf16.mxu0 %v779
  %1094 = vmatpush1.bf16.msra.mxu0 %v778
  %1095 = vmatprep.subr.bf16.mxu0 %v781
  %1096 = vmatpush1.bf16.msra.mxu0 %v780
  %1097 = vmatprep.subr.bf16.mxu0 %v783
  %1098 = vmatpush1.bf16.msra.mxu0 %v782
  %1099 = vmatprep.subr.bf16.mxu0 %v785
  %1100 = vmatpush1.bf16.msra.mxu0 %v784
  %1101 = vmatprep.subr.bf16.mxu0 %v787
  %1102 = vmatpush1.bf16.msra.mxu0 %v786
  %1103 = vmatprep.subr.bf16.mxu0 %v789
  %1104 = vmatpush1.bf16.msra.mxu0 %v788
  %1105 = vmatprep.subr.bf16.mxu0 %v791
  %1106 = vmatpush1.bf16.msra.mxu0 %v790
  %1107 = vmatprep.subr.bf16.mxu0 %v793
  %1108 = vmatpush1.bf16.msra.mxu0 %v792
  %1109 = vmatprep.subr.bf16.mxu0 %v795
  %1110 = vmatpush1.bf16.msra.mxu0 %v794
  %1111 = vmatprep.subr.bf16.mxu0 %v797
  %1112 = vmatpush1.bf16.msra.mxu0 %v796
  %1113 = vmatprep.mubr.bf16.mxu0 %v214
  %1114 = vmatmul.mubr.bf16.gmra.mrb[0].mxu0 %v212
  %v1115 = vpop.f32.mrb[0].mxu0
  %v1116 = vadd.f32 %v1075, %v1115
  %v1117 = vpop.f32.mrb[0].mxu0
  %v1118 = vadd.f32 %v1077, %v1117
  %v1119 = vpop.f32.mrb[0].mxu0
  %v1120 = vpop.f32.mrb[0].mxu0
  %1121 = vdwg.mxu0
  %1122 = vmatprep.subr.bf16.mxu0 %v799
  %1123 = vmatpush1.bf16.msra.mxu0 %v798
  %1124 = vmatprep.subr.bf16.mxu0 %v801
  %1125 = vmatpush1.bf16.msra.mxu0 %v800
  %1126 = vmatprep.subr.bf16.mxu0 %v803
  %1127 = vmatpush1.bf16.msra.mxu0 %v802
  %1128 = vmatprep.subr.bf16.mxu0 %v805
  %1129 = vmatpush1.bf16.msra.mxu0 %v804
  %1130 = vmatprep.subr.bf16.mxu0 %v807
  %1131 = vmatpush1.bf16.msra.mxu0 %v806
  %1132 = vmatprep.subr.bf16.mxu0 %v809
  %1133 = vmatpush1.bf16.msra.mxu0 %v808
  %1134 = vmatprep.subr.bf16.mxu0 %v811
  %1135 = vmatpush1.bf16.msra.mxu0 %v810
  %1136 = vmatprep.subr.bf16.mxu0 %v813
  %1137 = vmatpush1.bf16.msra.mxu0 %v812
  %1138 = vmatprep.subr.bf16.mxu0 0
  %1139 = vmatpush1.bf16.msra.mxu0 0
  %1140 = vmatprep.subr.bf16.mxu0 0
  %1141 = vmatpush1.bf16.msra.mxu0 0
  %1142 = vmatprep.subr.bf16.mxu0 0
  %1143 = vmatpush1.bf16.msra.mxu0 0
  %1144 = vmatprep.subr.bf16.mxu0 0
  %1145 = vmatpush1.bf16.msra.mxu0 0
  %1146 = vmatprep.subr.bf16.mxu0 0
  %1147 = vmatpush1.bf16.msra.mxu0 0
  %1148 = vmatprep.subr.bf16.mxu0 0
  %1149 = vmatpush1.bf16.msra.mxu0 0
  %1150 = vmatprep.subr.bf16.mxu0 0
  %1151 = vmatpush1.bf16.msra.mxu0 0
  %1152 = vmatprep.subr.bf16.mxu0 0
  %1153 = vmatpush1.bf16.msra.mxu0 0
  %1154 = vmatprep.mubr.bf16.mxu0 0
  %1155 = vmatmul.mubr.bf16.gmra.mrb[0].mxu0 %v228
  %v1156 = vpop.f32.mrb[0].mxu0
  %v1157 = vadd.f32 %v1116, %v1156
  %v1158 = vpop.f32.mrb[0].mxu0
  %v1159 = vadd.f32 %v1118, %v1158
  %v1160 = vpop.f32.mrb[0].mxu0
  %v1161 = vpop.f32.mrb[0].mxu0
  %1162 = vdwg.mxu0
  %vm1163 = vcmask 1041408
  %v1164 = vsel %vm1163, %v1157, 0.0
  %v1165 = vrot.slane %v1164, 4
  %v1166 = vadd.f32 %v1164, %v1165
  %v1167 = vrot.slane %v1166, 2
  %v1168 = vadd.f32 %v1166, %v1167
  %v1169 = vrot.slane %v1168, 1
  %v1170 = vadd.f32 %v1168, %v1169
  %v1171 = vsel %vm1163, %v1159, 0.0
  %v1172 = vrot.slane %v1171, 4
  %v1173 = vadd.f32 %v1171, %v1172
  %v1174 = vrot.slane %v1173, 2
  %v1175 = vadd.f32 %v1173, %v1174
  %v1176 = vrot.slane %v1175, 1
  %v1177 = vadd.f32 %v1175, %v1176
  %v1178 = vmul.f32 %v1170, 0.5
  %v1179 = vmul.f32 %v1177, 0.5
  %v1180 = vsub.f32 %v1157, %v1178
  %v1181 = vsub.f32 %v1159, %v1179
  %v1182 = vmul.f32 %v1180, %v1180
  %v1183 = vmul.f32 %v1181, %v1181
  %v1184 = vsel %vm1163, %v1182, 0.0
  %v1185 = vrot.slane %v1184, 4
  %v1186 = vadd.f32 %v1184, %v1185
  %v1187 = vrot.slane %v1186, 2
  %v1188 = vadd.f32 %v1186, %v1187
  %v1189 = vrot.slane %v1188, 1
  %v1190 = vadd.f32 %v1188, %v1189
  %v1191 = vsel %vm1163, %v1183, 0.0
  %v1192 = vrot.slane %v1191, 4
  %v1193 = vadd.f32 %v1191, %v1192
  %v1194 = vrot.slane %v1193, 2
  %v1195 = vadd.f32 %v1193, %v1194
  %v1196 = vrot.slane %v1195, 1
  %v1197 = vadd.f32 %v1195, %v1196
  %v1198 = vmul.f32 %v1190, 0.5
  %v1199 = vmul.f32 %v1197, 0.5
  %v1200 = vadd.f32 %v1198, 1e-05
  %v1201 = vadd.f32 %v1199, 1e-05
  %v1202 = vrsqrt.pop %v1200
  %v1203 = vrsqrt.pop %v1201
  %v1204 = vmul.f32 %v1180, %v1202
  %v1205 = vmul.f32 %v1181, %v1203
  %v1206 = vld [vmem:[%s2] sm:$0x3]
  %v1208 = vlaneseq
  %v1209 = vshrl.u32 %v1208, 7
  %v1210 = vsub.s32 0, %v1209
  %v1211 = vrot.slane %v1206, %v1210
  %v1212 = vlaneseq
  %v1213 = vshrl.u32 %v1212, 7
  %v1214 = vsub.s32 1, %v1213
  %v1215 = vrot.slane %v1206, %v1214
  %v1218 = vmul.f32 %v1204, %v1211
  %v1219 = vmul.f32 %v1205, %v1215
  %v1220 = vld [vmem:[%s3] sm:$0x3]
  %v1222 = vlaneseq
  %v1223 = vshrl.u32 %v1222, 7
  %v1224 = vsub.s32 0, %v1223
  %v1225 = vrot.slane %v1220, %v1224
  %v1226 = vlaneseq
  %v1227 = vshrl.u32 %v1226, 7
  %v1228 = vsub.s32 1, %v1227
  %v1229 = vrot.slane %v1220, %v1228
  %v1232 = vadd.f32 %v1218, %v1225
  %v1233 = vadd.f32 %v1219, %v1229
  %vm1234 = vcmp.ge.f32.partialorder %v1232, 0.0
  %vm1235 = vcmp.ge.f32.partialorder %v1233, 0.0
  %v1236 = vmul.f32 %v1232, 0.01
  %v1237 = vmul.f32 %v1233, 0.01
  %v1238 = vsel %vm1234, %v1232, %v1236
  %v1239 = vsel %vm1235, %v1233, %v1237
  %v1242 = vcombine.low %v1238, %v1239
  %v1244 = vunpack.c.l.s4 1983009808
  %v1245 = vunpack.c.0.s8 %v1244
  %v1246 = vlaneseq
  %v1247 = vshrl.u32 %v1246, 7
  %v1248 = vsub.s32 %v1245, %v1247
  %v1249 = vrot.slane %v1242, %v1248
  %1251 = vst [vmem:[%s4] sm:$0xf] %v1249
  // Predicated region
  $region18: #{encoder_forward.8} parent=0 // pred_check
    _
  $region19: #{encoder_forward.8} parent=0 // pred_check_branch
    %1253 = sbr.rel (0) target = $region21
  $region20: #{encoder_forward.8} parent=0 // pred_region
    _
  $region21: #{encoder_forward.8} parent=0 // pred_fallthru
    _
  // Predicated region
  $region22: #{encoder_forward.8} parent=0 // pred_check
    _
  $region23: #{encoder_forward.8} parent=0 // pred_check_branch
    %1255 = sbr.rel (0) target = $region25
  $region24: #{encoder_forward.8} parent=0 // pred_region
    _
  $region25: #{encoder_forward.8} parent=0 // pred_fallthru
    _

// kernel: encoder_forward.9
$region0: #{encoder_forward.9}
  #allocation0 [shape = 'u32[]', space=smem, size = 0x4, offset = 0x4, fixed_abs, tag = 'smem constant byte address 0x4 - core index']
  #allocation1 [shape = 'u32[144,128]{1,0:T(1,128)}', space=vmem, size = 0x12000, scoped, tag = 'internal scratch']
  %s0 = inlined_call_operand.vmem [shape: bf16[2,2304], index: 0, kind: input, shape index: {}]
  %s1 = inlined_call_operand.vmem [shape: bf16[2304,512], index: 1, kind: input, shape index: {}]
  %s2 = inlined_call_operand.vmem [shape: f32[1,512], index: 2, kind: input, shape index: {}]
  %s3 = inlined_call_operand.vmem [shape: f32[1,512], index: 3, kind: input, shape index: {}]
  %s4 = inlined_call_operand.vmem [shape: f32[2,512], index: 4, kind: output, shape index: {}]
  %s5 = sld [smem:[#allocation0]]
  $region26: #{encoder_forward.9} parent=0
    _
  %s7 = ssub.s32 1, %s5
  %s8 = scalar_select 0, %s7, %s5
  // Predicated region
  $region2: #{encoder_forward.9} parent=0 // pred_check
    _
  $region3: #{encoder_forward.9} parent=0 // pred_check_branch
    %10 = sbr.rel (0) target = $region5
  $region4: #{encoder_forward.9} parent=0 // pred_region
    _
  $region5: #{encoder_forward.9} parent=0 // pred_fallthru
    _
  // Predicated region
  $region6: #{encoder_forward.9} parent=0 // pred_check
    _
  $region7: #{encoder_forward.9} parent=0 // pred_check_branch
    %12 = sbr.rel (0) target = $region9
  $region8: #{encoder_forward.9} parent=0 // pred_region
    _
  $region9: #{encoder_forward.9} parent=0 // pred_fallthru
    _
  // Predicated region
  $region10: #{encoder_forward.9} parent=0 // pred_check
    _
  $region11: #{encoder_forward.9} parent=0 // pred_check_branch
    %14 = sbr.rel (0) target = $region13
  $region12: #{encoder_forward.9} parent=0 // pred_region
    _
  $region13: #{encoder_forward.9} parent=0 // pred_fallthru
    _
  // Predicated region
  $region14: #{encoder_forward.9} parent=0 // pred_check
    _
  $region15: #{encoder_forward.9} parent=0 // pred_check_branch
    %16 = sbr.rel (0) target = $region17
  $region16: #{encoder_forward.9} parent=0 // pred_region
    _
  $region17: #{encoder_forward.9} parent=0 // pred_fallthru
    _
  %v17 = vld [vmem:[%s0] sm:$0xff]
  %v18 = vld [vmem:[%s0 + $0x8] sm:$0xff]
  %v19 = vld [vmem:[%s0 + $0x10] sm:$0x3]
  %v20 = vld [vmem:[%s1] sm:$0xff]
  %v21 = vld [vmem:[%s1 + $0x8] sm:$0xff]
  %v22 = vld [vmem:[%s1 + $0x10] sm:$0xff]
  %v23 = vld [vmem:[%s1 + $0x18] sm:$0xff]
  %v24 = vld [vmem:[%s1 + $0x20] sm:$0xff]
  %v25 = vld [vmem:[%s1 + $0x28] sm:$0xff]
  %v26 = vld [vmem:[%s1 + $0x30] sm:$0xff]
  %v27 = vld [vmem:[%s1 + $0x38] sm:$0xff]
  %v28 = vld [vmem:[%s1 + $0x40] sm:$0xff]
  %v29 = vld [vmem:[%s1 + $0x48] sm:$0xff]
  %v30 = vld [vmem:[%s1 + $0x50] sm:$0xff]
  %v31 = vld [vmem:[%s1 + $0x58] sm:$0xff]
  %v32 = vld [vmem:[%s1 + $0x60] sm:$0xff]
  %v33 = vld [vmem:[%s1 + $0x68] sm:$0xff]
  %v34 = vld [vmem:[%s1 + $0x70] sm:$0xff]
  %v35 = vld [vmem:[%s1 + $0x78] sm:$0xff]
  %v36 = vld [vmem:[%s1 + $0x80] sm:$0xff]
  %v37 = vld [vmem:[%s1 + $0x88] sm:$0xff]
  %v38 = vld [vmem:[%s1 + $0x90] sm:$0xff]
  %v39 = vld [vmem:[%s1 + $0x98] sm:$0xff]
  %v40 = vld [vmem:[%s1 + $0xa0] sm:$0xff]
  %v41 = vld [vmem:[%s1 + $0xa8] sm:$0xff]
  %v42 = vld [vmem:[%s1 + $0xb0] sm:$0xff]
  %v43 = vld [vmem:[%s1 + $0xb8] sm:$0xff]
  %v44 = vld [vmem:[%s1 + $0xc0] sm:$0xff]
  %v45 = vld [vmem:[%s1 + $0xc8] sm:$0xff]
  %v46 = vld [vmem:[%s1 + $0xd0] sm:$0xff]
  %v47 = vld [vmem:[%s1 + $0xd8] sm:$0xff]
  %v48 = vld [vmem:[%s1 + $0xe0] sm:$0xff]
  %v49 = vld [vmem:[%s1 + $0xe8] sm:$0xff]
  %v50 = vld [vmem:[%s1 + $0xf0] sm:$0xff]
  %v51 = vld [vmem:[%s1 + $0xf8] sm:$0xff]
  %v52 = vld [vmem:[%s1 + $0x100] sm:$0xff]
  %v53 = vld [vmem:[%s1 + $0x108] sm:$0xff]
  %v54 = vld [vmem:[%s1 + $0x110] sm:$0xff]
  %v55 = vld [vmem:[%s1 + $0x118] sm:$0xff]
  %v56 = vld [vmem:[%s1 + $0x120] sm:$0xff]
  %v57 = vld [vmem:[%s1 + $0x128] sm:$0xff]
  %v58 = vld [vmem:[%s1 + $0x130] sm:$0xff]
  %v59 = vld [vmem:[%s1 + $0x138] sm:$0xff]
  %v60 = vld [vmem:[%s1 + $0x140] sm:$0xff]
  %v61 = vld [vmem:[%s1 + $0x148] sm:$0xff]
  %v62 = vld [vmem:[%s1 + $0x150] sm:$0xff]
  %v63 = vld [vmem:[%s1 + $0x158] sm:$0xff]
  %v64 = vld [vmem:[%s1 + $0x160] sm:$0xff]
  %v65 = vld [vmem:[%s1 + $0x168] sm:$0xff]
  %v66 = vld [vmem:[%s1 + $0x170] sm:$0xff]
  %v67 = vld [vmem:[%s1 + $0x178] sm:$0xff]
  %v68 = vld [vmem:[%s1 + $0x180] sm:$0xff]
  %v69 = vld [vmem:[%s1 + $0x188] sm:$0xff]
  %v70 = vld [vmem:[%s1 + $0x190] sm:$0xff]
  %v71 = vld [vmem:[%s1 + $0x198] sm:$0xff]
  %v72 = vld [vmem:[%s1 + $0x1a0] sm:$0xff]
  %v73 = vld [vmem:[%s1 + $0x1a8] sm:$0xff]
  %v74 = vld [vmem:[%s1 + $0x1b0] sm:$0xff]
  %v75 = vld [vmem:[%s1 + $0x1b8] sm:$0xff]
  %v76 = vld [vmem:[%s1 + $0x1c0] sm:$0xff]
  %v77 = vld [vmem:[%s1 + $0x1c8] sm:$0xff]
  %v78 = vld [vmem:[%s1 + $0x1d0] sm:$0xff]
  %v79 = vld [vmem:[%s1 + $0x1d8] sm:$0xff]
  %v80 = vld [vmem:[%s1 + $0x1e0] sm:$0xff]
  %v81 = vld [vmem:[%s1 + $0x1e8] sm:$0xff]
  %v82 = vld [vmem:[%s1 + $0x1f0] sm:$0xff]
  %v83 = vld [vmem:[%s1 + $0x1f8] sm:$0xff]
  %v84 = vld [vmem:[%s1 + $0x200] sm:$0xff]
  %v85 = vld [vmem:[%s1 + $0x208] sm:$0xff]
  %v86 = vld [vmem:[%s1 + $0x210] sm:$0xff]
  %v87 = vld [vmem:[%s1 + $0x218] sm:$0xff]
  %v88 = vld [vmem:[%s1 + $0x220] sm:$0xff]
  %v89 = vld [vmem:[%s1 + $0x228] sm:$0xff]
  %v90 = vld [vmem:[%s1 + $0x230] sm:$0xff]
  %v91 = vld [vmem:[%s1 + $0x238] sm:$0xff]
  %v92 = vld [vmem:[%s1 + $0x240] sm:$0xff]
  %v93 = vld [vmem:[%s1 + $0x248] sm:$0xff]
  %v94 = vld [vmem:[%s1 + $0x250] sm:$0xff]
  %v95 = vld [vmem:[%s1 + $0x258] sm:$0xff]
  %v96 = vld [vmem:[%s1 + $0x260] sm:$0xff]
  %v97 = vld [vmem:[%s1 + $0x268] sm:$0xff]
  %v98 = vld [vmem:[%s1 + $0x270] sm:$0xff]
  %v99 = vld [vmem:[%s1 + $0x278] sm:$0xff]
  %v100 = vld [vmem:[%s1 + $0x280] sm:$0xff]
  %v101 = vld [vmem:[%s1 + $0x288] sm:$0xff]
  %v102 = vld [vmem:[%s1 + $0x290] sm:$0xff]
  %v103 = vld [vmem:[%s1 + $0x298] sm:$0xff]
  %v104 = vld [vmem:[%s1 + $0x2a0] sm:$0xff]
  %v105 = vld [vmem:[%s1 + $0x2a8] sm:$0xff]
  %v106 = vld [vmem:[%s1 + $0x2b0] sm:$0xff]
  %v107 = vld [vmem:[%s1 + $0x2b8] sm:$0xff]
  %v108 = vld [vmem:[%s1 + $0x2c0] sm:$0xff]
  %v109 = vld [vmem:[%s1 + $0x2c8] sm:$0xff]
  %v110 = vld [vmem:[%s1 + $0x2d0] sm:$0xff]
  %v111 = vld [vmem:[%s1 + $0x2d8] sm:$0xff]
  %v112 = vld [vmem:[%s1 + $0x2e0] sm:$0xff]
  %v113 = vld [vmem:[%s1 + $0x2e8] sm:$0xff]
  %v114 = vld [vmem:[%s1 + $0x2f0] sm:$0xff]
  %v115 = vld [vmem:[%s1 + $0x2f8] sm:$0xff]
  %v116 = vld [vmem:[%s1 + $0x300] sm:$0xff]
  %v117 = vld [vmem:[%s1 + $0x308] sm:$0xff]
  %v118 = vld [vmem:[%s1 + $0x310] sm:$0xff]
  %v119 = vld [vmem:[%s1 + $0x318] sm:$0xff]
  %v120 = vld [vmem:[%s1 + $0x320] sm:$0xff]
  %v121 = vld [vmem:[%s1 + $0x328] sm:$0xff]
  %v122 = vld [vmem:[%s1 + $0x330] sm:$0xff]
  %v123 = vld [vmem:[%s1 + $0x338] sm:$0xff]
  %v124 = vld [vmem:[%s1 + $0x340] sm:$0xff]
  %v125 = vld [vmem:[%s1 + $0x348] sm:$0xff]
  %v126 = vld [vmem:[%s1 + $0x350] sm:$0xff]
  %v127 = vld [vmem:[%s1 + $0x358] sm:$0xff]
  %v128 = vld [vmem:[%s1 + $0x360] sm:$0xff]
  %v129 = vld [vmem:[%s1 + $0x368] sm:$0xff]
  %v130 = vld [vmem:[%s1 + $0x370] sm:$0xff]
  %v131 = vld [vmem:[%s1 + $0x378] sm:$0xff]
  %v132 = vld [vmem:[%s1 + $0x380] sm:$0xff]
  %v133 = vld [vmem:[%s1 + $0x388] sm:$0xff]
  %v134 = vld [vmem:[%s1 + $0x390] sm:$0xff]
  %v135 = vld [vmem:[%s1 + $0x398] sm:$0xff]
  %v136 = vld [vmem:[%s1 + $0x3a0] sm:$0xff]
  %v137 = vld [vmem:[%s1 + $0x3a8] sm:$0xff]
  %v138 = vld [vmem:[%s1 + $0x3b0] sm:$0xff]
  %v139 = vld [vmem:[%s1 + $0x3b8] sm:$0xff]
  %v140 = vld [vmem:[%s1 + $0x3c0] sm:$0xff]
  %v141 = vld [vmem:[%s1 + $0x3c8] sm:$0xff]
  %v142 = vld [vmem:[%s1 + $0x3d0] sm:$0xff]
  %v143 = vld [vmem:[%s1 + $0x3d8] sm:$0xff]
  %v144 = vld [vmem:[%s1 + $0x3e0] sm:$0xff]
  %v145 = vld [vmem:[%s1 + $0x3e8] sm:$0xff]
  %v146 = vld [vmem:[%s1 + $0x3f0] sm:$0xff]
  %v147 = vld [vmem:[%s1 + $0x3f8] sm:$0xff]
  %v148 = vld [vmem:[%s1 + $0x400] sm:$0xff]
  %v149 = vld [vmem:[%s1 + $0x408] sm:$0xff]
  %v150 = vld [vmem:[%s1 + $0x410] sm:$0xff]
  %v151 = vld [vmem:[%s1 + $0x418] sm:$0xff]
  %v152 = vld [vmem:[%s1 + $0x420] sm:$0xff]
  %v153 = vld [vmem:[%s1 + $0x428] sm:$0xff]
  %v154 = vld [vmem:[%s1 + $0x430] sm:$0xff]
  %v155 = vld [vmem:[%s1 + $0x438] sm:$0xff]
  %v156 = vld [vmem:[%s1 + $0x440] sm:$0xff]
  %v157 = vld [vmem:[%s1 + $0x448] sm:$0xff]
  %v158 = vld [vmem:[%s1 + $0x450] sm:$0xff]
  %v159 = vld [vmem:[%s1 + $0x458] sm:$0xff]
  %v160 = vld [vmem:[%s1 + $0x460] sm:$0xff]
  %v161 = vld [vmem:[%s1 + $0x468] sm:$0xff]
  %v162 = vld [vmem:[%s1 + $0x470] sm:$0xff]
  %v163 = vld [vmem:[%s1 + $0x478] sm:$0xff]
  %v164 = vld [vmem:[%s1 + $0x480] sm:$0xff]
  %v165 = vld [vmem:[%s1 + $0x488] sm:$0xff]
  %v166 = vld [vmem:[%s1 + $0x490] sm:$0xff]
  %v167 = vld [vmem:[%s1 + $0x498] sm:$0xff]
  %v168 = vld [vmem:[%s1 + $0x4a0] sm:$0xff]
  %v169 = vld [vmem:[%s1 + $0x4a8] sm:$0xff]
  %v170 = vld [vmem:[%s1 + $0x4b0] sm:$0xff]
  %v171 = vld [vmem:[%s1 + $0x4b8] sm:$0xff]
  %v172 = vld [vmem:[%s1 + $0x4c0] sm:$0xff]
  %v173 = vld [vmem:[%s1 + $0x4c8] sm:$0xff]
  %v174 = vld [vmem:[%s1 + $0x4d0] sm:$0xff]
  %v175 = vld [vmem:[%s1 + $0x4d8] sm:$0xff]
  %v176 = vld [vmem:[%s1 + $0x4e0] sm:$0xff]
  %v177 = vld [vmem:[%s1 + $0x4e8] sm:$0xff]
  %v178 = vld [vmem:[%s1 + $0x4f0] sm:$0xff]
  %v179 = vld [vmem:[%s1 + $0x4f8] sm:$0xff]
  %v180 = vld [vmem:[%s1 + $0x500] sm:$0xff]
  %v181 = vld [vmem:[%s1 + $0x508] sm:$0xff]
  %v182 = vld [vmem:[%s1 + $0x510] sm:$0xff]
  %v183 = vld [vmem:[%s1 + $0x518] sm:$0xff]
  %v184 = vld [vmem:[%s1 + $0x520] sm:$0xff]
  %v185 = vld [vmem:[%s1 + $0x528] sm:$0xff]
  %v186 = vld [vmem:[%s1 + $0x530] sm:$0xff]
  %v187 = vld [vmem:[%s1 + $0x538] sm:$0xff]
  %v188 = vld [vmem:[%s1 + $0x540] sm:$0xff]
  %v189 = vld [vmem:[%s1 + $0x548] sm:$0xff]
  %v190 = vld [vmem:[%s1 + $0x550] sm:$0xff]
  %v191 = vld [vmem:[%s1 + $0x558] sm:$0xff]
  %v192 = vld [vmem:[%s1 + $0x560] sm:$0xff]
  %v193 = vld [vmem:[%s1 + $0x568] sm:$0xff]
  %v194 = vld [vmem:[%s1 + $0x570] sm:$0xff]
  %v195 = vld [vmem:[%s1 + $0x578] sm:$0xff]
  %v196 = vld [vmem:[%s1 + $0x580] sm:$0xff]
  %v197 = vld [vmem:[%s1 + $0x588] sm:$0xff]
  %v198 = vld [vmem:[%s1 + $0x590] sm:$0xff]
  %v199 = vld [vmem:[%s1 + $0x598] sm:$0xff]
  %v200 = vld [vmem:[%s1 + $0x5a0] sm:$0xff]
  %v201 = vld [vmem:[%s1 + $0x5a8] sm:$0xff]
  %v202 = vld [vmem:[%s1 + $0x5b0] sm:$0xff]
  %v203 = vld [vmem:[%s1 + $0x5b8] sm:$0xff]
  %v204 = vld [vmem:[%s1 + $0x5c0] sm:$0xff]
  %v205 = vld [vmem:[%s1 + $0x5c8] sm:$0xff]
  %v206 = vld [vmem:[%s1 + $0x5d0] sm:$0xff]
  %v207 = vld [vmem:[%s1 + $0x5d8] sm:$0xff]
  %v208 = vld [vmem:[%s1 + $0x5e0] sm:$0xff]
  %v209 = vld [vmem:[%s1 + $0x5e8] sm:$0xff]
  %v210 = vld [vmem:[%s1 + $0x5f0] sm:$0xff]
  %v211 = vld [vmem:[%s1 + $0x5f8] sm:$0xff]
  %v212 = vld [vmem:[%s1 + $0x600] sm:$0xff]
  %v213 = vld [vmem:[%s1 + $0x608] sm:$0xff]
  %v214 = vld [vmem:[%s1 + $0x610] sm:$0xff]
  %v215 = vld [vmem:[%s1 + $0x618] sm:$0xff]
  %v216 = vld [vmem:[%s1 + $0x620] sm:$0xff]
  %v217 = vld [vmem:[%s1 + $0x628] sm:$0xff]
  %v218 = vld [vmem:[%s1 + $0x630] sm:$0xff]
  %v219 = vld [vmem:[%s1 + $0x638] sm:$0xff]
  %v220 = vld [vmem:[%s1 + $0x640] sm:$0xff]
  %v221 = vld [vmem:[%s1 + $0x648] sm:$0xff]
  %v222 = vld [vmem:[%s1 + $0x650] sm:$0xff]
  %v223 = vld [vmem:[%s1 + $0x658] sm:$0xff]
  %v224 = vld [vmem:[%s1 + $0x660] sm:$0xff]
  %v225 = vld [vmem:[%s1 + $0x668] sm:$0xff]
  %v226 = vld [vmem:[%s1 + $0x670] sm:$0xff]
  %v227 = vld [vmem:[%s1 + $0x678] sm:$0xff]
  %v228 = vld [vmem:[%s1 + $0x680] sm:$0xff]
  %v229 = vld [vmem:[%s1 + $0x688] sm:$0xff]
  %v230 = vld [vmem:[%s1 + $0x690] sm:$0xff]
  %v231 = vld [vmem:[%s1 + $0x698] sm:$0xff]
  %v232 = vld [vmem:[%s1 + $0x6a0] sm:$0xff]
  %v233 = vld [vmem:[%s1 + $0x6a8] sm:$0xff]
  %v234 = vld [vmem:[%s1 + $0x6b0] sm:$0xff]
  %v235 = vld [vmem:[%s1 + $0x6b8] sm:$0xff]
  %v236 = vld [vmem:[%s1 + $0x6c0] sm:$0xff]
  %v237 = vld [vmem:[%s1 + $0x6c8] sm:$0xff]
  %v238 = vld [vmem:[%s1 + $0x6d0] sm:$0xff]
  %v239 = vld [vmem:[%s1 + $0x6d8] sm:$0xff]
  %v240 = vld [vmem:[%s1 + $0x6e0] sm:$0xff]
  %v241 = vld [vmem:[%s1 + $0x6e8] sm:$0xff]
  %v242 = vld [vmem:[%s1 + $0x6f0] sm:$0xff]
  %v243 = vld [vmem:[%s1 + $0x6f8] sm:$0xff]
  %v244 = vld [vmem:[%s1 + $0x700] sm:$0xff]
  %v245 = vld [vmem:[%s1 + $0x708] sm:$0xff]
  %v246 = vld [vmem:[%s1 + $0x710] sm:$0xff]
  %v247 = vld [vmem:[%s1 + $0x718] sm:$0xff]
  %v248 = vld [vmem:[%s1 + $0x720] sm:$0xff]
  %v249 = vld [vmem:[%s1 + $0x728] sm:$0xff]
  %v250 = vld [vmem:[%s1 + $0x730] sm:$0xff]
  %v251 = vld [vmem:[%s1 + $0x738] sm:$0xff]
  %v252 = vld [vmem:[%s1 + $0x740] sm:$0xff]
  %v253 = vld [vmem:[%s1 + $0x748] sm:$0xff]
  %v254 = vld [vmem:[%s1 + $0x750] sm:$0xff]
  %v255 = vld [vmem:[%s1 + $0x758] sm:$0xff]
  %v256 = vld [vmem:[%s1 + $0x760] sm:$0xff]
  %v257 = vld [vmem:[%s1 + $0x768] sm:$0xff]
  %v258 = vld [vmem:[%s1 + $0x770] sm:$0xff]
  %v259 = vld [vmem:[%s1 + $0x778] sm:$0xff]
  %v260 = vld [vmem:[%s1 + $0x780] sm:$0xff]
  %v261 = vld [vmem:[%s1 + $0x788] sm:$0xff]
  %v262 = vld [vmem:[%s1 + $0x790] sm:$0xff]
  %v263 = vld [vmem:[%s1 + $0x798] sm:$0xff]
  %v264 = vld [vmem:[%s1 + $0x7a0] sm:$0xff]
  %v265 = vld [vmem:[%s1 + $0x7a8] sm:$0xff]
  %v266 = vld [vmem:[%s1 + $0x7b0] sm:$0xff]
  %v267 = vld [vmem:[%s1 + $0x7b8] sm:$0xff]
  %v268 = vld [vmem:[%s1 + $0x7c0] sm:$0xff]
  %v269 = vld [vmem:[%s1 + $0x7c8] sm:$0xff]
  %v270 = vld [vmem:[%s1 + $0x7d0] sm:$0xff]
  %v271 = vld [vmem:[%s1 + $0x7d8] sm:$0xff]
  %v272 = vld [vmem:[%s1 + $0x7e0] sm:$0xff]
  %v273 = vld [vmem:[%s1 + $0x7e8] sm:$0xff]
  %v274 = vld [vmem:[%s1 + $0x7f0] sm:$0xff]
  %v275 = vld [vmem:[%s1 + $0x7f8] sm:$0xff]
  %v276 = vld [vmem:[%s1 + $0x800] sm:$0xff]
  %v277 = vld [vmem:[%s1 + $0x808] sm:$0xff]
  %v278 = vld [vmem:[%s1 + $0x810] sm:$0xff]
  %v279 = vld [vmem:[%s1 + $0x818] sm:$0xff]
  %v280 = vld [vmem:[%s1 + $0x820] sm:$0xff]
  %v281 = vld [vmem:[%s1 + $0x828] sm:$0xff]
  %v282 = vld [vmem:[%s1 + $0x830] sm:$0xff]
  %v283 = vld [vmem:[%s1 + $0x838] sm:$0xff]
  %v284 = vld [vmem:[%s1 + $0x840] sm:$0xff]
  %v285 = vld [vmem:[%s1 + $0x848] sm:$0xff]
  %v286 = vld [vmem:[%s1 + $0x850] sm:$0xff]
  %v287 = vld [vmem:[%s1 + $0x858] sm:$0xff]
  %v288 = vld [vmem:[%s1 + $0x860] sm:$0xff]
  %v289 = vld [vmem:[%s1 + $0x868] sm:$0xff]
  %v290 = vld [vmem:[%s1 + $0x870] sm:$0xff]
  %v291 = vld [vmem:[%s1 + $0x878] sm:$0xff]
  %v292 = vld [vmem:[%s1 + $0x880] sm:$0xff]
  %v293 = vld [vmem:[%s1 + $0x888] sm:$0xff]
  %v294 = vld [vmem:[%s1 + $0x890] sm:$0xff]
  %v295 = vld [vmem:[%s1 + $0x898] sm:$0xff]
  %v296 = vld [vmem:[%s1 + $0x8a0] sm:$0xff]
  %v297 = vld [vmem:[%s1 + $0x8a8] sm:$0xff]
  %v298 = vld [vmem:[%s1 + $0x8b0] sm:$0xff]
  %v299 = vld [vmem:[%s1 + $0x8b8] sm:$0xff]
  %v300 = vld [vmem:[%s1 + $0x8c0] sm:$0xff]
  %v301 = vld [vmem:[%s1 + $0x8c8] sm:$0xff]
  %v302 = vld [vmem:[%s1 + $0x8d0] sm:$0xff]
  %v303 = vld [vmem:[%s1 + $0x8d8] sm:$0xff]
  %v304 = vld [vmem:[%s1 + $0x8e0] sm:$0xff]
  %v305 = vld [vmem:[%s1 + $0x8e8] sm:$0xff]
  %v306 = vld [vmem:[%s1 + $0x8f0] sm:$0xff]
  %v307 = vld [vmem:[%s1 + $0x8f8] sm:$0xff]
  %v308 = vld [vmem:[%s1 + $0x900] sm:$0xff]
  %v309 = vld [vmem:[%s1 + $0x908] sm:$0xff]
  %v310 = vld [vmem:[%s1 + $0x910] sm:$0xff]
  %v311 = vld [vmem:[%s1 + $0x918] sm:$0xff]
  %v312 = vld [vmem:[%s1 + $0x920] sm:$0xff]
  %v313 = vld [vmem:[%s1 + $0x928] sm:$0xff]
  %v314 = vld [vmem:[%s1 + $0x930] sm:$0xff]
  %v315 = vld [vmem:[%s1 + $0x938] sm:$0xff]
  %v316 = vld [vmem:[%s1 + $0x940] sm:$0xff]
  %v317 = vld [vmem:[%s1 + $0x948] sm:$0xff]
  %v318 = vld [vmem:[%s1 + $0x950] sm:$0xff]
  %v319 = vld [vmem:[%s1 + $0x958] sm:$0xff]
  %v320 = vld [vmem:[%s1 + $0x960] sm:$0xff]
  %v321 = vld [vmem:[%s1 + $0x968] sm:$0xff]
  %v322 = vld [vmem:[%s1 + $0x970] sm:$0xff]
  %v323 = vld [vmem:[%s1 + $0x978] sm:$0xff]
  %v324 = vld [vmem:[%s1 + $0x980] sm:$0xff]
  %v325 = vld [vmem:[%s1 + $0x988] sm:$0xff]
  %v326 = vld [vmem:[%s1 + $0x990] sm:$0xff]
  %v327 = vld [vmem:[%s1 + $0x998] sm:$0xff]
  %v328 = vld [vmem:[%s1 + $0x9a0] sm:$0xff]
  %v329 = vld [vmem:[%s1 + $0x9a8] sm:$0xff]
  %v330 = vld [vmem:[%s1 + $0x9b0] sm:$0xff]
  %v331 = vld [vmem:[%s1 + $0x9b8] sm:$0xff]
  %v332 = vld [vmem:[%s1 + $0x9c0] sm:$0xff]
  %v333 = vld [vmem:[%s1 + $0x9c8] sm:$0xff]
  %v334 = vld [vmem:[%s1 + $0x9d0] sm:$0xff]
  %v335 = vld [vmem:[%s1 + $0x9d8] sm:$0xff]
  %v336 = vld [vmem:[%s1 + $0x9e0] sm:$0xff]
  %v337 = vld [vmem:[%s1 + $0x9e8] sm:$0xff]
  %v338 = vld [vmem:[%s1 + $0x9f0] sm:$0xff]
  %v339 = vld [vmem:[%s1 + $0x9f8] sm:$0xff]
  %v340 = vld [vmem:[%s1 + $0xa00] sm:$0xff]
  %v341 = vld [vmem:[%s1 + $0xa08] sm:$0xff]
  %v342 = vld [vmem:[%s1 + $0xa10] sm:$0xff]
  %v343 = vld [vmem:[%s1 + $0xa18] sm:$0xff]
  %v344 = vld [vmem:[%s1 + $0xa20] sm:$0xff]
  %v345 = vld [vmem:[%s1 + $0xa28] sm:$0xff]
  %v346 = vld [vmem:[%s1 + $0xa30] sm:$0xff]
  %v347 = vld [vmem:[%s1 + $0xa38] sm:$0xff]
  %v348 = vld [vmem:[%s1 + $0xa40] sm:$0xff]
  %v349 = vld [vmem:[%s1 + $0xa48] sm:$0xff]
  %v350 = vld [vmem:[%s1 + $0xa50] sm:$0xff]
  %v351 = vld [vmem:[%s1 + $0xa58] sm:$0xff]
  %v352 = vld [vmem:[%s1 + $0xa60] sm:$0xff]
  %v353 = vld [vmem:[%s1 + $0xa68] sm:$0xff]
  %v354 = vld [vmem:[%s1 + $0xa70] sm:$0xff]
  %v355 = vld [vmem:[%s1 + $0xa78] sm:$0xff]
  %v356 = vld [vmem:[%s1 + $0xa80] sm:$0xff]
  %v357 = vld [vmem:[%s1 + $0xa88] sm:$0xff]
  %v358 = vld [vmem:[%s1 + $0xa90] sm:$0xff]
  %v359 = vld [vmem:[%s1 + $0xa98] sm:$0xff]
  %v360 = vld [vmem:[%s1 + $0xaa0] sm:$0xff]
  %v361 = vld [vmem:[%s1 + $0xaa8] sm:$0xff]
  %v362 = vld [vmem:[%s1 + $0xab0] sm:$0xff]
  %v363 = vld [vmem:[%s1 + $0xab8] sm:$0xff]
  %v364 = vld [vmem:[%s1 + $0xac0] sm:$0xff]
  %v365 = vld [vmem:[%s1 + $0xac8] sm:$0xff]
  %v366 = vld [vmem:[%s1 + $0xad0] sm:$0xff]
  %v367 = vld [vmem:[%s1 + $0xad8] sm:$0xff]
  %v368 = vld [vmem:[%s1 + $0xae0] sm:$0xff]
  %v369 = vld [vmem:[%s1 + $0xae8] sm:$0xff]
  %v370 = vld [vmem:[%s1 + $0xaf0] sm:$0xff]
  %v371 = vld [vmem:[%s1 + $0xaf8] sm:$0xff]
  %v372 = vld [vmem:[%s1 + $0xb00] sm:$0xff]
  %v373 = vld [vmem:[%s1 + $0xb08] sm:$0xff]
  %v374 = vld [vmem:[%s1 + $0xb10] sm:$0xff]
  %v375 = vld [vmem:[%s1 + $0xb18] sm:$0xff]
  %v376 = vld [vmem:[%s1 + $0xb20] sm:$0xff]
  %v377 = vld [vmem:[%s1 + $0xb28] sm:$0xff]
  %v378 = vld [vmem:[%s1 + $0xb30] sm:$0xff]
  %v379 = vld [vmem:[%s1 + $0xb38] sm:$0xff]
  %v380 = vld [vmem:[%s1 + $0xb40] sm:$0xff]
  %v381 = vld [vmem:[%s1 + $0xb48] sm:$0xff]
  %v382 = vld [vmem:[%s1 + $0xb50] sm:$0xff]
  %v383 = vld [vmem:[%s1 + $0xb58] sm:$0xff]
  %v384 = vld [vmem:[%s1 + $0xb60] sm:$0xff]
  %v385 = vld [vmem:[%s1 + $0xb68] sm:$0xff]
  %v386 = vld [vmem:[%s1 + $0xb70] sm:$0xff]
  %v387 = vld [vmem:[%s1 + $0xb78] sm:$0xff]
  %v388 = vld [vmem:[%s1 + $0xb80] sm:$0xff]
  %v389 = vld [vmem:[%s1 + $0xb88] sm:$0xff]
  %v390 = vld [vmem:[%s1 + $0xb90] sm:$0xff]
  %v391 = vld [vmem:[%s1 + $0xb98] sm:$0xff]
  %v392 = vld [vmem:[%s1 + $0xba0] sm:$0xff]
  %v393 = vld [vmem:[%s1 + $0xba8] sm:$0xff]
  %v394 = vld [vmem:[%s1 + $0xbb0] sm:$0xff]
  %v395 = vld [vmem:[%s1 + $0xbb8] sm:$0xff]
  %v396 = vld [vmem:[%s1 + $0xbc0] sm:$0xff]
  %v397 = vld [vmem:[%s1 + $0xbc8] sm:$0xff]
  %v398 = vld [vmem:[%s1 + $0xbd0] sm:$0xff]
  %v399 = vld [vmem:[%s1 + $0xbd8] sm:$0xff]
  %v400 = vld [vmem:[%s1 + $0xbe0] sm:$0xff]
  %v401 = vld [vmem:[%s1 + $0xbe8] sm:$0xff]
  %v402 = vld [vmem:[%s1 + $0xbf0] sm:$0xff]
  %v403 = vld [vmem:[%s1 + $0xbf8] sm:$0xff]
  %v404 = vld [vmem:[%s1 + $0xc00] sm:$0xff]
  %v405 = vld [vmem:[%s1 + $0xc08] sm:$0xff]
  %v406 = vld [vmem:[%s1 + $0xc10] sm:$0xff]
  %v407 = vld [vmem:[%s1 + $0xc18] sm:$0xff]
  %v408 = vld [vmem:[%s1 + $0xc20] sm:$0xff]
  %v409 = vld [vmem:[%s1 + $0xc28] sm:$0xff]
  %v410 = vld [vmem:[%s1 + $0xc30] sm:$0xff]
  %v411 = vld [vmem:[%s1 + $0xc38] sm:$0xff]
  %v412 = vld [vmem:[%s1 + $0xc40] sm:$0xff]
  %v413 = vld [vmem:[%s1 + $0xc48] sm:$0xff]
  %v414 = vld [vmem:[%s1 + $0xc50] sm:$0xff]
  %v415 = vld [vmem:[%s1 + $0xc58] sm:$0xff]
  %v416 = vld [vmem:[%s1 + $0xc60] sm:$0xff]
  %v417 = vld [vmem:[%s1 + $0xc68] sm:$0xff]
  %v418 = vld [vmem:[%s1 + $0xc70] sm:$0xff]
  %v419 = vld [vmem:[%s1 + $0xc78] sm:$0xff]
  %v420 = vld [vmem:[%s1 + $0xc80] sm:$0xff]
  %v421 = vld [vmem:[%s1 + $0xc88] sm:$0xff]
  %v422 = vld [vmem:[%s1 + $0xc90] sm:$0xff]
  %v423 = vld [vmem:[%s1 + $0xc98] sm:$0xff]
  %v424 = vld [vmem:[%s1 + $0xca0] sm:$0xff]
  %v425 = vld [vmem:[%s1 + $0xca8] sm:$0xff]
  %v426 = vld [vmem:[%s1 + $0xcb0] sm:$0xff]
  %v427 = vld [vmem:[%s1 + $0xcb8] sm:$0xff]
  %v428 = vld [vmem:[%s1 + $0xcc0] sm:$0xff]
  %v429 = vld [vmem:[%s1 + $0xcc8] sm:$0xff]
  %v430 = vld [vmem:[%s1 + $0xcd0] sm:$0xff]
  %v431 = vld [vmem:[%s1 + $0xcd8] sm:$0xff]
  %v432 = vld [vmem:[%s1 + $0xce0] sm:$0xff]
  %v433 = vld [vmem:[%s1 + $0xce8] sm:$0xff]
  %v434 = vld [vmem:[%s1 + $0xcf0] sm:$0xff]
  %v435 = vld [vmem:[%s1 + $0xcf8] sm:$0xff]
  %v436 = vld [vmem:[%s1 + $0xd00] sm:$0xff]
  %v437 = vld [vmem:[%s1 + $0xd08] sm:$0xff]
  %v438 = vld [vmem:[%s1 + $0xd10] sm:$0xff]
  %v439 = vld [vmem:[%s1 + $0xd18] sm:$0xff]
  %v440 = vld [vmem:[%s1 + $0xd20] sm:$0xff]
  %v441 = vld [vmem:[%s1 + $0xd28] sm:$0xff]
  %v442 = vld [vmem:[%s1 + $0xd30] sm:$0xff]
  %v443 = vld [vmem:[%s1 + $0xd38] sm:$0xff]
  %v444 = vld [vmem:[%s1 + $0xd40] sm:$0xff]
  %v445 = vld [vmem:[%s1 + $0xd48] sm:$0xff]
  %v446 = vld [vmem:[%s1 + $0xd50] sm:$0xff]
  %v447 = vld [vmem:[%s1 + $0xd58] sm:$0xff]
  %v448 = vld [vmem:[%s1 + $0xd60] sm:$0xff]
  %v449 = vld [vmem:[%s1 + $0xd68] sm:$0xff]
  %v450 = vld [vmem:[%s1 + $0xd70] sm:$0xff]
  %v451 = vld [vmem:[%s1 + $0xd78] sm:$0xff]
  %v452 = vld [vmem:[%s1 + $0xd80] sm:$0xff]
  %v453 = vld [vmem:[%s1 + $0xd88] sm:$0xff]
  %v454 = vld [vmem:[%s1 + $0xd90] sm:$0xff]
  %v455 = vld [vmem:[%s1 + $0xd98] sm:$0xff]
  %v456 = vld [vmem:[%s1 + $0xda0] sm:$0xff]
  %v457 = vld [vmem:[%s1 + $0xda8] sm:$0xff]
  %v458 = vld [vmem:[%s1 + $0xdb0] sm:$0xff]
  %v459 = vld [vmem:[%s1 + $0xdb8] sm:$0xff]
  %v460 = vld [vmem:[%s1 + $0xdc0] sm:$0xff]
  %v461 = vld [vmem:[%s1 + $0xdc8] sm:$0xff]
  %v462 = vld [vmem:[%s1 + $0xdd0] sm:$0xff]
  %v463 = vld [vmem:[%s1 + $0xdd8] sm:$0xff]
  %v464 = vld [vmem:[%s1 + $0xde0] sm:$0xff]
  %v465 = vld [vmem:[%s1 + $0xde8] sm:$0xff]
  %v466 = vld [vmem:[%s1 + $0xdf0] sm:$0xff]
  %v467 = vld [vmem:[%s1 + $0xdf8] sm:$0xff]
  %v468 = vld [vmem:[%s1 + $0xe00] sm:$0xff]
  %v469 = vld [vmem:[%s1 + $0xe08] sm:$0xff]
  %v470 = vld [vmem:[%s1 + $0xe10] sm:$0xff]
  %v471 = vld [vmem:[%s1 + $0xe18] sm:$0xff]
  %v472 = vld [vmem:[%s1 + $0xe20] sm:$0xff]
  %v473 = vld [vmem:[%s1 + $0xe28] sm:$0xff]
  %v474 = vld [vmem:[%s1 + $0xe30] sm:$0xff]
  %v475 = vld [vmem:[%s1 + $0xe38] sm:$0xff]
  %v476 = vld [vmem:[%s1 + $0xe40] sm:$0xff]
  %v477 = vld [vmem:[%s1 + $0xe48] sm:$0xff]
  %v478 = vld [vmem:[%s1 + $0xe50] sm:$0xff]
  %v479 = vld [vmem:[%s1 + $0xe58] sm:$0xff]
  %v480 = vld [vmem:[%s1 + $0xe60] sm:$0xff]
  %v481 = vld [vmem:[%s1 + $0xe68] sm:$0xff]
  %v482 = vld [vmem:[%s1 + $0xe70] sm:$0xff]
  %v483 = vld [vmem:[%s1 + $0xe78] sm:$0xff]
  %v484 = vld [vmem:[%s1 + $0xe80] sm:$0xff]
  %v485 = vld [vmem:[%s1 + $0xe88] sm:$0xff]
  %v486 = vld [vmem:[%s1 + $0xe90] sm:$0xff]
  %v487 = vld [vmem:[%s1 + $0xe98] sm:$0xff]
  %v488 = vld [vmem:[%s1 + $0xea0] sm:$0xff]
  %v489 = vld [vmem:[%s1 + $0xea8] sm:$0xff]
  %v490 = vld [vmem:[%s1 + $0xeb0] sm:$0xff]
  %v491 = vld [vmem:[%s1 + $0xeb8] sm:$0xff]
  %v492 = vld [vmem:[%s1 + $0xec0] sm:$0xff]
  %v493 = vld [vmem:[%s1 + $0xec8] sm:$0xff]
  %v494 = vld [vmem:[%s1 + $0xed0] sm:$0xff]
  %v495 = vld [vmem:[%s1 + $0xed8] sm:$0xff]
  %v496 = vld [vmem:[%s1 + $0xee0] sm:$0xff]
  %v497 = vld [vmem:[%s1 + $0xee8] sm:$0xff]
  %v498 = vld [vmem:[%s1 + $0xef0] sm:$0xff]
  %v499 = vld [vmem:[%s1 + $0xef8] sm:$0xff]
  %v500 = vld [vmem:[%s1 + $0xf00] sm:$0xff]
  %v501 = vld [vmem:[%s1 + $0xf08] sm:$0xff]
  %v502 = vld [vmem:[%s1 + $0xf10] sm:$0xff]
  %v503 = vld [vmem:[%s1 + $0xf18] sm:$0xff]
  %v504 = vld [vmem:[%s1 + $0xf20] sm:$0xff]
  %v505 = vld [vmem:[%s1 + $0xf28] sm:$0xff]
  %v506 = vld [vmem:[%s1 + $0xf30] sm:$0xff]
  %v507 = vld [vmem:[%s1 + $0xf38] sm:$0xff]
  %v508 = vld [vmem:[%s1 + $0xf40] sm:$0xff]
  %v509 = vld [vmem:[%s1 + $0xf48] sm:$0xff]
  %v510 = vld [vmem:[%s1 + $0xf50] sm:$0xff]
  %v511 = vld [vmem:[%s1 + $0xf58] sm:$0xff]
  %v512 = vld [vmem:[%s1 + $0xf60] sm:$0xff]
  %v513 = vld [vmem:[%s1 + $0xf68] sm:$0xff]
  %v514 = vld [vmem:[%s1 + $0xf70] sm:$0xff]
  %v515 = vld [vmem:[%s1 + $0xf78] sm:$0xff]
  %v516 = vld [vmem:[%s1 + $0xf80] sm:$0xff]
  %v517 = vld [vmem:[%s1 + $0xf88] sm:$0xff]
  %v518 = vld [vmem:[%s1 + $0xf90] sm:$0xff]
  %v519 = vld [vmem:[%s1 + $0xf98] sm:$0xff]
  %v520 = vld [vmem:[%s1 + $0xfa0] sm:$0xff]
  %v521 = vld [vmem:[%s1 + $0xfa8] sm:$0xff]
  %v522 = vld [vmem:[%s1 + $0xfb0] sm:$0xff]
  %v523 = vld [vmem:[%s1 + $0xfb8] sm:$0xff]
  %v524 = vld [vmem:[%s1 + $0xfc0] sm:$0xff]
  %v525 = vld [vmem:[%s1 + $0xfc8] sm:$0xff]
  %v526 = vld [vmem:[%s1 + $0xfd0] sm:$0xff]
  %v527 = vld [vmem:[%s1 + $0xfd8] sm:$0xff]
  %v528 = vld [vmem:[%s1 + $0xfe0] sm:$0xff]
  %v529 = vld [vmem:[%s1 + $0xfe8] sm:$0xff]
  %v530 = vld [vmem:[%s1 + $0xff0] sm:$0xff]
  %v531 = vld [vmem:[%s1 + $0xff8] sm:$0xff]
  %v532 = vld [vmem:[%s1 + $0x1000] sm:$0xff]
  %v533 = vld [vmem:[%s1 + $0x1008] sm:$0xff]
  %v534 = vld [vmem:[%s1 + $0x1010] sm:$0xff]
  %v535 = vld [vmem:[%s1 + $0x1018] sm:$0xff]
  %v536 = vld [vmem:[%s1 + $0x1020] sm:$0xff]
  %v537 = vld [vmem:[%s1 + $0x1028] sm:$0xff]
  %v538 = vld [vmem:[%s1 + $0x1030] sm:$0xff]
  %v539 = vld [vmem:[%s1 + $0x1038] sm:$0xff]
  %v540 = vld [vmem:[%s1 + $0x1040] sm:$0xff]
  %v541 = vld [vmem:[%s1 + $0x1048] sm:$0xff]
  %v542 = vld [vmem:[%s1 + $0x1050] sm:$0xff]
  %v543 = vld [vmem:[%s1 + $0x1058] sm:$0xff]
  %v544 = vld [vmem:[%s1 + $0x1060] sm:$0xff]
  %v545 = vld [vmem:[%s1 + $0x1068] sm:$0xff]
  %v546 = vld [vmem:[%s1 + $0x1070] sm:$0xff]
  %v547 = vld [vmem:[%s1 + $0x1078] sm:$0xff]
  %v548 = vld [vmem:[%s1 + $0x1080] sm:$0xff]
  %v549 = vld [vmem:[%s1 + $0x1088] sm:$0xff]
  %v550 = vld [vmem:[%s1 + $0x1090] sm:$0xff]
  %v551 = vld [vmem:[%s1 + $0x1098] sm:$0xff]
  %v552 = vld [vmem:[%s1 + $0x10a0] sm:$0xff]
  %v553 = vld [vmem:[%s1 + $0x10a8] sm:$0xff]
  %v554 = vld [vmem:[%s1 + $0x10b0] sm:$0xff]
  %v555 = vld [vmem:[%s1 + $0x10b8] sm:$0xff]
  %v556 = vld [vmem:[%s1 + $0x10c0] sm:$0xff]
  %v557 = vld [vmem:[%s1 + $0x10c8] sm:$0xff]
  %v558 = vld [vmem:[%s1 + $0x10d0] sm:$0xff]
  %v559 = vld [vmem:[%s1 + $0x10d8] sm:$0xff]
  %v560 = vld [vmem:[%s1 + $0x10e0] sm:$0xff]
  %v561 = vld [vmem:[%s1 + $0x10e8] sm:$0xff]
  %v562 = vld [vmem:[%s1 + $0x10f0] sm:$0xff]
  %v563 = vld [vmem:[%s1 + $0x10f8] sm:$0xff]
  %v564 = vld [vmem:[%s1 + $0x1100] sm:$0xff]
  %v565 = vld [vmem:[%s1 + $0x1108] sm:$0xff]
  %v566 = vld [vmem:[%s1 + $0x1110] sm:$0xff]
  %v567 = vld [vmem:[%s1 + $0x1118] sm:$0xff]
  %v568 = vld [vmem:[%s1 + $0x1120] sm:$0xff]
  %v569 = vld [vmem:[%s1 + $0x1128] sm:$0xff]
  %v570 = vld [vmem:[%s1 + $0x1130] sm:$0xff]
  %v571 = vld [vmem:[%s1 + $0x1138] sm:$0xff]
  %v572 = vld [vmem:[%s1 + $0x1140] sm:$0xff]
  %v573 = vld [vmem:[%s1 + $0x1148] sm:$0xff]
  %v574 = vld [vmem:[%s1 + $0x1150] sm:$0xff]
  %v575 = vld [vmem:[%s1 + $0x1158] sm:$0xff]
  %v576 = vld [vmem:[%s1 + $0x1160] sm:$0xff]
  %v577 = vld [vmem:[%s1 + $0x1168] sm:$0xff]
  %v578 = vld [vmem:[%s1 + $0x1170] sm:$0xff]
  %v579 = vld [vmem:[%s1 + $0x1178] sm:$0xff]
  %v580 = vld [vmem:[%s1 + $0x1180] sm:$0xff]
  %v581 = vld [vmem:[%s1 + $0x1188] sm:$0xff]
  %v582 = vld [vmem:[%s1 + $0x1190] sm:$0xff]
  %v583 = vld [vmem:[%s1 + $0x1198] sm:$0xff]
  %v584 = vld [vmem:[%s1 + $0x11a0] sm:$0xff]
  %v585 = vld [vmem:[%s1 + $0x11a8] sm:$0xff]
  %v586 = vld [vmem:[%s1 + $0x11b0] sm:$0xff]
  %v587 = vld [vmem:[%s1 + $0x11b8] sm:$0xff]
  %v588 = vld [vmem:[%s1 + $0x11c0] sm:$0xff]
  %v589 = vld [vmem:[%s1 + $0x11c8] sm:$0xff]
  %v590 = vld [vmem:[%s1 + $0x11d0] sm:$0xff]
  %v591 = vld [vmem:[%s1 + $0x11d8] sm:$0xff]
  %v592 = vld [vmem:[%s1 + $0x11e0] sm:$0xff]
  %v593 = vld [vmem:[%s1 + $0x11e8] sm:$0xff]
  %v594 = vld [vmem:[%s1 + $0x11f0] sm:$0xff]
  %v595 = vld [vmem:[%s1 + $0x11f8] sm:$0xff]
  %v599 = vcombine.high %v17, %v17
  %v601 = vunpack.c.l.s4 1966171168
  %v602 = vunpack.c.0.s8 %v601
  %v603 = vlaneseq
  %v604 = vshrl.u32 %v603, 7
  %v605 = vsub.s32 %v602, %v604
  %v606 = vrot.slane %v17, %v605
  %v608 = vunpack.c.l.s4 1966171168
  %v609 = vunpack.c.0.s8 %v608
  %v610 = vlaneseq
  %v611 = vshrl.u32 %v610, 7
  %v612 = vsub.s32 %v609, %v611
  %v613 = vrot.slane %v599, %v612
  %v614 = vcombine.high %v606, %v606
  %v615 = vcombine.high %v613, %v613
  %v617 = vunpack.c.l.s4 1966171168
  %v618 = vunpack.c.0.s8 %v617
  %v619 = vlaneseq
  %v620 = vshrl.u32 %v619, 7
  %v621 = vsub.s32 %v618, %v620
  %v622 = vrot.slane %v606, %v621
  %v624 = vunpack.c.l.s4 1966171168
  %v625 = vunpack.c.0.s8 %v624
  %v626 = vlaneseq
  %v627 = vshrl.u32 %v626, 7
  %v628 = vsub.s32 %v625, %v627
  %v629 = vrot.slane %v613, %v628
  %v631 = vunpack.c.l.s4 1966171168
  %v632 = vunpack.c.0.s8 %v631
  %v633 = vlaneseq
  %v634 = vshrl.u32 %v633, 7
  %v635 = vsub.s32 %v632, %v634
  %v636 = vrot.slane %v614, %v635
  %v638 = vunpack.c.l.s4 1966171168
  %v639 = vunpack.c.0.s8 %v638
  %v640 = vlaneseq
  %v641 = vshrl.u32 %v640, 7
  %v642 = vsub.s32 %v639, %v641
  %v643 = vrot.slane %v615, %v642
  %v644 = vcombine.high %v622, %v622
  %v645 = vcombine.high %v629, %v629
  %v646 = vcombine.high %v636, %v636
  %v647 = vcombine.high %v643, %v643
  %v648 = vcombine.high %v18, %v18
  %v650 = vunpack.c.l.s4 1966171168
  %v651 = vunpack.c.0.s8 %v650
  %v652 = vlaneseq
  %v653 = vshrl.u32 %v652, 7
  %v654 = vsub.s32 %v651, %v653
  %v655 = vrot.slane %v18, %v654
  %v657 = vunpack.c.l.s4 1966171168
  %v658 = vunpack.c.0.s8 %v657
  %v659 = vlaneseq
  %v660 = vshrl.u32 %v659, 7
  %v661 = vsub.s32 %v658, %v660
  %v662 = vrot.slane %v648, %v661
  %v663 = vcombine.high %v655, %v655
  %v664 = vcombine.high %v662, %v662
  %v666 = vunpack.c.l.s4 1966171168
  %v667 = vunpack.c.0.s8 %v666
  %v668 = vlaneseq
  %v669 = vshrl.u32 %v668, 7
  %v670 = vsub.s32 %v667, %v669
  %v671 = vrot.slane %v655, %v670
  %v673 = vunpack.c.l.s4 1966171168
  %v674 = vunpack.c.0.s8 %v673
  %v675 = vlaneseq
  %v676 = vshrl.u32 %v675, 7
  %v677 = vsub.s32 %v674, %v676
  %v678 = vrot.slane %v662, %v677
  %v680 = vunpack.c.l.s4 1966171168
  %v681 = vunpack.c.0.s8 %v680
  %v682 = vlaneseq
  %v683 = vshrl.u32 %v682, 7
  %v684 = vsub.s32 %v681, %v683
  %v685 = vrot.slane %v663, %v684
  %v687 = vunpack.c.l.s4 1966171168
  %v688 = vunpack.c.0.s8 %v687
  %v689 = vlaneseq
  %v690 = vshrl.u32 %v689, 7
  %v691 = vsub.s32 %v688, %v690
  %v692 = vrot.slane %v664, %v691
  %v693 = vcombine.high %v671, %v671
  %v694 = vcombine.high %v678, %v678
  %v695 = vcombine.high %v685, %v685
  %v696 = vcombine.high %v692, %v692
  %v698 = vunpack.c.l.s4 1966171168
  %v699 = vunpack.c.0.s8 %v698
  %v700 = vlaneseq
  %v701 = vshrl.u32 %v700, 7
  %v702 = vsub.s32 %v699, %v701
  %v703 = vrot.slane %v19, %v702
  %v704 = vcombine.high %v703, %v703
  %v706 = vunpack.c.l.s4 1966171168
  %v707 = vunpack.c.0.s8 %v706
  %v708 = vlaneseq
  %v709 = vshrl.u32 %v708, 7
  %v710 = vsub.s32 %v707, %v709
  %v711 = vrot.slane %v703, %v710
  %v713 = vunpack.c.l.s4 1966171168
  %v714 = vunpack.c.0.s8 %v713
  %v715 = vlaneseq
  %v716 = vshrl.u32 %v715, 7
  %v717 = vsub.s32 %v714, %v716
  %v718 = vrot.slane %v704, %v717
  %v1313 = vunpack.c.l.b16 %v20
  %v1314 = vunpack.c.h.b16 %v20
  %v1315 = vunpack.c.l.b16 %v21
  %v1316 = vunpack.c.h.b16 %v21
  %v1317 = vunpack.c.l.b16 %v22
  %v1318 = vunpack.c.h.b16 %v22
  %v1319 = vunpack.c.l.b16 %v23
  %v1320 = vunpack.c.h.b16 %v23
  %v1321 = vunpack.c.l.b16 %v24
  %v1322 = vunpack.c.h.b16 %v24
  %v1323 = vunpack.c.l.b16 %v25
  %v1324 = vunpack.c.h.b16 %v25
  %v1325 = vunpack.c.l.b16 %v26
  %v1326 = vunpack.c.h.b16 %v26
  %v1327 = vunpack.c.l.b16 %v27
  %v1328 = vunpack.c.h.b16 %v27
  %v1329 = vunpack.c.l.b16 %v28
  %v1330 = vunpack.c.h.b16 %v28
  %v1331 = vunpack.c.l.b16 %v29
  %v1332 = vunpack.c.h.b16 %v29
  %v1333 = vunpack.c.l.b16 %v30
  %v1334 = vunpack.c.h.b16 %v30
  %v1335 = vunpack.c.l.b16 %v31
  %v1336 = vunpack.c.h.b16 %v31
  %v1337 = vunpack.c.l.b16 %v32
  %v1338 = vunpack.c.h.b16 %v32
  %v1339 = vunpack.c.l.b16 %v33
  %v1340 = vunpack.c.h.b16 %v33
  %v1341 = vunpack.c.l.b16 %v34
  %v1342 = vunpack.c.h.b16 %v34
  %v1343 = vunpack.c.l.b16 %v35
  %v1344 = vunpack.c.h.b16 %v35
  %v1345 = vunpack.c.l.b16 %v36
  %v1346 = vunpack.c.h.b16 %v36
  %v1347 = vunpack.c.l.b16 %v37
  %v1348 = vunpack.c.h.b16 %v37
  %v1349 = vunpack.c.l.b16 %v38
  %v1350 = vunpack.c.h.b16 %v38
  %v1351 = vunpack.c.l.b16 %v39
  %v1352 = vunpack.c.h.b16 %v39
  %v1353 = vunpack.c.l.b16 %v40
  %v1354 = vunpack.c.h.b16 %v40
  %v1355 = vunpack.c.l.b16 %v41
  %v1356 = vunpack.c.h.b16 %v41
  %v1357 = vunpack.c.l.b16 %v42
  %v1358 = vunpack.c.h.b16 %v42
  %v1359 = vunpack.c.l.b16 %v43
  %v1360 = vunpack.c.h.b16 %v43
  %v1361 = vunpack.c.l.b16 %v44
  %v1362 = vunpack.c.h.b16 %v44
  %v1363 = vunpack.c.l.b16 %v45
  %v1364 = vunpack.c.h.b16 %v45
  %v1365 = vunpack.c.l.b16 %v46
  %v1366 = vunpack.c.h.b16 %v46
  %v1367 = vunpack.c.l.b16 %v47
  %v1368 = vunpack.c.h.b16 %v47
  %v1369 = vunpack.c.l.b16 %v48
  %v1370 = vunpack.c.h.b16 %v48
  %v1371 = vunpack.c.l.b16 %v49
  %v1372 = vunpack.c.h.b16 %v49
  %v1373 = vunpack.c.l.b16 %v50
  %v1374 = vunpack.c.h.b16 %v50
  %v1375 = vunpack.c.l.b16 %v51
  %v1376 = vunpack.c.h.b16 %v51
  %v1377 = vunpack.c.l.b16 %v52
  %v1378 = vunpack.c.h.b16 %v52
  %v1379 = vunpack.c.l.b16 %v53
  %v1380 = vunpack.c.h.b16 %v53
  %v1381 = vunpack.c.l.b16 %v54
  %v1382 = vunpack.c.h.b16 %v54
  %v1383 = vunpack.c.l.b16 %v55
  %v1384 = vunpack.c.h.b16 %v55
  %v1385 = vunpack.c.l.b16 %v56
  %v1386 = vunpack.c.h.b16 %v56
  %v1387 = vunpack.c.l.b16 %v57
  %v1388 = vunpack.c.h.b16 %v57
  %v1389 = vunpack.c.l.b16 %v58
  %v1390 = vunpack.c.h.b16 %v58
  %v1391 = vunpack.c.l.b16 %v59
  %v1392 = vunpack.c.h.b16 %v59
  %v1393 = vunpack.c.l.b16 %v60
  %v1394 = vunpack.c.h.b16 %v60
  %v1395 = vunpack.c.l.b16 %v61
  %v1396 = vunpack.c.h.b16 %v61
  %v1397 = vunpack.c.l.b16 %v62
  %v1398 = vunpack.c.h.b16 %v62
  %v1399 = vunpack.c.l.b16 %v63
  %v1400 = vunpack.c.h.b16 %v63
  %v1401 = vunpack.c.l.b16 %v64
  %v1402 = vunpack.c.h.b16 %v64
  %v1403 = vunpack.c.l.b16 %v65
  %v1404 = vunpack.c.h.b16 %v65
  %v1405 = vunpack.c.l.b16 %v66
  %v1406 = vunpack.c.h.b16 %v66
  %v1407 = vunpack.c.l.b16 %v67
  %v1408 = vunpack.c.h.b16 %v67
  %v1409 = vunpack.c.l.b16 %v68
  %v1410 = vunpack.c.h.b16 %v68
  %v1411 = vunpack.c.l.b16 %v69
  %v1412 = vunpack.c.h.b16 %v69
  %v1413 = vunpack.c.l.b16 %v70
  %v1414 = vunpack.c.h.b16 %v70
  %v1415 = vunpack.c.l.b16 %v71
  %v1416 = vunpack.c.h.b16 %v71
  %v1417 = vunpack.c.l.b16 %v72
  %v1418 = vunpack.c.h.b16 %v72
  %v1419 = vunpack.c.l.b16 %v73
  %v1420 = vunpack.c.h.b16 %v73
  %v1421 = vunpack.c.l.b16 %v74
  %v1422 = vunpack.c.h.b16 %v74
  %v1423 = vunpack.c.l.b16 %v75
  %v1424 = vunpack.c.h.b16 %v75
  %v1425 = vunpack.c.l.b16 %v76
  %v1426 = vunpack.c.h.b16 %v76
  %v1427 = vunpack.c.l.b16 %v77
  %v1428 = vunpack.c.h.b16 %v77
  %v1429 = vunpack.c.l.b16 %v78
  %v1430 = vunpack.c.h.b16 %v78
  %v1431 = vunpack.c.l.b16 %v79
  %v1432 = vunpack.c.h.b16 %v79
  %v1433 = vunpack.c.l.b16 %v80
  %v1434 = vunpack.c.h.b16 %v80
  %v1435 = vunpack.c.l.b16 %v81
  %v1436 = vunpack.c.h.b16 %v81
  %v1437 = vunpack.c.l.b16 %v82
  %v1438 = vunpack.c.h.b16 %v82
  %v1439 = vunpack.c.l.b16 %v83
  %v1440 = vunpack.c.h.b16 %v83
  %v1441 = vunpack.c.l.b16 %v84
  %v1442 = vunpack.c.h.b16 %v84
  %v1443 = vunpack.c.l.b16 %v85
  %v1444 = vunpack.c.h.b16 %v85
  %v1445 = vunpack.c.l.b16 %v86
  %v1446 = vunpack.c.h.b16 %v86
  %v1447 = vunpack.c.l.b16 %v87
  %v1448 = vunpack.c.h.b16 %v87
  %v1449 = vunpack.c.l.b16 %v88
  %v1450 = vunpack.c.h.b16 %v88
  %v1451 = vunpack.c.l.b16 %v89
  %v1452 = vunpack.c.h.b16 %v89
  %v1453 = vunpack.c.l.b16 %v90
  %v1454 = vunpack.c.h.b16 %v90
  %v1455 = vunpack.c.l.b16 %v91
  %v1456 = vunpack.c.h.b16 %v91
  %v1457 = vunpack.c.l.b16 %v92
  %v1458 = vunpack.c.h.b16 %v92
  %v1459 = vunpack.c.l.b16 %v93
  %v1460 = vunpack.c.h.b16 %v93
  %v1461 = vunpack.c.l.b16 %v94
  %v1462 = vunpack.c.h.b16 %v94
  %v1463 = vunpack.c.l.b16 %v95
  %v1464 = vunpack.c.h.b16 %v95
  %v1465 = vunpack.c.l.b16 %v96
  %v1466 = vunpack.c.h.b16 %v96
  %v1467 = vunpack.c.l.b16 %v97
  %v1468 = vunpack.c.h.b16 %v97
  %v1469 = vunpack.c.l.b16 %v98
  %v1470 = vunpack.c.h.b16 %v98
  %v1471 = vunpack.c.l.b16 %v99
  %v1472 = vunpack.c.h.b16 %v99
  %v1473 = vunpack.c.l.b16 %v100
  %v1474 = vunpack.c.h.b16 %v100
  %v1475 = vunpack.c.l.b16 %v101
  %v1476 = vunpack.c.h.b16 %v101
  %v1477 = vunpack.c.l.b16 %v102
  %v1478 = vunpack.c.h.b16 %v102
  %v1479 = vunpack.c.l.b16 %v103
  %v1480 = vunpack.c.h.b16 %v103
  %v1481 = vunpack.c.l.b16 %v104
  %v1482 = vunpack.c.h.b16 %v104
  %v1483 = vunpack.c.l.b16 %v105
  %v1484 = vunpack.c.h.b16 %v105
  %v1485 = vunpack.c.l.b16 %v106
  %v1486 = vunpack.c.h.b16 %v106
  %v1487 = vunpack.c.l.b16 %v107
  %v1488 = vunpack.c.h.b16 %v107
  %v1489 = vunpack.c.l.b16 %v108
  %v1490 = vunpack.c.h.b16 %v108
  %v1491 = vunpack.c.l.b16 %v109
  %v1492 = vunpack.c.h.b16 %v109
  %v1493 = vunpack.c.l.b16 %v110
  %v1494 = vunpack.c.h.b16 %v110
  %v1495 = vunpack.c.l.b16 %v111
  %v1496 = vunpack.c.h.b16 %v111
  %v1497 = vunpack.c.l.b16 %v112
  %v1498 = vunpack.c.h.b16 %v112
  %v1499 = vunpack.c.l.b16 %v113
  %v1500 = vunpack.c.h.b16 %v113
  %v1501 = vunpack.c.l.b16 %v114
  %v1502 = vunpack.c.h.b16 %v114
  %v1503 = vunpack.c.l.b16 %v115
  %v1504 = vunpack.c.h.b16 %v115
  %v1505 = vunpack.c.l.b16 %v116
  %v1506 = vunpack.c.h.b16 %v116
  %v1507 = vunpack.c.l.b16 %v117
  %v1508 = vunpack.c.h.b16 %v117
  %v1509 = vunpack.c.l.b16 %v118
  %v1510 = vunpack.c.h.b16 %v118
  %v1511 = vunpack.c.l.b16 %v119
  %v1512 = vunpack.c.h.b16 %v119
  %v1513 = vunpack.c.l.b16 %v120
  %v1514 = vunpack.c.h.b16 %v120
  %v1515 = vunpack.c.l.b16 %v121
  %v1516 = vunpack.c.h.b16 %v121
  %v1517 = vunpack.c.l.b16 %v122
  %v1518 = vunpack.c.h.b16 %v122
  %v1519 = vunpack.c.l.b16 %v123
  %v1520 = vunpack.c.h.b16 %v123
  %v1521 = vunpack.c.l.b16 %v124
  %v1522 = vunpack.c.h.b16 %v124
  %v1523 = vunpack.c.l.b16 %v125
  %v1524 = vunpack.c.h.b16 %v125
  %v1525 = vunpack.c.l.b16 %v126
  %v1526 = vunpack.c.h.b16 %v126
  %v1527 = vunpack.c.l.b16 %v127
  %v1528 = vunpack.c.h.b16 %v127
  %v1529 = vunpack.c.l.b16 %v128
  %v1530 = vunpack.c.h.b16 %v128
  %v1531 = vunpack.c.l.b16 %v129
  %v1532 = vunpack.c.h.b16 %v129
  %v1533 = vunpack.c.l.b16 %v130
  %v1534 = vunpack.c.h.b16 %v130
  %v1535 = vunpack.c.l.b16 %v131
  %v1536 = vunpack.c.h.b16 %v131
  %v1537 = vunpack.c.l.b16 %v132
  %v1538 = vunpack.c.h.b16 %v132
  %v1539 = vunpack.c.l.b16 %v133
  %v1540 = vunpack.c.h.b16 %v133
  %v1541 = vunpack.c.l.b16 %v134
  %v1542 = vunpack.c.h.b16 %v134
  %v1543 = vunpack.c.l.b16 %v135
  %v1544 = vunpack.c.h.b16 %v135
  %v1545 = vunpack.c.l.b16 %v136
  %v1546 = vunpack.c.h.b16 %v136
  %v1547 = vunpack.c.l.b16 %v137
  %v1548 = vunpack.c.h.b16 %v137
  %v1549 = vunpack.c.l.b16 %v138
  %v1550 = vunpack.c.h.b16 %v138
  %v1551 = vunpack.c.l.b16 %v139
  %v1552 = vunpack.c.h.b16 %v139
  %v1553 = vunpack.c.l.b16 %v140
  %v1554 = vunpack.c.h.b16 %v140
  %v1555 = vunpack.c.l.b16 %v141
  %v1556 = vunpack.c.h.b16 %v141
  %v1557 = vunpack.c.l.b16 %v142
  %v1558 = vunpack.c.h.b16 %v142
  %v1559 = vunpack.c.l.b16 %v143
  %v1560 = vunpack.c.h.b16 %v143
  %v1561 = vunpack.c.l.b16 %v144
  %v1562 = vunpack.c.h.b16 %v144
  %v1563 = vunpack.c.l.b16 %v145
  %v1564 = vunpack.c.h.b16 %v145
  %v1565 = vunpack.c.l.b16 %v146
  %v1566 = vunpack.c.h.b16 %v146
  %v1567 = vunpack.c.l.b16 %v147
  %v1568 = vunpack.c.h.b16 %v147
  %v1569 = vunpack.c.l.b16 %v148
  %v1570 = vunpack.c.h.b16 %v148
  %v1571 = vunpack.c.l.b16 %v149
  %v1572 = vunpack.c.h.b16 %v149
  %v1573 = vunpack.c.l.b16 %v150
  %v1574 = vunpack.c.h.b16 %v150
  %v1575 = vunpack.c.l.b16 %v151
  %v1576 = vunpack.c.h.b16 %v151
  %v1577 = vunpack.c.l.b16 %v152
  %v1578 = vunpack.c.h.b16 %v152
  %v1579 = vunpack.c.l.b16 %v153
  %v1580 = vunpack.c.h.b16 %v153
  %v1581 = vunpack.c.l.b16 %v154
  %v1582 = vunpack.c.h.b16 %v154
  %v1583 = vunpack.c.l.b16 %v155
  %v1584 = vunpack.c.h.b16 %v155
  %v1585 = vunpack.c.l.b16 %v156
  %v1586 = vunpack.c.h.b16 %v156
  %v1587 = vunpack.c.l.b16 %v157
  %v1588 = vunpack.c.h.b16 %v157
  %v1589 = vunpack.c.l.b16 %v158
  %v1590 = vunpack.c.h.b16 %v158
  %v1591 = vunpack.c.l.b16 %v159
  %v1592 = vunpack.c.h.b16 %v159
  %v1593 = vunpack.c.l.b16 %v160
  %v1594 = vunpack.c.h.b16 %v160
  %v1595 = vunpack.c.l.b16 %v161
  %v1596 = vunpack.c.h.b16 %v161
  %v1597 = vunpack.c.l.b16 %v162
  %v1598 = vunpack.c.h.b16 %v162
  %v1599 = vunpack.c.l.b16 %v163
  %v1600 = vunpack.c.h.b16 %v163
  %v1601 = vunpack.c.l.b16 %v164
  %v1602 = vunpack.c.h.b16 %v164
  %v1603 = vunpack.c.l.b16 %v165
  %v1604 = vunpack.c.h.b16 %v165
  %v1605 = vunpack.c.l.b16 %v166
  %v1606 = vunpack.c.h.b16 %v166
  %v1607 = vunpack.c.l.b16 %v167
  %v1608 = vunpack.c.h.b16 %v167
  %v1609 = vunpack.c.l.b16 %v168
  %v1610 = vunpack.c.h.b16 %v168
  %v1611 = vunpack.c.l.b16 %v169
  %v1612 = vunpack.c.h.b16 %v169
  %v1613 = vunpack.c.l.b16 %v170
  %v1614 = vunpack.c.h.b16 %v170
  %v1615 = vunpack.c.l.b16 %v171
  %v1616 = vunpack.c.h.b16 %v171
  %v1617 = vunpack.c.l.b16 %v172
  %v1618 = vunpack.c.h.b16 %v172
  %v1619 = vunpack.c.l.b16 %v173
  %v1620 = vunpack.c.h.b16 %v173
  %v1621 = vunpack.c.l.b16 %v174
  %v1622 = vunpack.c.h.b16 %v174
  %v1623 = vunpack.c.l.b16 %v175
  %v1624 = vunpack.c.h.b16 %v175
  %v1625 = vunpack.c.l.b16 %v176
  %v1626 = vunpack.c.h.b16 %v176
  %v1627 = vunpack.c.l.b16 %v177
  %v1628 = vunpack.c.h.b16 %v177
  %v1629 = vunpack.c.l.b16 %v178
  %v1630 = vunpack.c.h.b16 %v178
  %v1631 = vunpack.c.l.b16 %v179
  %v1632 = vunpack.c.h.b16 %v179
  %v1633 = vunpack.c.l.b16 %v180
  %v1634 = vunpack.c.h.b16 %v180
  %v1635 = vunpack.c.l.b16 %v181
  %v1636 = vunpack.c.h.b16 %v181
  %v1637 = vunpack.c.l.b16 %v182
  %v1638 = vunpack.c.h.b16 %v182
  %v1639 = vunpack.c.l.b16 %v183
  %v1640 = vunpack.c.h.b16 %v183
  %v1641 = vunpack.c.l.b16 %v184
  %v1642 = vunpack.c.h.b16 %v184
  %v1643 = vunpack.c.l.b16 %v185
  %v1644 = vunpack.c.h.b16 %v185
  %v1645 = vunpack.c.l.b16 %v186
  %v1646 = vunpack.c.h.b16 %v186
  %v1647 = vunpack.c.l.b16 %v187
  %v1648 = vunpack.c.h.b16 %v187
  %v1649 = vunpack.c.l.b16 %v188
  %v1650 = vunpack.c.h.b16 %v188
  %v1651 = vunpack.c.l.b16 %v189
  %v1652 = vunpack.c.h.b16 %v189
  %v1653 = vunpack.c.l.b16 %v190
  %v1654 = vunpack.c.h.b16 %v190
  %v1655 = vunpack.c.l.b16 %v191
  %v1656 = vunpack.c.h.b16 %v191
  %v1657 = vunpack.c.l.b16 %v192
  %v1658 = vunpack.c.h.b16 %v192
  %v1659 = vunpack.c.l.b16 %v193
  %v1660 = vunpack.c.h.b16 %v193
  %v1661 = vunpack.c.l.b16 %v194
  %v1662 = vunpack.c.h.b16 %v194
  %v1663 = vunpack.c.l.b16 %v195
  %v1664 = vunpack.c.h.b16 %v195
  %v1665 = vunpack.c.l.b16 %v196
  %v1666 = vunpack.c.h.b16 %v196
  %v1667 = vunpack.c.l.b16 %v197
  %v1668 = vunpack.c.h.b16 %v197
  %v1669 = vunpack.c.l.b16 %v198
  %v1670 = vunpack.c.h.b16 %v198
  %v1671 = vunpack.c.l.b16 %v199
  %v1672 = vunpack.c.h.b16 %v199
  %v1673 = vunpack.c.l.b16 %v200
  %v1674 = vunpack.c.h.b16 %v200
  %v1675 = vunpack.c.l.b16 %v201
  %v1676 = vunpack.c.h.b16 %v201
  %v1677 = vunpack.c.l.b16 %v202
  %v1678 = vunpack.c.h.b16 %v202
  %v1679 = vunpack.c.l.b16 %v203
  %v1680 = vunpack.c.h.b16 %v203
  %v1681 = vunpack.c.l.b16 %v204
  %v1682 = vunpack.c.h.b16 %v204
  %v1683 = vunpack.c.l.b16 %v205
  %v1684 = vunpack.c.h.b16 %v205
  %v1685 = vunpack.c.l.b16 %v206
  %v1686 = vunpack.c.h.b16 %v206
  %v1687 = vunpack.c.l.b16 %v207
  %v1688 = vunpack.c.h.b16 %v207
  %v1689 = vunpack.c.l.b16 %v208
  %v1690 = vunpack.c.h.b16 %v208
  %v1691 = vunpack.c.l.b16 %v209
  %v1692 = vunpack.c.h.b16 %v209
  %v1693 = vunpack.c.l.b16 %v210
  %v1694 = vunpack.c.h.b16 %v210
  %v1695 = vunpack.c.l.b16 %v211
  %v1696 = vunpack.c.h.b16 %v211
  %v1697 = vunpack.c.l.b16 %v212
  %v1698 = vunpack.c.h.b16 %v212
  %v1699 = vunpack.c.l.b16 %v213
  %v1700 = vunpack.c.h.b16 %v213
  %v1701 = vunpack.c.l.b16 %v214
  %v1702 = vunpack.c.h.b16 %v214
  %v1703 = vunpack.c.l.b16 %v215
  %v1704 = vunpack.c.h.b16 %v215
  %v1705 = vunpack.c.l.b16 %v216
  %v1706 = vunpack.c.h.b16 %v216
  %v1707 = vunpack.c.l.b16 %v217
  %v1708 = vunpack.c.h.b16 %v217
  %v1709 = vunpack.c.l.b16 %v218
  %v1710 = vunpack.c.h.b16 %v218
  %v1711 = vunpack.c.l.b16 %v219
  %v1712 = vunpack.c.h.b16 %v219
  %v1713 = vunpack.c.l.b16 %v220
  %v1714 = vunpack.c.h.b16 %v220
  %v1715 = vunpack.c.l.b16 %v221
  %v1716 = vunpack.c.h.b16 %v221
  %v1717 = vunpack.c.l.b16 %v222
  %v1718 = vunpack.c.h.b16 %v222
  %v1719 = vunpack.c.l.b16 %v223
  %v1720 = vunpack.c.h.b16 %v223
  %v1721 = vunpack.c.l.b16 %v224
  %v1722 = vunpack.c.h.b16 %v224
  %v1723 = vunpack.c.l.b16 %v225
  %v1724 = vunpack.c.h.b16 %v225
  %v1725 = vunpack.c.l.b16 %v226
  %v1726 = vunpack.c.h.b16 %v226
  %v1727 = vunpack.c.l.b16 %v227
  %v1728 = vunpack.c.h.b16 %v227
  %v1729 = vunpack.c.l.b16 %v228
  %v1730 = vunpack.c.h.b16 %v228
  %v1731 = vunpack.c.l.b16 %v229
  %v1732 = vunpack.c.h.b16 %v229
  %v1733 = vunpack.c.l.b16 %v230
  %v1734 = vunpack.c.h.b16 %v230
  %v1735 = vunpack.c.l.b16 %v231
  %v1736 = vunpack.c.h.b16 %v231
  %v1737 = vunpack.c.l.b16 %v232
  %v1738 = vunpack.c.h.b16 %v232
  %v1739 = vunpack.c.l.b16 %v233
  %v1740 = vunpack.c.h.b16 %v233
  %v1741 = vunpack.c.l.b16 %v234
  %v1742 = vunpack.c.h.b16 %v234
  %v1743 = vunpack.c.l.b16 %v235
  %v1744 = vunpack.c.h.b16 %v235
  %v1745 = vunpack.c.l.b16 %v236
  %v1746 = vunpack.c.h.b16 %v236
  %v1747 = vunpack.c.l.b16 %v237
  %v1748 = vunpack.c.h.b16 %v237
  %v1749 = vunpack.c.l.b16 %v238
  %v1750 = vunpack.c.h.b16 %v238
  %v1751 = vunpack.c.l.b16 %v239
  %v1752 = vunpack.c.h.b16 %v239
  %v1753 = vunpack.c.l.b16 %v240
  %v1754 = vunpack.c.h.b16 %v240
  %v1755 = vunpack.c.l.b16 %v241
  %v1756 = vunpack.c.h.b16 %v241
  %v1757 = vunpack.c.l.b16 %v242
  %v1758 = vunpack.c.h.b16 %v242
  %v1759 = vunpack.c.l.b16 %v243
  %v1760 = vunpack.c.h.b16 %v243
  %v1761 = vunpack.c.l.b16 %v244
  %v1762 = vunpack.c.h.b16 %v244
  %v1763 = vunpack.c.l.b16 %v245
  %v1764 = vunpack.c.h.b16 %v245
  %v1765 = vunpack.c.l.b16 %v246
  %v1766 = vunpack.c.h.b16 %v246
  %v1767 = vunpack.c.l.b16 %v247
  %v1768 = vunpack.c.h.b16 %v247
  %v1769 = vunpack.c.l.b16 %v248
  %v1770 = vunpack.c.h.b16 %v248
  %v1771 = vunpack.c.l.b16 %v249
  %v1772 = vunpack.c.h.b16 %v249
  %v1773 = vunpack.c.l.b16 %v250
  %v1774 = vunpack.c.h.b16 %v250
  %v1775 = vunpack.c.l.b16 %v251
  %v1776 = vunpack.c.h.b16 %v251
  %v1777 = vunpack.c.l.b16 %v252
  %v1778 = vunpack.c.h.b16 %v252
  %v1779 = vunpack.c.l.b16 %v253
  %v1780 = vunpack.c.h.b16 %v253
  %v1781 = vunpack.c.l.b16 %v254
  %v1782 = vunpack.c.h.b16 %v254
  %v1783 = vunpack.c.l.b16 %v255
  %v1784 = vunpack.c.h.b16 %v255
  %v1785 = vunpack.c.l.b16 %v256
  %v1786 = vunpack.c.h.b16 %v256
  %v1787 = vunpack.c.l.b16 %v257
  %v1788 = vunpack.c.h.b16 %v257
  %v1789 = vunpack.c.l.b16 %v258
  %v1790 = vunpack.c.h.b16 %v258
  %v1791 = vunpack.c.l.b16 %v259
  %v1792 = vunpack.c.h.b16 %v259
  %v1793 = vunpack.c.l.b16 %v260
  %v1794 = vunpack.c.h.b16 %v260
  %v1795 = vunpack.c.l.b16 %v261
  %v1796 = vunpack.c.h.b16 %v261
  %v1797 = vunpack.c.l.b16 %v262
  %v1798 = vunpack.c.h.b16 %v262
  %v1799 = vunpack.c.l.b16 %v263
  %v1800 = vunpack.c.h.b16 %v263
  %v1801 = vunpack.c.l.b16 %v264
  %v1802 = vunpack.c.h.b16 %v264
  %v1803 = vunpack.c.l.b16 %v265
  %v1804 = vunpack.c.h.b16 %v265
  %v1805 = vunpack.c.l.b16 %v266
  %v1806 = vunpack.c.h.b16 %v266
  %v1807 = vunpack.c.l.b16 %v267
  %v1808 = vunpack.c.h.b16 %v267
  %v1809 = vunpack.c.l.b16 %v268
  %v1810 = vunpack.c.h.b16 %v268
  %v1811 = vunpack.c.l.b16 %v269
  %v1812 = vunpack.c.h.b16 %v269
  %v1813 = vunpack.c.l.b16 %v270
  %v1814 = vunpack.c.h.b16 %v270
  %v1815 = vunpack.c.l.b16 %v271
  %v1816 = vunpack.c.h.b16 %v271
  %v1817 = vunpack.c.l.b16 %v272
  %v1818 = vunpack.c.h.b16 %v272
  %v1819 = vunpack.c.l.b16 %v273
  %v1820 = vunpack.c.h.b16 %v273
  %v1821 = vunpack.c.l.b16 %v274
  %v1822 = vunpack.c.h.b16 %v274
  %v1823 = vunpack.c.l.b16 %v275
  %v1824 = vunpack.c.h.b16 %v275
  %v1825 = vunpack.c.l.b16 %v276
  %v1826 = vunpack.c.h.b16 %v276
  %v1827 = vunpack.c.l.b16 %v277
  %v1828 = vunpack.c.h.b16 %v277
  %v1829 = vunpack.c.l.b16 %v278
  %v1830 = vunpack.c.h.b16 %v278
  %v1831 = vunpack.c.l.b16 %v279
  %v1832 = vunpack.c.h.b16 %v279
  %v1833 = vunpack.c.l.b16 %v280
  %v1834 = vunpack.c.h.b16 %v280
  %v1835 = vunpack.c.l.b16 %v281
  %v1836 = vunpack.c.h.b16 %v281
  %v1837 = vunpack.c.l.b16 %v282
  %v1838 = vunpack.c.h.b16 %v282
  %v1839 = vunpack.c.l.b16 %v283
  %v1840 = vunpack.c.h.b16 %v283
  %v1841 = vunpack.c.l.b16 %v284
  %v1842 = vunpack.c.h.b16 %v284
  %v1843 = vunpack.c.l.b16 %v285
  %v1844 = vunpack.c.h.b16 %v285
  %v1845 = vunpack.c.l.b16 %v286
  %v1846 = vunpack.c.h.b16 %v286
  %v1847 = vunpack.c.l.b16 %v287
  %v1848 = vunpack.c.h.b16 %v287
  %v1849 = vunpack.c.l.b16 %v288
  %v1850 = vunpack.c.h.b16 %v288
  %v1851 = vunpack.c.l.b16 %v289
  %v1852 = vunpack.c.h.b16 %v289
  %v1853 = vunpack.c.l.b16 %v290
  %v1854 = vunpack.c.h.b16 %v290
  %v1855 = vunpack.c.l.b16 %v291
  %v1856 = vunpack.c.h.b16 %v291
  %v1857 = vunpack.c.l.b16 %v292
  %v1858 = vunpack.c.h.b16 %v292
  %v1859 = vunpack.c.l.b16 %v293
  %v1860 = vunpack.c.h.b16 %v293
  %v1861 = vunpack.c.l.b16 %v294
  %v1862 = vunpack.c.h.b16 %v294
  %v1863 = vunpack.c.l.b16 %v295
  %v1864 = vunpack.c.h.b16 %v295
  %v1865 = vunpack.c.l.b16 %v296
  %v1866 = vunpack.c.h.b16 %v296
  %v1867 = vunpack.c.l.b16 %v297
  %v1868 = vunpack.c.h.b16 %v297
  %v1869 = vunpack.c.l.b16 %v298
  %v1870 = vunpack.c.h.b16 %v298
  %v1871 = vunpack.c.l.b16 %v299
  %v1872 = vunpack.c.h.b16 %v299
  %v1873 = vunpack.c.l.b16 %v300
  %v1874 = vunpack.c.h.b16 %v300
  %v1875 = vunpack.c.l.b16 %v301
  %v1876 = vunpack.c.h.b16 %v301
  %v1877 = vunpack.c.l.b16 %v302
  %v1878 = vunpack.c.h.b16 %v302
  %v1879 = vunpack.c.l.b16 %v303
  %v1880 = vunpack.c.h.b16 %v303
  %v1881 = vunpack.c.l.b16 %v304
  %v1882 = vunpack.c.h.b16 %v304
  %v1883 = vunpack.c.l.b16 %v305
  %v1884 = vunpack.c.h.b16 %v305
  %v1885 = vunpack.c.l.b16 %v306
  %v1886 = vunpack.c.h.b16 %v306
  %v1887 = vunpack.c.l.b16 %v307
  %v1888 = vunpack.c.h.b16 %v307
  %v1889 = vunpack.c.l.b16 %v308
  %v1890 = vunpack.c.h.b16 %v308
  %v1891 = vunpack.c.l.b16 %v309
  %v1892 = vunpack.c.h.b16 %v309
  %v1893 = vunpack.c.l.b16 %v310
  %v1894 = vunpack.c.h.b16 %v310
  %v1895 = vunpack.c.l.b16 %v311
  %v1896 = vunpack.c.h.b16 %v311
  %v1897 = vunpack.c.l.b16 %v312
  %v1898 = vunpack.c.h.b16 %v312
  %v1899 = vunpack.c.l.b16 %v313
  %v1900 = vunpack.c.h.b16 %v313
  %v1901 = vunpack.c.l.b16 %v314
  %v1902 = vunpack.c.h.b16 %v314
  %v1903 = vunpack.c.l.b16 %v315
  %v1904 = vunpack.c.h.b16 %v315
  %v1905 = vunpack.c.l.b16 %v316
  %v1906 = vunpack.c.h.b16 %v316
  %v1907 = vunpack.c.l.b16 %v317
  %v1908 = vunpack.c.h.b16 %v317
  %v1909 = vunpack.c.l.b16 %v318
  %v1910 = vunpack.c.h.b16 %v318
  %v1911 = vunpack.c.l.b16 %v319
  %v1912 = vunpack.c.h.b16 %v319
  %v1913 = vunpack.c.l.b16 %v320
  %v1914 = vunpack.c.h.b16 %v320
  %v1915 = vunpack.c.l.b16 %v321
  %v1916 = vunpack.c.h.b16 %v321
  %v1917 = vunpack.c.l.b16 %v322
  %v1918 = vunpack.c.h.b16 %v322
  %v1919 = vunpack.c.l.b16 %v323
  %v1920 = vunpack.c.h.b16 %v323
  %v1921 = vunpack.c.l.b16 %v324
  %v1922 = vunpack.c.h.b16 %v324
  %v1923 = vunpack.c.l.b16 %v325
  %v1924 = vunpack.c.h.b16 %v325
  %v1925 = vunpack.c.l.b16 %v326
  %v1926 = vunpack.c.h.b16 %v326
  %v1927 = vunpack.c.l.b16 %v327
  %v1928 = vunpack.c.h.b16 %v327
  %v1929 = vunpack.c.l.b16 %v328
  %v1930 = vunpack.c.h.b16 %v328
  %v1931 = vunpack.c.l.b16 %v329
  %v1932 = vunpack.c.h.b16 %v329
  %v1933 = vunpack.c.l.b16 %v330
  %v1934 = vunpack.c.h.b16 %v330
  %v1935 = vunpack.c.l.b16 %v331
  %v1936 = vunpack.c.h.b16 %v331
  %v1937 = vunpack.c.l.b16 %v332
  %v1938 = vunpack.c.h.b16 %v332
  %v1939 = vunpack.c.l.b16 %v333
  %v1940 = vunpack.c.h.b16 %v333
  %v1941 = vunpack.c.l.b16 %v334
  %v1942 = vunpack.c.h.b16 %v334
  %v1943 = vunpack.c.l.b16 %v335
  %v1944 = vunpack.c.h.b16 %v335
  %v1945 = vunpack.c.l.b16 %v336
  %v1946 = vunpack.c.h.b16 %v336
  %v1947 = vunpack.c.l.b16 %v337
  %v1948 = vunpack.c.h.b16 %v337
  %v1949 = vunpack.c.l.b16 %v338
  %v1950 = vunpack.c.h.b16 %v338
  %v1951 = vunpack.c.l.b16 %v339
  %v1952 = vunpack.c.h.b16 %v339
  %v1953 = vunpack.c.l.b16 %v340
  %v1954 = vunpack.c.h.b16 %v340
  %v1955 = vunpack.c.l.b16 %v341
  %v1956 = vunpack.c.h.b16 %v341
  %v1957 = vunpack.c.l.b16 %v342
  %v1958 = vunpack.c.h.b16 %v342
  %v1959 = vunpack.c.l.b16 %v343
  %v1960 = vunpack.c.h.b16 %v343
  %v1961 = vunpack.c.l.b16 %v344
  %v1962 = vunpack.c.h.b16 %v344
  %v1963 = vunpack.c.l.b16 %v345
  %v1964 = vunpack.c.h.b16 %v345
  %v1965 = vunpack.c.l.b16 %v346
  %v1966 = vunpack.c.h.b16 %v346
  %v1967 = vunpack.c.l.b16 %v347
  %v1968 = vunpack.c.h.b16 %v347
  %v1969 = vunpack.c.l.b16 %v348
  %v1970 = vunpack.c.h.b16 %v348
  %v1971 = vunpack.c.l.b16 %v349
  %v1972 = vunpack.c.h.b16 %v349
  %v1973 = vunpack.c.l.b16 %v350
  %v1974 = vunpack.c.h.b16 %v350
  %v1975 = vunpack.c.l.b16 %v351
  %v1976 = vunpack.c.h.b16 %v351
  %v1977 = vunpack.c.l.b16 %v352
  %v1978 = vunpack.c.h.b16 %v352
  %v1979 = vunpack.c.l.b16 %v353
  %v1980 = vunpack.c.h.b16 %v353
  %v1981 = vunpack.c.l.b16 %v354
  %v1982 = vunpack.c.h.b16 %v354
  %v1983 = vunpack.c.l.b16 %v355
  %v1984 = vunpack.c.h.b16 %v355
  %v1985 = vunpack.c.l.b16 %v356
  %v1986 = vunpack.c.h.b16 %v356
  %v1987 = vunpack.c.l.b16 %v357
  %v1988 = vunpack.c.h.b16 %v357
  %v1989 = vunpack.c.l.b16 %v358
  %v1990 = vunpack.c.h.b16 %v358
  %v1991 = vunpack.c.l.b16 %v359
  %v1992 = vunpack.c.h.b16 %v359
  %v1993 = vunpack.c.l.b16 %v360
  %v1994 = vunpack.c.h.b16 %v360
  %v1995 = vunpack.c.l.b16 %v361
  %v1996 = vunpack.c.h.b16 %v361
  %v1997 = vunpack.c.l.b16 %v362
  %v1998 = vunpack.c.h.b16 %v362
  %v1999 = vunpack.c.l.b16 %v363
  %v2000 = vunpack.c.h.b16 %v363
  %v2001 = vunpack.c.l.b16 %v364
  %v2002 = vunpack.c.h.b16 %v364
  %v2003 = vunpack.c.l.b16 %v365
  %v2004 = vunpack.c.h.b16 %v365
  %v2005 = vunpack.c.l.b16 %v366
  %v2006 = vunpack.c.h.b16 %v366
  %v2007 = vunpack.c.l.b16 %v367
  %v2008 = vunpack.c.h.b16 %v367
  %v2009 = vunpack.c.l.b16 %v368
  %v2010 = vunpack.c.h.b16 %v368
  %v2011 = vunpack.c.l.b16 %v369
  %v2012 = vunpack.c.h.b16 %v369
  %v2013 = vunpack.c.l.b16 %v370
  %v2014 = vunpack.c.h.b16 %v370
  %v2015 = vunpack.c.l.b16 %v371
  %v2016 = vunpack.c.h.b16 %v371
  %v2017 = vunpack.c.l.b16 %v372
  %v2018 = vunpack.c.h.b16 %v372
  %v2019 = vunpack.c.l.b16 %v373
  %v2020 = vunpack.c.h.b16 %v373
  %v2021 = vunpack.c.l.b16 %v374
  %v2022 = vunpack.c.h.b16 %v374
  %v2023 = vunpack.c.l.b16 %v375
  %v2024 = vunpack.c.h.b16 %v375
  %v2025 = vunpack.c.l.b16 %v376
  %v2026 = vunpack.c.h.b16 %v376
  %v2027 = vunpack.c.l.b16 %v377
  %v2028 = vunpack.c.h.b16 %v377
  %v2029 = vunpack.c.l.b16 %v378
  %v2030 = vunpack.c.h.b16 %v378
  %v2031 = vunpack.c.l.b16 %v379
  %v2032 = vunpack.c.h.b16 %v379
  %v2033 = vunpack.c.l.b16 %v380
  %v2034 = vunpack.c.h.b16 %v380
  %v2035 = vunpack.c.l.b16 %v381
  %v2036 = vunpack.c.h.b16 %v381
  %v2037 = vunpack.c.l.b16 %v382
  %v2038 = vunpack.c.h.b16 %v382
  %v2039 = vunpack.c.l.b16 %v383
  %v2040 = vunpack.c.h.b16 %v383
  %v2041 = vunpack.c.l.b16 %v384
  %v2042 = vunpack.c.h.b16 %v384
  %v2043 = vunpack.c.l.b16 %v385
  %v2044 = vunpack.c.h.b16 %v385
  %v2045 = vunpack.c.l.b16 %v386
  %v2046 = vunpack.c.h.b16 %v386
  %v2047 = vunpack.c.l.b16 %v387
  %v2048 = vunpack.c.h.b16 %v387
  %v2049 = vunpack.c.l.b16 %v388
  %v2050 = vunpack.c.h.b16 %v388
  %v2051 = vunpack.c.l.b16 %v389
  %v2052 = vunpack.c.h.b16 %v389
  %v2053 = vunpack.c.l.b16 %v390
  %v2054 = vunpack.c.h.b16 %v390
  %v2055 = vunpack.c.l.b16 %v391
  %v2056 = vunpack.c.h.b16 %v391
  %v2057 = vunpack.c.l.b16 %v392
  %v2058 = vunpack.c.h.b16 %v392
  %v2059 = vunpack.c.l.b16 %v393
  %v2060 = vunpack.c.h.b16 %v393
  %v2061 = vunpack.c.l.b16 %v394
  %v2062 = vunpack.c.h.b16 %v394
  %v2063 = vunpack.c.l.b16 %v395
  %v2064 = vunpack.c.h.b16 %v395
  %v2065 = vunpack.c.l.b16 %v396
  %v2066 = vunpack.c.h.b16 %v396
  %v2067 = vunpack.c.l.b16 %v397
  %v2068 = vunpack.c.h.b16 %v397
  %v2069 = vunpack.c.l.b16 %v398
  %v2070 = vunpack.c.h.b16 %v398
  %v2071 = vunpack.c.l.b16 %v399
  %v2072 = vunpack.c.h.b16 %v399
  %v2073 = vunpack.c.l.b16 %v400
  %v2074 = vunpack.c.h.b16 %v400
  %v2075 = vunpack.c.l.b16 %v401
  %v2076 = vunpack.c.h.b16 %v401
  %v2077 = vunpack.c.l.b16 %v402
  %v2078 = vunpack.c.h.b16 %v402
  %v2079 = vunpack.c.l.b16 %v403
  %v2080 = vunpack.c.h.b16 %v403
  %v2081 = vunpack.c.l.b16 %v404
  %v2082 = vunpack.c.h.b16 %v404
  %v2083 = vunpack.c.l.b16 %v405
  %v2084 = vunpack.c.h.b16 %v405
  %v2085 = vunpack.c.l.b16 %v406
  %v2086 = vunpack.c.h.b16 %v406
  %v2087 = vunpack.c.l.b16 %v407
  %v2088 = vunpack.c.h.b16 %v407
  %v2089 = vunpack.c.l.b16 %v408
  %v2090 = vunpack.c.h.b16 %v408
  %v2091 = vunpack.c.l.b16 %v409
  %v2092 = vunpack.c.h.b16 %v409
  %v2093 = vunpack.c.l.b16 %v410
  %v2094 = vunpack.c.h.b16 %v410
  %v2095 = vunpack.c.l.b16 %v411
  %v2096 = vunpack.c.h.b16 %v411
  %v2097 = vunpack.c.l.b16 %v412
  %v2098 = vunpack.c.h.b16 %v412
  %v2099 = vunpack.c.l.b16 %v413
  %v2100 = vunpack.c.h.b16 %v413
  %v2101 = vunpack.c.l.b16 %v414
  %v2102 = vunpack.c.h.b16 %v414
  %v2103 = vunpack.c.l.b16 %v415
  %v2104 = vunpack.c.h.b16 %v415
  %v2105 = vunpack.c.l.b16 %v416
  %v2106 = vunpack.c.h.b16 %v416
  %v2107 = vunpack.c.l.b16 %v417
  %v2108 = vunpack.c.h.b16 %v417
  %v2109 = vunpack.c.l.b16 %v418
  %v2110 = vunpack.c.h.b16 %v418
  %v2111 = vunpack.c.l.b16 %v419
  %v2112 = vunpack.c.h.b16 %v419
  %v2113 = vunpack.c.l.b16 %v420
  %v2114 = vunpack.c.h.b16 %v420
  %v2115 = vunpack.c.l.b16 %v421
  %v2116 = vunpack.c.h.b16 %v421
  %v2117 = vunpack.c.l.b16 %v422
  %v2118 = vunpack.c.h.b16 %v422
  %v2119 = vunpack.c.l.b16 %v423
  %v2120 = vunpack.c.h.b16 %v423
  %v2121 = vunpack.c.l.b16 %v424
  %v2122 = vunpack.c.h.b16 %v424
  %v2123 = vunpack.c.l.b16 %v425
  %v2124 = vunpack.c.h.b16 %v425
  %v2125 = vunpack.c.l.b16 %v426
  %v2126 = vunpack.c.h.b16 %v426
  %v2127 = vunpack.c.l.b16 %v427
  %v2128 = vunpack.c.h.b16 %v427
  %v2129 = vunpack.c.l.b16 %v428
  %v2130 = vunpack.c.h.b16 %v428
  %v2131 = vunpack.c.l.b16 %v429
  %v2132 = vunpack.c.h.b16 %v429
  %v2133 = vunpack.c.l.b16 %v430
  %v2134 = vunpack.c.h.b16 %v430
  %v2135 = vunpack.c.l.b16 %v431
  %v2136 = vunpack.c.h.b16 %v431
  %v2137 = vunpack.c.l.b16 %v432
  %v2138 = vunpack.c.h.b16 %v432
  %v2139 = vunpack.c.l.b16 %v433
  %v2140 = vunpack.c.h.b16 %v433
  %v2141 = vunpack.c.l.b16 %v434
  %v2142 = vunpack.c.h.b16 %v434
  %v2143 = vunpack.c.l.b16 %v435
  %v2144 = vunpack.c.h.b16 %v435
  %v2145 = vunpack.c.l.b16 %v436
  %v2146 = vunpack.c.h.b16 %v436
  %v2147 = vunpack.c.l.b16 %v437
  %v2148 = vunpack.c.h.b16 %v437
  %v2149 = vunpack.c.l.b16 %v438
  %v2150 = vunpack.c.h.b16 %v438
  %v2151 = vunpack.c.l.b16 %v439
  %v2152 = vunpack.c.h.b16 %v439
  %v2153 = vunpack.c.l.b16 %v440
  %v2154 = vunpack.c.h.b16 %v440
  %v2155 = vunpack.c.l.b16 %v441
  %v2156 = vunpack.c.h.b16 %v441
  %v2157 = vunpack.c.l.b16 %v442
  %v2158 = vunpack.c.h.b16 %v442
  %v2159 = vunpack.c.l.b16 %v443
  %v2160 = vunpack.c.h.b16 %v443
  %v2161 = vunpack.c.l.b16 %v444
  %v2162 = vunpack.c.h.b16 %v444
  %v2163 = vunpack.c.l.b16 %v445
  %v2164 = vunpack.c.h.b16 %v445
  %v2165 = vunpack.c.l.b16 %v446
  %v2166 = vunpack.c.h.b16 %v446
  %v2167 = vunpack.c.l.b16 %v447
  %v2168 = vunpack.c.h.b16 %v447
  %v2169 = vunpack.c.l.b16 %v448
  %v2170 = vunpack.c.h.b16 %v448
  %v2171 = vunpack.c.l.b16 %v449
  %v2172 = vunpack.c.h.b16 %v449
  %v2173 = vunpack.c.l.b16 %v450
  %v2174 = vunpack.c.h.b16 %v450
  %v2175 = vunpack.c.l.b16 %v451
  %v2176 = vunpack.c.h.b16 %v451
  %v2177 = vunpack.c.l.b16 %v452
  %v2178 = vunpack.c.h.b16 %v452
  %v2179 = vunpack.c.l.b16 %v453
  %v2180 = vunpack.c.h.b16 %v453
  %v2181 = vunpack.c.l.b16 %v454
  %v2182 = vunpack.c.h.b16 %v454
  %v2183 = vunpack.c.l.b16 %v455
  %v2184 = vunpack.c.h.b16 %v455
  %v2185 = vunpack.c.l.b16 %v456
  %v2186 = vunpack.c.h.b16 %v456
  %v2187 = vunpack.c.l.b16 %v457
  %v2188 = vunpack.c.h.b16 %v457
  %v2189 = vunpack.c.l.b16 %v458
  %v2190 = vunpack.c.h.b16 %v458
  %v2191 = vunpack.c.l.b16 %v459
  %v2192 = vunpack.c.h.b16 %v459
  %v2193 = vunpack.c.l.b16 %v460
  %v2194 = vunpack.c.h.b16 %v460
  %v2195 = vunpack.c.l.b16 %v461
  %v2196 = vunpack.c.h.b16 %v461
  %v2197 = vunpack.c.l.b16 %v462
  %v2198 = vunpack.c.h.b16 %v462
  %v2199 = vunpack.c.l.b16 %v463
  %v2200 = vunpack.c.h.b16 %v463
  %v2201 = vunpack.c.l.b16 %v464
  %v2202 = vunpack.c.h.b16 %v464
  %v2203 = vunpack.c.l.b16 %v465
  %v2204 = vunpack.c.h.b16 %v465
  %v2205 = vunpack.c.l.b16 %v466
  %v2206 = vunpack.c.h.b16 %v466
  %v2207 = vunpack.c.l.b16 %v467
  %v2208 = vunpack.c.h.b16 %v467
  %v2209 = vunpack.c.l.b16 %v468
  %v2210 = vunpack.c.h.b16 %v468
  %v2211 = vunpack.c.l.b16 %v469
  %v2212 = vunpack.c.h.b16 %v469
  %v2213 = vunpack.c.l.b16 %v470
  %v2214 = vunpack.c.h.b16 %v470
  %v2215 = vunpack.c.l.b16 %v471
  %v2216 = vunpack.c.h.b16 %v471
  %v2217 = vunpack.c.l.b16 %v472
  %v2218 = vunpack.c.h.b16 %v472
  %v2219 = vunpack.c.l.b16 %v473
  %v2220 = vunpack.c.h.b16 %v473
  %v2221 = vunpack.c.l.b16 %v474
  %v2222 = vunpack.c.h.b16 %v474
  %v2223 = vunpack.c.l.b16 %v475
  %v2224 = vunpack.c.h.b16 %v475
  %v2225 = vunpack.c.l.b16 %v476
  %v2226 = vunpack.c.h.b16 %v476
  %v2227 = vunpack.c.l.b16 %v477
  %v2228 = vunpack.c.h.b16 %v477
  %v2229 = vunpack.c.l.b16 %v478
  %v2230 = vunpack.c.h.b16 %v478
  %v2231 = vunpack.c.l.b16 %v479
  %v2232 = vunpack.c.h.b16 %v479
  %v2233 = vunpack.c.l.b16 %v480
  %v2234 = vunpack.c.h.b16 %v480
  %v2235 = vunpack.c.l.b16 %v481
  %v2236 = vunpack.c.h.b16 %v481
  %v2237 = vunpack.c.l.b16 %v482
  %v2238 = vunpack.c.h.b16 %v482
  %v2239 = vunpack.c.l.b16 %v483
  %v2240 = vunpack.c.h.b16 %v483
  %v2241 = vunpack.c.l.b16 %v484
  %v2242 = vunpack.c.h.b16 %v484
  %v2243 = vunpack.c.l.b16 %v485
  %v2244 = vunpack.c.h.b16 %v485
  %v2245 = vunpack.c.l.b16 %v486
  %v2246 = vunpack.c.h.b16 %v486
  %v2247 = vunpack.c.l.b16 %v487
  %v2248 = vunpack.c.h.b16 %v487
  %v2249 = vunpack.c.l.b16 %v488
  %v2250 = vunpack.c.h.b16 %v488
  %v2251 = vunpack.c.l.b16 %v489
  %v2252 = vunpack.c.h.b16 %v489
  %v2253 = vunpack.c.l.b16 %v490
  %v2254 = vunpack.c.h.b16 %v490
  %v2255 = vunpack.c.l.b16 %v491
  %v2256 = vunpack.c.h.b16 %v491
  %v2257 = vunpack.c.l.b16 %v492
  %v2258 = vunpack.c.h.b16 %v492
  %v2259 = vunpack.c.l.b16 %v493
  %v2260 = vunpack.c.h.b16 %v493
  %v2261 = vunpack.c.l.b16 %v494
  %v2262 = vunpack.c.h.b16 %v494
  %v2263 = vunpack.c.l.b16 %v495
  %v2264 = vunpack.c.h.b16 %v495
  %v2265 = vunpack.c.l.b16 %v496
  %v2266 = vunpack.c.h.b16 %v496
  %v2267 = vunpack.c.l.b16 %v497
  %v2268 = vunpack.c.h.b16 %v497
  %v2269 = vunpack.c.l.b16 %v498
  %v2270 = vunpack.c.h.b16 %v498
  %v2271 = vunpack.c.l.b16 %v499
  %v2272 = vunpack.c.h.b16 %v499
  %v2273 = vunpack.c.l.b16 %v500
  %v2274 = vunpack.c.h.b16 %v500
  %v2275 = vunpack.c.l.b16 %v501
  %v2276 = vunpack.c.h.b16 %v501
  %v2277 = vunpack.c.l.b16 %v502
  %v2278 = vunpack.c.h.b16 %v502
  %v2279 = vunpack.c.l.b16 %v503
  %v2280 = vunpack.c.h.b16 %v503
  %v2281 = vunpack.c.l.b16 %v504
  %v2282 = vunpack.c.h.b16 %v504
  %v2283 = vunpack.c.l.b16 %v505
  %v2284 = vunpack.c.h.b16 %v505
  %v2285 = vunpack.c.l.b16 %v506
  %v2286 = vunpack.c.h.b16 %v506
  %v2287 = vunpack.c.l.b16 %v507
  %v2288 = vunpack.c.h.b16 %v507
  %v2289 = vunpack.c.l.b16 %v508
  %v2290 = vunpack.c.h.b16 %v508
  %v2291 = vunpack.c.l.b16 %v509
  %v2292 = vunpack.c.h.b16 %v509
  %v2293 = vunpack.c.l.b16 %v510
  %v2294 = vunpack.c.h.b16 %v510
  %v2295 = vunpack.c.l.b16 %v511
  %v2296 = vunpack.c.h.b16 %v511
  %v2297 = vunpack.c.l.b16 %v512
  %v2298 = vunpack.c.h.b16 %v512
  %v2299 = vunpack.c.l.b16 %v513
  %v2300 = vunpack.c.h.b16 %v513
  %v2301 = vunpack.c.l.b16 %v514
  %v2302 = vunpack.c.h.b16 %v514
  %v2303 = vunpack.c.l.b16 %v515
  %v2304 = vunpack.c.h.b16 %v515
  %v2305 = vunpack.c.l.b16 %v516
  %v2306 = vunpack.c.h.b16 %v516
  %v2307 = vunpack.c.l.b16 %v517
  %v2308 = vunpack.c.h.b16 %v517
  %v2309 = vunpack.c.l.b16 %v518
  %v2310 = vunpack.c.h.b16 %v518
  %v2311 = vunpack.c.l.b16 %v519
  %v2312 = vunpack.c.h.b16 %v519
  %v2313 = vunpack.c.l.b16 %v520
  %v2314 = vunpack.c.h.b16 %v520
  %v2315 = vunpack.c.l.b16 %v521
  %v2316 = vunpack.c.h.b16 %v521
  %v2317 = vunpack.c.l.b16 %v522
  %v2318 = vunpack.c.h.b16 %v522
  %v2319 = vunpack.c.l.b16 %v523
  %v2320 = vunpack.c.h.b16 %v523
  %v2321 = vunpack.c.l.b16 %v524
  %v2322 = vunpack.c.h.b16 %v524
  %v2323 = vunpack.c.l.b16 %v525
  %v2324 = vunpack.c.h.b16 %v525
  %v2325 = vunpack.c.l.b16 %v526
  %v2326 = vunpack.c.h.b16 %v526
  %v2327 = vunpack.c.l.b16 %v527
  %v2328 = vunpack.c.h.b16 %v527
  %v2329 = vunpack.c.l.b16 %v528
  %v2330 = vunpack.c.h.b16 %v528
  %v2331 = vunpack.c.l.b16 %v529
  %v2332 = vunpack.c.h.b16 %v529
  %v2333 = vunpack.c.l.b16 %v530
  %v2334 = vunpack.c.h.b16 %v530
  %v2335 = vunpack.c.l.b16 %v531
  %v2336 = vunpack.c.h.b16 %v531
  %v2337 = vunpack.c.l.b16 %v532
  %v2338 = vunpack.c.h.b16 %v532
  %v2339 = vunpack.c.l.b16 %v533
  %v2340 = vunpack.c.h.b16 %v533
  %v2341 = vunpack.c.l.b16 %v534
  %v2342 = vunpack.c.h.b16 %v534
  %v2343 = vunpack.c.l.b16 %v535
  %v2344 = vunpack.c.h.b16 %v535
  %v2345 = vunpack.c.l.b16 %v536
  %v2346 = vunpack.c.h.b16 %v536
  %v2347 = vunpack.c.l.b16 %v537
  %v2348 = vunpack.c.h.b16 %v537
  %v2349 = vunpack.c.l.b16 %v538
  %v2350 = vunpack.c.h.b16 %v538
  %v2351 = vunpack.c.l.b16 %v539
  %v2352 = vunpack.c.h.b16 %v539
  %v2353 = vunpack.c.l.b16 %v540
  %v2354 = vunpack.c.h.b16 %v540
  %v2355 = vunpack.c.l.b16 %v541
  %v2356 = vunpack.c.h.b16 %v541
  %v2357 = vunpack.c.l.b16 %v542
  %v2358 = vunpack.c.h.b16 %v542
  %v2359 = vunpack.c.l.b16 %v543
  %v2360 = vunpack.c.h.b16 %v543
  %v2361 = vunpack.c.l.b16 %v544
  %v2362 = vunpack.c.h.b16 %v544
  %v2363 = vunpack.c.l.b16 %v545
  %v2364 = vunpack.c.h.b16 %v545
  %v2365 = vunpack.c.l.b16 %v546
  %v2366 = vunpack.c.h.b16 %v546
  %v2367 = vunpack.c.l.b16 %v547
  %v2368 = vunpack.c.h.b16 %v547
  %v2369 = vunpack.c.l.b16 %v548
  %v2370 = vunpack.c.h.b16 %v548
  %v2371 = vunpack.c.l.b16 %v549
  %v2372 = vunpack.c.h.b16 %v549
  %v2373 = vunpack.c.l.b16 %v550
  %v2374 = vunpack.c.h.b16 %v550
  %v2375 = vunpack.c.l.b16 %v551
  %v2376 = vunpack.c.h.b16 %v551
  %v2377 = vunpack.c.l.b16 %v552
  %v2378 = vunpack.c.h.b16 %v552
  %v2379 = vunpack.c.l.b16 %v553
  %v2380 = vunpack.c.h.b16 %v553
  %v2381 = vunpack.c.l.b16 %v554
  %v2382 = vunpack.c.h.b16 %v554
  %v2383 = vunpack.c.l.b16 %v555
  %v2384 = vunpack.c.h.b16 %v555
  %v2385 = vunpack.c.l.b16 %v556
  %v2386 = vunpack.c.h.b16 %v556
  %v2387 = vunpack.c.l.b16 %v557
  %v2388 = vunpack.c.h.b16 %v557
  %v2389 = vunpack.c.l.b16 %v558
  %v2390 = vunpack.c.h.b16 %v558
  %v2391 = vunpack.c.l.b16 %v559
  %v2392 = vunpack.c.h.b16 %v559
  %v2393 = vunpack.c.l.b16 %v560
  %v2394 = vunpack.c.h.b16 %v560
  %v2395 = vunpack.c.l.b16 %v561
  %v2396 = vunpack.c.h.b16 %v561
  %v2397 = vunpack.c.l.b16 %v562
  %v2398 = vunpack.c.h.b16 %v562
  %v2399 = vunpack.c.l.b16 %v563
  %v2400 = vunpack.c.h.b16 %v563
  %v2401 = vunpack.c.l.b16 %v564
  %v2402 = vunpack.c.h.b16 %v564
  %v2403 = vunpack.c.l.b16 %v565
  %v2404 = vunpack.c.h.b16 %v565
  %v2405 = vunpack.c.l.b16 %v566
  %v2406 = vunpack.c.h.b16 %v566
  %v2407 = vunpack.c.l.b16 %v567
  %v2408 = vunpack.c.h.b16 %v567
  %v2409 = vunpack.c.l.b16 %v568
  %v2410 = vunpack.c.h.b16 %v568
  %v2411 = vunpack.c.l.b16 %v569
  %v2412 = vunpack.c.h.b16 %v569
  %v2413 = vunpack.c.l.b16 %v570
  %v2414 = vunpack.c.h.b16 %v570
  %v2415 = vunpack.c.l.b16 %v571
  %v2416 = vunpack.c.h.b16 %v571
  %v2417 = vunpack.c.l.b16 %v572
  %v2418 = vunpack.c.h.b16 %v572
  %v2419 = vunpack.c.l.b16 %v573
  %v2420 = vunpack.c.h.b16 %v573
  %v2421 = vunpack.c.l.b16 %v574
  %v2422 = vunpack.c.h.b16 %v574
  %v2423 = vunpack.c.l.b16 %v575
  %v2424 = vunpack.c.h.b16 %v575
  %v2425 = vunpack.c.l.b16 %v576
  %v2426 = vunpack.c.h.b16 %v576
  %v2427 = vunpack.c.l.b16 %v577
  %v2428 = vunpack.c.h.b16 %v577
  %v2429 = vunpack.c.l.b16 %v578
  %v2430 = vunpack.c.h.b16 %v578
  %v2431 = vunpack.c.l.b16 %v579
  %v2432 = vunpack.c.h.b16 %v579
  %v2433 = vunpack.c.l.b16 %v580
  %v2434 = vunpack.c.h.b16 %v580
  %v2435 = vunpack.c.l.b16 %v581
  %v2436 = vunpack.c.h.b16 %v581
  %v2437 = vunpack.c.l.b16 %v582
  %v2438 = vunpack.c.h.b16 %v582
  %v2439 = vunpack.c.l.b16 %v583
  %v2440 = vunpack.c.h.b16 %v583
  %v2441 = vunpack.c.l.b16 %v584
  %v2442 = vunpack.c.h.b16 %v584
  %v2443 = vunpack.c.l.b16 %v585
  %v2444 = vunpack.c.h.b16 %v585
  %v2445 = vunpack.c.l.b16 %v586
  %v2446 = vunpack.c.h.b16 %v586
  %v2447 = vunpack.c.l.b16 %v587
  %v2448 = vunpack.c.h.b16 %v587
  %v2449 = vunpack.c.l.b16 %v588
  %v2450 = vunpack.c.h.b16 %v588
  %v2451 = vunpack.c.l.b16 %v589
  %v2452 = vunpack.c.h.b16 %v589
  %v2453 = vunpack.c.l.b16 %v590
  %v2454 = vunpack.c.h.b16 %v590
  %v2455 = vunpack.c.l.b16 %v591
  %v2456 = vunpack.c.h.b16 %v591
  %v2457 = vunpack.c.l.b16 %v592
  %v2458 = vunpack.c.h.b16 %v592
  %v2459 = vunpack.c.l.b16 %v593
  %v2460 = vunpack.c.h.b16 %v593
  %v2461 = vunpack.c.l.b16 %v594
  %v2462 = vunpack.c.h.b16 %v594
  %v2463 = vunpack.c.l.b16 %v595
  %v2464 = vunpack.c.h.b16 %v595
  %v2465 = vpack.c.b16 %v1317, %v1313
  %v2466 = vpack.c.b16 %v1318, %v1314
  %v2467 = vpack.c.b16 %v1319, %v1315
  %v2468 = vpack.c.b16 %v1320, %v1316
  %v2469 = vpack.c.b16 %v1325, %v1321
  %v2470 = vpack.c.b16 %v1326, %v1322
  %v2471 = vpack.c.b16 %v1327, %v1323
  %v2472 = vpack.c.b16 %v1328, %v1324
  %v2473 = vpack.c.b16 %v1333, %v1329
  %v2474 = vpack.c.b16 %v1334, %v1330
  %v2475 = vpack.c.b16 %v1335, %v1331
  %v2476 = vpack.c.b16 %v1336, %v1332
  %v2477 = vpack.c.b16 %v1341, %v1337
  %v2478 = vpack.c.b16 %v1342, %v1338
  %v2479 = vpack.c.b16 %v1343, %v1339
  %v2480 = vpack.c.b16 %v1344, %v1340
  %v2481 = vpack.c.b16 %v1349, %v1345
  %v2482 = vpack.c.b16 %v1350, %v1346
  %v2483 = vpack.c.b16 %v1351, %v1347
  %v2484 = vpack.c.b16 %v1352, %v1348
  %v2485 = vpack.c.b16 %v1357, %v1353
  %v2486 = vpack.c.b16 %v1358, %v1354
  %v2487 = vpack.c.b16 %v1359, %v1355
  %v2488 = vpack.c.b16 %v1360, %v1356
  %v2489 = vpack.c.b16 %v1365, %v1361
  %v2490 = vpack.c.b16 %v1366, %v1362
  %v2491 = vpack.c.b16 %v1367, %v1363
  %v2492 = vpack.c.b16 %v1368, %v1364
  %v2493 = vpack.c.b16 %v1373, %v1369
  %v2494 = vpack.c.b16 %v1374, %v1370
  %v2495 = vpack.c.b16 %v1375, %v1371
  %v2496 = vpack.c.b16 %v1376, %v1372
  %v2497 = vpack.c.b16 %v1381, %v1377
  %v2498 = vpack.c.b16 %v1382, %v1378
  %v2499 = vpack.c.b16 %v1383, %v1379
  %v2500 = vpack.c.b16 %v1384, %v1380
  %v2501 = vpack.c.b16 %v1389, %v1385
  %v2502 = vpack.c.b16 %v1390, %v1386
  %v2503 = vpack.c.b16 %v1391, %v1387
  %v2504 = vpack.c.b16 %v1392, %v1388
  %v2505 = vpack.c.b16 %v1397, %v1393
  %v2506 = vpack.c.b16 %v1398, %v1394
  %v2507 = vpack.c.b16 %v1399, %v1395
  %v2508 = vpack.c.b16 %v1400, %v1396
  %v2509 = vpack.c.b16 %v1405, %v1401
  %v2510 = vpack.c.b16 %v1406, %v1402
  %v2511 = vpack.c.b16 %v1407, %v1403
  %v2512 = vpack.c.b16 %v1408, %v1404
  %v2513 = vpack.c.b16 %v1413, %v1409
  %v2514 = vpack.c.b16 %v1414, %v1410
  %v2515 = vpack.c.b16 %v1415, %v1411
  %v2516 = vpack.c.b16 %v1416, %v1412
  %v2517 = vpack.c.b16 %v1421, %v1417
  %v2518 = vpack.c.b16 %v1422, %v1418
  %v2519 = vpack.c.b16 %v1423, %v1419
  %v2520 = vpack.c.b16 %v1424, %v1420
  %v2521 = vpack.c.b16 %v1429, %v1425
  %v2522 = vpack.c.b16 %v1430, %v1426
  %v2523 = vpack.c.b16 %v1431, %v1427
  %v2524 = vpack.c.b16 %v1432, %v1428
  %v2525 = vpack.c.b16 %v1437, %v1433
  %v2526 = vpack.c.b16 %v1438, %v1434
  %v2527 = vpack.c.b16 %v1439, %v1435
  %v2528 = vpack.c.b16 %v1440, %v1436
  %v2529 = vpack.c.b16 %v1445, %v1441
  %v2530 = vpack.c.b16 %v1446, %v1442
  %v2531 = vpack.c.b16 %v1447, %v1443
  %v2532 = vpack.c.b16 %v1448, %v1444
  %v2533 = vpack.c.b16 %v1453, %v1449
  %v2534 = vpack.c.b16 %v1454, %v1450
  %v2535 = vpack.c.b16 %v1455, %v1451
  %v2536 = vpack.c.b16 %v1456, %v1452
  %v2537 = vpack.c.b16 %v1461, %v1457
  %v2538 = vpack.c.b16 %v1462, %v1458
  %v2539 = vpack.c.b16 %v1463, %v1459
  %v2540 = vpack.c.b16 %v1464, %v1460
  %v2541 = vpack.c.b16 %v1469, %v1465
  %v2542 = vpack.c.b16 %v1470, %v1466
  %v2543 = vpack.c.b16 %v1471, %v1467
  %v2544 = vpack.c.b16 %v1472, %v1468
  %v2545 = vpack.c.b16 %v1477, %v1473
  %v2546 = vpack.c.b16 %v1478, %v1474
  %v2547 = vpack.c.b16 %v1479, %v1475
  %v2548 = vpack.c.b16 %v1480, %v1476
  %v2549 = vpack.c.b16 %v1485, %v1481
  %v2550 = vpack.c.b16 %v1486, %v1482
  %v2551 = vpack.c.b16 %v1487, %v1483
  %v2552 = vpack.c.b16 %v1488, %v1484
  %v2553 = vpack.c.b16 %v1493, %v1489
  %v2554 = vpack.c.b16 %v1494, %v1490
  %v2555 = vpack.c.b16 %v1495, %v1491
  %v2556 = vpack.c.b16 %v1496, %v1492
  %v2557 = vpack.c.b16 %v1501, %v1497
  %v2558 = vpack.c.b16 %v1502, %v1498
  %v2559 = vpack.c.b16 %v1503, %v1499
  %v2560 = vpack.c.b16 %v1504, %v1500
  %v2561 = vpack.c.b16 %v1509, %v1505
  %v2562 = vpack.c.b16 %v1510, %v1506
  %v2563 = vpack.c.b16 %v1511, %v1507
  %v2564 = vpack.c.b16 %v1512, %v1508
  %v2565 = vpack.c.b16 %v1517, %v1513
  %v2566 = vpack.c.b16 %v1518, %v1514
  %v2567 = vpack.c.b16 %v1519, %v1515
  %v2568 = vpack.c.b16 %v1520, %v1516
  %v2569 = vpack.c.b16 %v1525, %v1521
  %v2570 = vpack.c.b16 %v1526, %v1522
  %v2571 = vpack.c.b16 %v1527, %v1523
  %v2572 = vpack.c.b16 %v1528, %v1524
  %v2573 = vpack.c.b16 %v1533, %v1529
  %v2574 = vpack.c.b16 %v1534, %v1530
  %v2575 = vpack.c.b16 %v1535, %v1531
  %v2576 = vpack.c.b16 %v1536, %v1532
  %v2577 = vpack.c.b16 %v1541, %v1537
  %v2578 = vpack.c.b16 %v1542, %v1538
  %v2579 = vpack.c.b16 %v1543, %v1539
  %v2580 = vpack.c.b16 %v1544, %v1540
  %v2581 = vpack.c.b16 %v1549, %v1545
  %v2582 = vpack.c.b16 %v1550, %v1546
  %v2583 = vpack.c.b16 %v1551, %v1547
  %v2584 = vpack.c.b16 %v1552, %v1548
  %v2585 = vpack.c.b16 %v1557, %v1553
  %v2586 = vpack.c.b16 %v1558, %v1554
  %v2587 = vpack.c.b16 %v1559, %v1555
  %v2588 = vpack.c.b16 %v1560, %v1556
  %v2589 = vpack.c.b16 %v1565, %v1561
  %v2590 = vpack.c.b16 %v1566, %v1562
  %v2591 = vpack.c.b16 %v1567, %v1563
  %v2592 = vpack.c.b16 %v1568, %v1564
  %v2593 = vpack.c.b16 %v1573, %v1569
  %v2594 = vpack.c.b16 %v1574, %v1570
  %v2595 = vpack.c.b16 %v1575, %v1571
  %v2596 = vpack.c.b16 %v1576, %v1572
  %v2597 = vpack.c.b16 %v1581, %v1577
  %v2598 = vpack.c.b16 %v1582, %v1578
  %v2599 = vpack.c.b16 %v1583, %v1579
  %v2600 = vpack.c.b16 %v1584, %v1580
  %v2601 = vpack.c.b16 %v1589, %v1585
  %v2602 = vpack.c.b16 %v1590, %v1586
  %v2603 = vpack.c.b16 %v1591, %v1587
  %v2604 = vpack.c.b16 %v1592, %v1588
  %v2605 = vpack.c.b16 %v1597, %v1593
  %v2606 = vpack.c.b16 %v1598, %v1594
  %v2607 = vpack.c.b16 %v1599, %v1595
  %v2608 = vpack.c.b16 %v1600, %v1596
  %v2609 = vpack.c.b16 %v1605, %v1601
  %v2610 = vpack.c.b16 %v1606, %v1602
  %v2611 = vpack.c.b16 %v1607, %v1603
  %v2612 = vpack.c.b16 %v1608, %v1604
  %v2613 = vpack.c.b16 %v1613, %v1609
  %v2614 = vpack.c.b16 %v1614, %v1610
  %v2615 = vpack.c.b16 %v1615, %v1611
  %v2616 = vpack.c.b16 %v1616, %v1612
  %v2617 = vpack.c.b16 %v1621, %v1617
  %v2618 = vpack.c.b16 %v1622, %v1618
  %v2619 = vpack.c.b16 %v1623, %v1619
  %v2620 = vpack.c.b16 %v1624, %v1620
  %v2621 = vpack.c.b16 %v1629, %v1625
  %v2622 = vpack.c.b16 %v1630, %v1626
  %v2623 = vpack.c.b16 %v1631, %v1627
  %v2624 = vpack.c.b16 %v1632, %v1628
  %v2625 = vpack.c.b16 %v1637, %v1633
  %v2626 = vpack.c.b16 %v1638, %v1634
  %v2627 = vpack.c.b16 %v1639, %v1635
  %v2628 = vpack.c.b16 %v1640, %v1636
  %v2629 = vpack.c.b16 %v1645, %v1641
  %v2630 = vpack.c.b16 %v1646, %v1642
  %v2631 = vpack.c.b16 %v1647, %v1643
  %v2632 = vpack.c.b16 %v1648, %v1644
  %v2633 = vpack.c.b16 %v1653, %v1649
  %v2634 = vpack.c.b16 %v1654, %v1650
  %v2635 = vpack.c.b16 %v1655, %v1651
  %v2636 = vpack.c.b16 %v1656, %v1652
  %v2637 = vpack.c.b16 %v1661, %v1657
  %v2638 = vpack.c.b16 %v1662, %v1658
  %v2639 = vpack.c.b16 %v1663, %v1659
  %v2640 = vpack.c.b16 %v1664, %v1660
  %v2641 = vpack.c.b16 %v1669, %v1665
  %v2642 = vpack.c.b16 %v1670, %v1666
  %v2643 = vpack.c.b16 %v1671, %v1667
  %v2644 = vpack.c.b16 %v1672, %v1668
  %v2645 = vpack.c.b16 %v1677, %v1673
  %v2646 = vpack.c.b16 %v1678, %v1674
  %v2647 = vpack.c.b16 %v1679, %v1675
  %v2648 = vpack.c.b16 %v1680, %v1676
  %v2649 = vpack.c.b16 %v1685, %v1681
  %v2650 = vpack.c.b16 %v1686, %v1682
  %v2651 = vpack.c.b16 %v1687, %v1683
  %v2652 = vpack.c.b16 %v1688, %v1684
  %v2653 = vpack.c.b16 %v1693, %v1689
  %v2654 = vpack.c.b16 %v1694, %v1690
  %v2655 = vpack.c.b16 %v1695, %v1691
  %v2656 = vpack.c.b16 %v1696, %v1692
  %v2657 = vpack.c.b16 %v1701, %v1697
  %v2658 = vpack.c.b16 %v1702, %v1698
  %v2659 = vpack.c.b16 %v1703, %v1699
  %v2660 = vpack.c.b16 %v1704, %v1700
  %v2661 = vpack.c.b16 %v1709, %v1705
  %v2662 = vpack.c.b16 %v1710, %v1706
  %v2663 = vpack.c.b16 %v1711, %v1707
  %v2664 = vpack.c.b16 %v1712, %v1708
  %v2665 = vpack.c.b16 %v1717, %v1713
  %v2666 = vpack.c.b16 %v1718, %v1714
  %v2667 = vpack.c.b16 %v1719, %v1715
  %v2668 = vpack.c.b16 %v1720, %v1716
  %v2669 = vpack.c.b16 %v1725, %v1721
  %v2670 = vpack.c.b16 %v1726, %v1722
  %v2671 = vpack.c.b16 %v1727, %v1723
  %v2672 = vpack.c.b16 %v1728, %v1724
  %v2673 = vpack.c.b16 %v1733, %v1729
  %v2674 = vpack.c.b16 %v1734, %v1730
  %v2675 = vpack.c.b16 %v1735, %v1731
  %v2676 = vpack.c.b16 %v1736, %v1732
  %v2677 = vpack.c.b16 %v1741, %v1737
  %v2678 = vpack.c.b16 %v1742, %v1738
  %v2679 = vpack.c.b16 %v1743, %v1739
  %v2680 = vpack.c.b16 %v1744, %v1740
  %v2681 = vpack.c.b16 %v1749, %v1745
  %v2682 = vpack.c.b16 %v1750, %v1746
  %v2683 = vpack.c.b16 %v1751, %v1747
  %v2684 = vpack.c.b16 %v1752, %v1748
  %v2685 = vpack.c.b16 %v1757, %v1753
  %v2686 = vpack.c.b16 %v1758, %v1754
  %v2687 = vpack.c.b16 %v1759, %v1755
  %v2688 = vpack.c.b16 %v1760, %v1756
  %v2689 = vpack.c.b16 %v1765, %v1761
  %v2690 = vpack.c.b16 %v1766, %v1762
  %v2691 = vpack.c.b16 %v1767, %v1763
  %v2692 = vpack.c.b16 %v1768, %v1764
  %v2693 = vpack.c.b16 %v1773, %v1769
  %v2694 = vpack.c.b16 %v1774, %v1770
  %v2695 = vpack.c.b16 %v1775, %v1771
  %v2696 = vpack.c.b16 %v1776, %v1772
  %v2697 = vpack.c.b16 %v1781, %v1777
  %v2698 = vpack.c.b16 %v1782, %v1778
  %v2699 = vpack.c.b16 %v1783, %v1779
  %v2700 = vpack.c.b16 %v1784, %v1780
  %v2701 = vpack.c.b16 %v1789, %v1785
  %v2702 = vpack.c.b16 %v1790, %v1786
  %v2703 = vpack.c.b16 %v1791, %v1787
  %v2704 = vpack.c.b16 %v1792, %v1788
  %v2705 = vpack.c.b16 %v1797, %v1793
  %v2706 = vpack.c.b16 %v1798, %v1794
  %v2707 = vpack.c.b16 %v1799, %v1795
  %v2708 = vpack.c.b16 %v1800, %v1796
  %v2709 = vpack.c.b16 %v1805, %v1801
  %v2710 = vpack.c.b16 %v1806, %v1802
  %v2711 = vpack.c.b16 %v1807, %v1803
  %v2712 = vpack.c.b16 %v1808, %v1804
  %v2713 = vpack.c.b16 %v1813, %v1809
  %v2714 = vpack.c.b16 %v1814, %v1810
  %v2715 = vpack.c.b16 %v1815, %v1811
  %v2716 = vpack.c.b16 %v1816, %v1812
  %v2717 = vpack.c.b16 %v1821, %v1817
  %v2718 = vpack.c.b16 %v1822, %v1818
  %v2719 = vpack.c.b16 %v1823, %v1819
  %v2720 = vpack.c.b16 %v1824, %v1820
  %v2721 = vpack.c.b16 %v1829, %v1825
  %v2722 = vpack.c.b16 %v1830, %v1826
  %v2723 = vpack.c.b16 %v1831, %v1827
  %v2724 = vpack.c.b16 %v1832, %v1828
  %v2725 = vpack.c.b16 %v1837, %v1833
  %v2726 = vpack.c.b16 %v1838, %v1834
  %v2727 = vpack.c.b16 %v1839, %v1835
  %v2728 = vpack.c.b16 %v1840, %v1836
  %v2729 = vpack.c.b16 %v1845, %v1841
  %v2730 = vpack.c.b16 %v1846, %v1842
  %v2731 = vpack.c.b16 %v1847, %v1843
  %v2732 = vpack.c.b16 %v1848, %v1844
  %v2733 = vpack.c.b16 %v1853, %v1849
  %v2734 = vpack.c.b16 %v1854, %v1850
  %v2735 = vpack.c.b16 %v1855, %v1851
  %v2736 = vpack.c.b16 %v1856, %v1852
  %v2737 = vpack.c.b16 %v1861, %v1857
  %v2738 = vpack.c.b16 %v1862, %v1858
  %v2739 = vpack.c.b16 %v1863, %v1859
  %v2740 = vpack.c.b16 %v1864, %v1860
  %v2741 = vpack.c.b16 %v1869, %v1865
  %v2742 = vpack.c.b16 %v1870, %v1866
  %v2743 = vpack.c.b16 %v1871, %v1867
  %v2744 = vpack.c.b16 %v1872, %v1868
  %v2745 = vpack.c.b16 %v1877, %v1873
  %v2746 = vpack.c.b16 %v1878, %v1874
  %v2747 = vpack.c.b16 %v1879, %v1875
  %v2748 = vpack.c.b16 %v1880, %v1876
  %v2749 = vpack.c.b16 %v1885, %v1881
  %v2750 = vpack.c.b16 %v1886, %v1882
  %v2751 = vpack.c.b16 %v1887, %v1883
  %v2752 = vpack.c.b16 %v1888, %v1884
  %v2753 = vpack.c.b16 %v1893, %v1889
  %v2754 = vpack.c.b16 %v1894, %v1890
  %v2755 = vpack.c.b16 %v1895, %v1891
  %v2756 = vpack.c.b16 %v1896, %v1892
  %v2757 = vpack.c.b16 %v1901, %v1897
  %v2758 = vpack.c.b16 %v1902, %v1898
  %v2759 = vpack.c.b16 %v1903, %v1899
  %v2760 = vpack.c.b16 %v1904, %v1900
  %v2761 = vpack.c.b16 %v1909, %v1905
  %v2762 = vpack.c.b16 %v1910, %v1906
  %v2763 = vpack.c.b16 %v1911, %v1907
  %v2764 = vpack.c.b16 %v1912, %v1908
  %v2765 = vpack.c.b16 %v1917, %v1913
  %v2766 = vpack.c.b16 %v1918, %v1914
  %v2767 = vpack.c.b16 %v1919, %v1915
  %v2768 = vpack.c.b16 %v1920, %v1916
  %v2769 = vpack.c.b16 %v1925, %v1921
  %v2770 = vpack.c.b16 %v1926, %v1922
  %v2771 = vpack.c.b16 %v1927, %v1923
  %v2772 = vpack.c.b16 %v1928, %v1924
  %v2773 = vpack.c.b16 %v1933, %v1929
  %v2774 = vpack.c.b16 %v1934, %v1930
  %v2775 = vpack.c.b16 %v1935, %v1931
  %v2776 = vpack.c.b16 %v1936, %v1932
  %v2777 = vpack.c.b16 %v1941, %v1937
  %v2778 = vpack.c.b16 %v1942, %v1938
  %v2779 = vpack.c.b16 %v1943, %v1939
  %v2780 = vpack.c.b16 %v1944, %v1940
  %v2781 = vpack.c.b16 %v1949, %v1945
  %v2782 = vpack.c.b16 %v1950, %v1946
  %v2783 = vpack.c.b16 %v1951, %v1947
  %v2784 = vpack.c.b16 %v1952, %v1948
  %v2785 = vpack.c.b16 %v1957, %v1953
  %v2786 = vpack.c.b16 %v1958, %v1954
  %v2787 = vpack.c.b16 %v1959, %v1955
  %v2788 = vpack.c.b16 %v1960, %v1956
  %v2789 = vpack.c.b16 %v1965, %v1961
  %v2790 = vpack.c.b16 %v1966, %v1962
  %v2791 = vpack.c.b16 %v1967, %v1963
  %v2792 = vpack.c.b16 %v1968, %v1964
  %v2793 = vpack.c.b16 %v1973, %v1969
  %v2794 = vpack.c.b16 %v1974, %v1970
  %v2795 = vpack.c.b16 %v1975, %v1971
  %v2796 = vpack.c.b16 %v1976, %v1972
  %v2797 = vpack.c.b16 %v1981, %v1977
  %v2798 = vpack.c.b16 %v1982, %v1978
  %v2799 = vpack.c.b16 %v1983, %v1979
  %v2800 = vpack.c.b16 %v1984, %v1980
  %v2801 = vpack.c.b16 %v1989, %v1985
  %v2802 = vpack.c.b16 %v1990, %v1986
  %v2803 = vpack.c.b16 %v1991, %v1987
  %v2804 = vpack.c.b16 %v1992, %v1988
  %v2805 = vpack.c.b16 %v1997, %v1993
  %v2806 = vpack.c.b16 %v1998, %v1994
  %v2807 = vpack.c.b16 %v1999, %v1995
  %v2808 = vpack.c.b16 %v2000, %v1996
  %v2809 = vpack.c.b16 %v2005, %v2001
  %v2810 = vpack.c.b16 %v2006, %v2002
  %v2811 = vpack.c.b16 %v2007, %v2003
  %v2812 = vpack.c.b16 %v2008, %v2004
  %v2813 = vpack.c.b16 %v2013, %v2009
  %v2814 = vpack.c.b16 %v2014, %v2010
  %v2815 = vpack.c.b16 %v2015, %v2011
  %v2816 = vpack.c.b16 %v2016, %v2012
  %v2817 = vpack.c.b16 %v2021, %v2017
  %v2818 = vpack.c.b16 %v2022, %v2018
  %v2819 = vpack.c.b16 %v2023, %v2019
  %v2820 = vpack.c.b16 %v2024, %v2020
  %v2821 = vpack.c.b16 %v2029, %v2025
  %v2822 = vpack.c.b16 %v2030, %v2026
  %v2823 = vpack.c.b16 %v2031, %v2027
  %v2824 = vpack.c.b16 %v2032, %v2028
  %v2825 = vpack.c.b16 %v2037, %v2033
  %v2826 = vpack.c.b16 %v2038, %v2034
  %v2827 = vpack.c.b16 %v2039, %v2035
  %v2828 = vpack.c.b16 %v2040, %v2036
  %v2829 = vpack.c.b16 %v2045, %v2041
  %v2830 = vpack.c.b16 %v2046, %v2042
  %v2831 = vpack.c.b16 %v2047, %v2043
  %v2832 = vpack.c.b16 %v2048, %v2044
  %v2833 = vpack.c.b16 %v2053, %v2049
  %v2834 = vpack.c.b16 %v2054, %v2050
  %v2835 = vpack.c.b16 %v2055, %v2051
  %v2836 = vpack.c.b16 %v2056, %v2052
  %v2837 = vpack.c.b16 %v2061, %v2057
  %v2838 = vpack.c.b16 %v2062, %v2058
  %v2839 = vpack.c.b16 %v2063, %v2059
  %v2840 = vpack.c.b16 %v2064, %v2060
  %v2841 = vpack.c.b16 %v2069, %v2065
  %v2842 = vpack.c.b16 %v2070, %v2066
  %v2843 = vpack.c.b16 %v2071, %v2067
  %v2844 = vpack.c.b16 %v2072, %v2068
  %v2845 = vpack.c.b16 %v2077, %v2073
  %v2846 = vpack.c.b16 %v2078, %v2074
  %v2847 = vpack.c.b16 %v2079, %v2075
  %v2848 = vpack.c.b16 %v2080, %v2076
  %v2849 = vpack.c.b16 %v2085, %v2081
  %v2850 = vpack.c.b16 %v2086, %v2082
  %v2851 = vpack.c.b16 %v2087, %v2083
  %v2852 = vpack.c.b16 %v2088, %v2084
  %v2853 = vpack.c.b16 %v2093, %v2089
  %v2854 = vpack.c.b16 %v2094, %v2090
  %v2855 = vpack.c.b16 %v2095, %v2091
  %v2856 = vpack.c.b16 %v2096, %v2092
  %v2857 = vpack.c.b16 %v2101, %v2097
  %v2858 = vpack.c.b16 %v2102, %v2098
  %v2859 = vpack.c.b16 %v2103, %v2099
  %v2860 = vpack.c.b16 %v2104, %v2100
  %v2861 = vpack.c.b16 %v2109, %v2105
  %v2862 = vpack.c.b16 %v2110, %v2106
  %v2863 = vpack.c.b16 %v2111, %v2107
  %v2864 = vpack.c.b16 %v2112, %v2108
  %v2865 = vpack.c.b16 %v2117, %v2113
  %v2866 = vpack.c.b16 %v2118, %v2114
  %v2867 = vpack.c.b16 %v2119, %v2115
  %v2868 = vpack.c.b16 %v2120, %v2116
  %v2869 = vpack.c.b16 %v2125, %v2121
  %v2870 = vpack.c.b16 %v2126, %v2122
  %v2871 = vpack.c.b16 %v2127, %v2123
  %v2872 = vpack.c.b16 %v2128, %v2124
  %v2873 = vpack.c.b16 %v2133, %v2129
  %v2874 = vpack.c.b16 %v2134, %v2130
  %v2875 = vpack.c.b16 %v2135, %v2131
  %v2876 = vpack.c.b16 %v2136, %v2132
  %v2877 = vpack.c.b16 %v2141, %v2137
  %v2878 = vpack.c.b16 %v2142, %v2138
  %v2879 = vpack.c.b16 %v2143, %v2139
  %v2880 = vpack.c.b16 %v2144, %v2140
  %v2881 = vpack.c.b16 %v2149, %v2145
  %v2882 = vpack.c.b16 %v2150, %v2146
  %v2883 = vpack.c.b16 %v2151, %v2147
  %v2884 = vpack.c.b16 %v2152, %v2148
  %v2885 = vpack.c.b16 %v2157, %v2153
  %v2886 = vpack.c.b16 %v2158, %v2154
  %v2887 = vpack.c.b16 %v2159, %v2155
  %v2888 = vpack.c.b16 %v2160, %v2156
  %v2889 = vpack.c.b16 %v2165, %v2161
  %v2890 = vpack.c.b16 %v2166, %v2162
  %v2891 = vpack.c.b16 %v2167, %v2163
  %v2892 = vpack.c.b16 %v2168, %v2164
  %v2893 = vpack.c.b16 %v2173, %v2169
  %v2894 = vpack.c.b16 %v2174, %v2170
  %v2895 = vpack.c.b16 %v2175, %v2171
  %v2896 = vpack.c.b16 %v2176, %v2172
  %v2897 = vpack.c.b16 %v2181, %v2177
  %v2898 = vpack.c.b16 %v2182, %v2178
  %v2899 = vpack.c.b16 %v2183, %v2179
  %v2900 = vpack.c.b16 %v2184, %v2180
  %v2901 = vpack.c.b16 %v2189, %v2185
  %v2902 = vpack.c.b16 %v2190, %v2186
  %v2903 = vpack.c.b16 %v2191, %v2187
  %v2904 = vpack.c.b16 %v2192, %v2188
  %v2905 = vpack.c.b16 %v2197, %v2193
  %v2906 = vpack.c.b16 %v2198, %v2194
  %v2907 = vpack.c.b16 %v2199, %v2195
  %v2908 = vpack.c.b16 %v2200, %v2196
  %v2909 = vpack.c.b16 %v2205, %v2201
  %v2910 = vpack.c.b16 %v2206, %v2202
  %v2911 = vpack.c.b16 %v2207, %v2203
  %v2912 = vpack.c.b16 %v2208, %v2204
  %v2913 = vpack.c.b16 %v2213, %v2209
  %v2914 = vpack.c.b16 %v2214, %v2210
  %v2915 = vpack.c.b16 %v2215, %v2211
  %v2916 = vpack.c.b16 %v2216, %v2212
  %v2917 = vpack.c.b16 %v2221, %v2217
  %v2918 = vpack.c.b16 %v2222, %v2218
  %v2919 = vpack.c.b16 %v2223, %v2219
  %v2920 = vpack.c.b16 %v2224, %v2220
  %v2921 = vpack.c.b16 %v2229, %v2225
  %v2922 = vpack.c.b16 %v2230, %v2226
  %v2923 = vpack.c.b16 %v2231, %v2227
  %v2924 = vpack.c.b16 %v2232, %v2228
  %v2925 = vpack.c.b16 %v2237, %v2233
  %v2926 = vpack.c.b16 %v2238, %v2234
  %v2927 = vpack.c.b16 %v2239, %v2235
  %v2928 = vpack.c.b16 %v2240, %v2236
  %v2929 = vpack.c.b16 %v2245, %v2241
  %v2930 = vpack.c.b16 %v2246, %v2242
  %v2931 = vpack.c.b16 %v2247, %v2243
  %v2932 = vpack.c.b16 %v2248, %v2244
  %v2933 = vpack.c.b16 %v2253, %v2249
  %v2934 = vpack.c.b16 %v2254, %v2250
  %v2935 = vpack.c.b16 %v2255, %v2251
  %v2936 = vpack.c.b16 %v2256, %v2252
  %v2937 = vpack.c.b16 %v2261, %v2257
  %v2938 = vpack.c.b16 %v2262, %v2258
  %v2939 = vpack.c.b16 %v2263, %v2259
  %v2940 = vpack.c.b16 %v2264, %v2260
  %v2941 = vpack.c.b16 %v2269, %v2265
  %v2942 = vpack.c.b16 %v2270, %v2266
  %v2943 = vpack.c.b16 %v2271, %v2267
  %v2944 = vpack.c.b16 %v2272, %v2268
  %v2945 = vpack.c.b16 %v2277, %v2273
  %v2946 = vpack.c.b16 %v2278, %v2274
  %v2947 = vpack.c.b16 %v2279, %v2275
  %v2948 = vpack.c.b16 %v2280, %v2276
  %v2949 = vpack.c.b16 %v2285, %v2281
  %v2950 = vpack.c.b16 %v2286, %v2282
  %v2951 = vpack.c.b16 %v2287, %v2283
  %v2952 = vpack.c.b16 %v2288, %v2284
  %v2953 = vpack.c.b16 %v2293, %v2289
  %v2954 = vpack.c.b16 %v2294, %v2290
  %v2955 = vpack.c.b16 %v2295, %v2291
  %v2956 = vpack.c.b16 %v2296, %v2292
  %v2957 = vpack.c.b16 %v2301, %v2297
  %v2958 = vpack.c.b16 %v2302, %v2298
  %v2959 = vpack.c.b16 %v2303, %v2299
  %v2960 = vpack.c.b16 %v2304, %v2300
  %v2961 = vpack.c.b16 %v2309, %v2305
  %v2962 = vpack.c.b16 %v2310, %v2306
  %v2963 = vpack.c.b16 %v2311, %v2307
  %v2964 = vpack.c.b16 %v2312, %v2308
  %v2965 = vpack.c.b16 %v2317, %v2313
  %v2966 = vpack.c.b16 %v2318, %v2314
  %v2967 = vpack.c.b16 %v2319, %v2315
  %v2968 = vpack.c.b16 %v2320, %v2316
  %v2969 = vpack.c.b16 %v2325, %v2321
  %v2970 = vpack.c.b16 %v2326, %v2322
  %v2971 = vpack.c.b16 %v2327, %v2323
  %v2972 = vpack.c.b16 %v2328, %v2324
  %v2973 = vpack.c.b16 %v2333, %v2329
  %v2974 = vpack.c.b16 %v2334, %v2330
  %v2975 = vpack.c.b16 %v2335, %v2331
  %v2976 = vpack.c.b16 %v2336, %v2332
  %v2977 = vpack.c.b16 %v2341, %v2337
  %v2978 = vpack.c.b16 %v2342, %v2338
  %v2979 = vpack.c.b16 %v2343, %v2339
  %v2980 = vpack.c.b16 %v2344, %v2340
  %v2981 = vpack.c.b16 %v2349, %v2345
  %v2982 = vpack.c.b16 %v2350, %v2346
  %v2983 = vpack.c.b16 %v2351, %v2347
  %v2984 = vpack.c.b16 %v2352, %v2348
  %v2985 = vpack.c.b16 %v2357, %v2353
  %v2986 = vpack.c.b16 %v2358, %v2354
  %v2987 = vpack.c.b16 %v2359, %v2355
  %v2988 = vpack.c.b16 %v2360, %v2356
  %v2989 = vpack.c.b16 %v2365, %v2361
  %v2990 = vpack.c.b16 %v2366, %v2362
  %v2991 = vpack.c.b16 %v2367, %v2363
  %v2992 = vpack.c.b16 %v2368, %v2364
  %v2993 = vpack.c.b16 %v2373, %v2369
  %v2994 = vpack.c.b16 %v2374, %v2370
  %v2995 = vpack.c.b16 %v2375, %v2371
  %v2996 = vpack.c.b16 %v2376, %v2372
  %v2997 = vpack.c.b16 %v2381, %v2377
  %v2998 = vpack.c.b16 %v2382, %v2378
  %v2999 = vpack.c.b16 %v2383, %v2379
  %v3000 = vpack.c.b16 %v2384, %v2380
  %v3001 = vpack.c.b16 %v2389, %v2385
  %v3002 = vpack.c.b16 %v2390, %v2386
  %v3003 = vpack.c.b16 %v2391, %v2387
  %v3004 = vpack.c.b16 %v2392, %v2388
  %v3005 = vpack.c.b16 %v2397, %v2393
  %v3006 = vpack.c.b16 %v2398, %v2394
  %v3007 = vpack.c.b16 %v2399, %v2395
  %v3008 = vpack.c.b16 %v2400, %v2396
  %v3009 = vpack.c.b16 %v2405, %v2401
  %v3010 = vpack.c.b16 %v2406, %v2402
  %v3011 = vpack.c.b16 %v2407, %v2403
  %v3012 = vpack.c.b16 %v2408, %v2404
  %v3013 = vpack.c.b16 %v2413, %v2409
  %v3014 = vpack.c.b16 %v2414, %v2410
  %v3015 = vpack.c.b16 %v2415, %v2411
  %v3016 = vpack.c.b16 %v2416, %v2412
  %v3017 = vpack.c.b16 %v2421, %v2417
  %v3018 = vpack.c.b16 %v2422, %v2418
  %v3019 = vpack.c.b16 %v2423, %v2419
  %v3020 = vpack.c.b16 %v2424, %v2420
  %v3021 = vpack.c.b16 %v2429, %v2425
  %v3022 = vpack.c.b16 %v2430, %v2426
  %v3023 = vpack.c.b16 %v2431, %v2427
  %v3024 = vpack.c.b16 %v2432, %v2428
  %v3025 = vpack.c.b16 %v2437, %v2433
  %v3026 = vpack.c.b16 %v2438, %v2434
  %v3027 = vpack.c.b16 %v2439, %v2435
  %v3028 = vpack.c.b16 %v2440, %v2436
  %v3029 = vpack.c.b16 %v2445, %v2441
  %v3030 = vpack.c.b16 %v2446, %v2442
  %v3031 = vpack.c.b16 %v2447, %v2443
  %v3032 = vpack.c.b16 %v2448, %v2444
  %v3033 = vpack.c.b16 %v2453, %v2449
  %v3034 = vpack.c.b16 %v2454, %v2450
  %v3035 = vpack.c.b16 %v2455, %v2451
  %v3036 = vpack.c.b16 %v2456, %v2452
  %v3037 = vpack.c.b16 %v2461, %v2457
  %v3038 = vpack.c.b16 %v2462, %v2458
  %v3039 = vpack.c.b16 %v2463, %v2459
  %v3040 = vpack.c.b16 %v2464, %v2460
  %3617 = vmatprep.subr.bf16.mxu0 %v2466
  %3618 = vmatpush1.bf16.msra.mxu0 %v2465
  %3619 = vmatprep.subr.bf16.mxu0 %v2470
  %3620 = vmatpush1.bf16.msra.mxu0 %v2469
  %3621 = vmatprep.subr.bf16.mxu0 %v2474
  %3622 = vmatpush1.bf16.msra.mxu0 %v2473
  %3623 = vmatprep.subr.bf16.mxu0 %v2478
  %3624 = vmatpush1.bf16.msra.mxu0 %v2477
  %3625 = vmatprep.subr.bf16.mxu0 %v2482
  %3626 = vmatpush1.bf16.msra.mxu0 %v2481
  %3627 = vmatprep.subr.bf16.mxu0 %v2486
  %3628 = vmatpush1.bf16.msra.mxu0 %v2485
  %3629 = vmatprep.subr.bf16.mxu0 %v2490
  %3630 = vmatpush1.bf16.msra.mxu0 %v2489
  %3631 = vmatprep.subr.bf16.mxu0 %v2494
  %3632 = vmatpush1.bf16.msra.mxu0 %v2493
  %3633 = vmatprep.subr.bf16.mxu0 %v2498
  %3634 = vmatpush1.bf16.msra.mxu0 %v2497
  %3635 = vmatprep.subr.bf16.mxu0 %v2502
  %3636 = vmatpush1.bf16.msra.mxu0 %v2501
  %3637 = vmatprep.subr.bf16.mxu0 %v2506
  %3638 = vmatpush1.bf16.msra.mxu0 %v2505
  %3639 = vmatprep.subr.bf16.mxu0 %v2510
  %3640 = vmatpush1.bf16.msra.mxu0 %v2509
  %3641 = vmatprep.subr.bf16.mxu0 %v2514
  %3642 = vmatpush1.bf16.msra.mxu0 %v2513
  %3643 = vmatprep.subr.bf16.mxu0 %v2518
  %3644 = vmatpush1.bf16.msra.mxu0 %v2517
  %3645 = vmatprep.subr.bf16.mxu0 %v2522
  %3646 = vmatpush1.bf16.msra.mxu0 %v2521
  %3647 = vmatprep.subr.bf16.mxu0 %v2526
  %3648 = vmatpush1.bf16.msra.mxu0 %v2525
  %3649 = vmatprep.mubr.bf16.mxu0 %v636
  %3650 = vmatmul.mubr.bf16.gmra.mrb[0].mxu0 %v622
  %v3651 = vpop.f32.mrb[0].mxu0
  %v3652 = vadd.f32 0.0, %v3651
  %v3653 = vpop.f32.mrb[0].mxu0
  %v3654 = vadd.f32 0.0, %v3653
  %v3655 = vpop.f32.mrb[0].mxu0
  %v3656 = vpop.f32.mrb[0].mxu0
  %3657 = vdwg.mxu0
  %3658 = vmatprep.subr.bf16.mxu0 %v2530
  %3659 = vmatpush1.bf16.msra.mxu0 %v2529
  %3660 = vmatprep.subr.bf16.mxu0 %v2534
  %3661 = vmatpush1.bf16.msra.mxu0 %v2533
  %3662 = vmatprep.subr.bf16.mxu0 %v2538
  %3663 = vmatpush1.bf16.msra.mxu0 %v2537
  %3664 = vmatprep.subr.bf16.mxu0 %v2542
  %3665 = vmatpush1.bf16.msra.mxu0 %v2541
  %3666 = vmatprep.subr.bf16.mxu0 %v2546
  %3667 = vmatpush1.bf16.msra.mxu0 %v2545
  %3668 = vmatprep.subr.bf16.mxu0 %v2550
  %3669 = vmatpush1.bf16.msra.mxu0 %v2549
  %3670 = vmatprep.subr.bf16.mxu0 %v2554
  %3671 = vmatpush1.bf16.msra.mxu0 %v2553
  %3672 = vmatprep.subr.bf16.mxu0 %v2558
  %3673 = vmatpush1.bf16.msra.mxu0 %v2557
  %3674 = vmatprep.subr.bf16.mxu0 %v2562
  %3675 = vmatpush1.bf16.msra.mxu0 %v2561
  %3676 = vmatprep.subr.bf16.mxu0 %v2566
  %3677 = vmatpush1.bf16.msra.mxu0 %v2565
  %3678 = vmatprep.subr.bf16.mxu0 %v2570
  %3679 = vmatpush1.bf16.msra.mxu0 %v2569
  %3680 = vmatprep.subr.bf16.mxu0 %v2574
  %3681 = vmatpush1.bf16.msra.mxu0 %v2573
  %3682 = vmatprep.subr.bf16.mxu0 %v2578
  %3683 = vmatpush1.bf16.msra.mxu0 %v2577
  %3684 = vmatprep.subr.bf16.mxu0 %v2582
  %3685 = vmatpush1.bf16.msra.mxu0 %v2581
  %3686 = vmatprep.subr.bf16.mxu0 %v2586
  %3687 = vmatpush1.bf16.msra.mxu0 %v2585
  %3688 = vmatprep.subr.bf16.mxu0 %v2590
  %3689 = vmatpush1.bf16.msra.mxu0 %v2589
  %3690 = vmatprep.mubr.bf16.mxu0 %v646
  %3691 = vmatmul.mubr.bf16.gmra.mrb[0].mxu0 %v644
  %v3692 = vpop.f32.mrb[0].mxu0
  %v3693 = vadd.f32 %v3652, %v3692
  %v3694 = vpop.f32.mrb[0].mxu0
  %v3695 = vadd.f32 %v3654, %v3694
  %v3696 = vpop.f32.mrb[0].mxu0
  %v3697 = vpop.f32.mrb[0].mxu0
  %3698 = vdwg.mxu0
  %3699 = vmatprep.subr.bf16.mxu0 %v2594
  %3700 = vmatpush1.bf16.msra.mxu0 %v2593
  %3701 = vmatprep.subr.bf16.mxu0 %v2598
  %3702 = vmatpush1.bf16.msra.mxu0 %v2597
  %3703 = vmatprep.subr.bf16.mxu0 %v2602
  %3704 = vmatpush1.bf16.msra.mxu0 %v2601
  %3705 = vmatprep.subr.bf16.mxu0 %v2606
  %3706 = vmatpush1.bf16.msra.mxu0 %v2605
  %3707 = vmatprep.subr.bf16.mxu0 %v2610
  %3708 = vmatpush1.bf16.msra.mxu0 %v2609
  %3709 = vmatprep.subr.bf16.mxu0 %v2614
  %3710 = vmatpush1.bf16.msra.mxu0 %v2613
  %3711 = vmatprep.subr.bf16.mxu0 %v2618
  %3712 = vmatpush1.bf16.msra.mxu0 %v2617
  %3713 = vmatprep.subr.bf16.mxu0 %v2622
  %3714 = vmatpush1.bf16.msra.mxu0 %v2621
  %3715 = vmatprep.subr.bf16.mxu0 %v2626
  %3716 = vmatpush1.bf16.msra.mxu0 %v2625
  %3717 = vmatprep.subr.bf16.mxu0 %v2630
  %3718 = vmatpush1.bf16.msra.mxu0 %v2629
  %3719 = vmatprep.subr.bf16.mxu0 %v2634
  %3720 = vmatpush1.bf16.msra.mxu0 %v2633
  %3721 = vmatprep.subr.bf16.mxu0 %v2638
  %3722 = vmatpush1.bf16.msra.mxu0 %v2637
  %3723 = vmatprep.subr.bf16.mxu0 %v2642
  %3724 = vmatpush1.bf16.msra.mxu0 %v2641
  %3725 = vmatprep.subr.bf16.mxu0 %v2646
  %3726 = vmatpush1.bf16.msra.mxu0 %v2645
  %3727 = vmatprep.subr.bf16.mxu0 %v2650
  %3728 = vmatpush1.bf16.msra.mxu0 %v2649
  %3729 = vmatprep.subr.bf16.mxu0 %v2654
  %3730 = vmatpush1.bf16.msra.mxu0 %v2653
  %3731 = vmatprep.mubr.bf16.mxu0 %v643
  %3732 = vmatmul.mubr.bf16.gmra.mrb[0].mxu0 %v629
  %v3733 = vpop.f32.mrb[0].mxu0
  %v3734 = vadd.f32 %v3693, %v3733
  %v3735 = vpop.f32.mrb[0].mxu0
  %v3736 = vadd.f32 %v3695, %v3735
  %v3737 = vpop.f32.mrb[0].mxu0
  %v3738 = vpop.f32.mrb[0].mxu0
  %3739 = vdwg.mxu0
  %3740 = vmatprep.subr.bf16.mxu0 %v2658
  %3741 = vmatpush1.bf16.msra.mxu0 %v2657
  %3742 = vmatprep.subr.bf16.mxu0 %v2662
  %3743 = vmatpush1.bf16.msra.mxu0 %v2661
  %3744 = vmatprep.subr.bf16.mxu0 %v2666
  %3745 = vmatpush1.bf16.msra.mxu0 %v2665
  %3746 = vmatprep.subr.bf16.mxu0 %v2670
  %3747 = vmatpush1.bf16.msra.mxu0 %v2669
  %3748 = vmatprep.subr.bf16.mxu0 %v2674
  %3749 = vmatpush1.bf16.msra.mxu0 %v2673
  %3750 = vmatprep.subr.bf16.mxu0 %v2678
  %3751 = vmatpush1.bf16.msra.mxu0 %v2677
  %3752 = vmatprep.subr.bf16.mxu0 %v2682
  %3753 = vmatpush1.bf16.msra.mxu0 %v2681
  %3754 = vmatprep.subr.bf16.mxu0 %v2686
  %3755 = vmatpush1.bf16.msra.mxu0 %v2685
  %3756 = vmatprep.subr.bf16.mxu0 %v2690
  %3757 = vmatpush1.bf16.msra.mxu0 %v2689
  %3758 = vmatprep.subr.bf16.mxu0 %v2694
  %3759 = vmatpush1.bf16.msra.mxu0 %v2693
  %3760 = vmatprep.subr.bf16.mxu0 %v2698
  %3761 = vmatpush1.bf16.msra.mxu0 %v2697
  %3762 = vmatprep.subr.bf16.mxu0 %v2702
  %3763 = vmatpush1.bf16.msra.mxu0 %v2701
  %3764 = vmatprep.subr.bf16.mxu0 %v2706
  %3765 = vmatpush1.bf16.msra.mxu0 %v2705
  %3766 = vmatprep.subr.bf16.mxu0 %v2710
  %3767 = vmatpush1.bf16.msra.mxu0 %v2709
  %3768 = vmatprep.subr.bf16.mxu0 %v2714
  %3769 = vmatpush1.bf16.msra.mxu0 %v2713
  %3770 = vmatprep.subr.bf16.mxu0 %v2718
  %3771 = vmatpush1.bf16.msra.mxu0 %v2717
  %3772 = vmatprep.mubr.bf16.mxu0 %v647
  %3773 = vmatmul.mubr.bf16.gmra.mrb[0].mxu0 %v645
  %v3774 = vpop.f32.mrb[0].mxu0
  %v3775 = vadd.f32 %v3734, %v3774
  %v3776 = vpop.f32.mrb[0].mxu0
  %v3777 = vadd.f32 %v3736, %v3776
  %v3778 = vpop.f32.mrb[0].mxu0
  %v3779 = vpop.f32.mrb[0].mxu0
  %3780 = vdwg.mxu0
  %3781 = vmatprep.subr.bf16.mxu0 %v2722
  %3782 = vmatpush1.bf16.msra.mxu0 %v2721
  %3783 = vmatprep.subr.bf16.mxu0 %v2726
  %3784 = vmatpush1.bf16.msra.mxu0 %v2725
  %3785 = vmatprep.subr.bf16.mxu0 %v2730
  %3786 = vmatpush1.bf16.msra.mxu0 %v2729
  %3787 = vmatprep.subr.bf16.mxu0 %v2734
  %3788 = vmatpush1.bf16.msra.mxu0 %v2733
  %3789 = vmatprep.subr.bf16.mxu0 %v2738
  %3790 = vmatpush1.bf16.msra.mxu0 %v2737
  %3791 = vmatprep.subr.bf16.mxu0 %v2742
  %3792 = vmatpush1.bf16.msra.mxu0 %v2741
  %3793 = vmatprep.subr.bf16.mxu0 %v2746
  %3794 = vmatpush1.bf16.msra.mxu0 %v2745
  %3795 = vmatprep.subr.bf16.mxu0 %v2750
  %3796 = vmatpush1.bf16.msra.mxu0 %v2749
  %3797 = vmatprep.subr.bf16.mxu0 %v2754
  %3798 = vmatpush1.bf16.msra.mxu0 %v2753
  %3799 = vmatprep.subr.bf16.mxu0 %v2758
  %3800 = vmatpush1.bf16.msra.mxu0 %v2757
  %3801 = vmatprep.subr.bf16.mxu0 %v2762
  %3802 = vmatpush1.bf16.msra.mxu0 %v2761
  %3803 = vmatprep.subr.bf16.mxu0 %v2766
  %3804 = vmatpush1.bf16.msra.mxu0 %v2765
  %3805 = vmatprep.subr.bf16.mxu0 %v2770
  %3806 = vmatpush1.bf16.msra.mxu0 %v2769
  %3807 = vmatprep.subr.bf16.mxu0 %v2774
  %3808 = vmatpush1.bf16.msra.mxu0 %v2773
  %3809 = vmatprep.subr.bf16.mxu0 %v2778
  %3810 = vmatpush1.bf16.msra.mxu0 %v2777
  %3811 = vmatprep.subr.bf16.mxu0 %v2782
  %3812 = vmatpush1.bf16.msra.mxu0 %v2781
  %3813 = vmatprep.mubr.bf16.mxu0 %v685
  %3814 = vmatmul.mubr.bf16.gmra.mrb[0].mxu0 %v671
  %v3815 = vpop.f32.mrb[0].mxu0
  %v3816 = vadd.f32 %v3775, %v3815
  %v3817 = vpop.f32.mrb[0].mxu0
  %v3818 = vadd.f32 %v3777, %v3817
  %v3819 = vpop.f32.mrb[0].mxu0
  %v3820 = vpop.f32.mrb[0].mxu0
  %3821 = vdwg.mxu0
  %3822 = vmatprep.subr.bf16.mxu0 %v2786
  %3823 = vmatpush1.bf16.msra.mxu0 %v2785
  %3824 = vmatprep.subr.bf16.mxu0 %v2790
  %3825 = vmatpush1.bf16.msra.mxu0 %v2789
  %3826 = vmatprep.subr.bf16.mxu0 %v2794
  %3827 = vmatpush1.bf16.msra.mxu0 %v2793
  %3828 = vmatprep.subr.bf16.mxu0 %v2798
  %3829 = vmatpush1.bf16.msra.mxu0 %v2797
  %3830 = vmatprep.subr.bf16.mxu0 %v2802
  %3831 = vmatpush1.bf16.msra.mxu0 %v2801
  %3832 = vmatprep.subr.bf16.mxu0 %v2806
  %3833 = vmatpush1.bf16.msra.mxu0 %v2805
  %3834 = vmatprep.subr.bf16.mxu0 %v2810
  %3835 = vmatpush1.bf16.msra.mxu0 %v2809
  %3836 = vmatprep.subr.bf16.mxu0 %v2814
  %3837 = vmatpush1.bf16.msra.mxu0 %v2813
  %3838 = vmatprep.subr.bf16.mxu0 %v2818
  %3839 = vmatpush1.bf16.msra.mxu0 %v2817
  %3840 = vmatprep.subr.bf16.mxu0 %v2822
  %3841 = vmatpush1.bf16.msra.mxu0 %v2821
  %3842 = vmatprep.subr.bf16.mxu0 %v2826
  %3843 = vmatpush1.bf16.msra.mxu0 %v2825
  %3844 = vmatprep.subr.bf16.mxu0 %v2830
  %3845 = vmatpush1.bf16.msra.mxu0 %v2829
  %3846 = vmatprep.subr.bf16.mxu0 %v2834
  %3847 = vmatpush1.bf16.msra.mxu0 %v2833
  %3848 = vmatprep.subr.bf16.mxu0 %v2838
  %3849 = vmatpush1.bf16.msra.mxu0 %v2837
  %3850 = vmatprep.subr.bf16.mxu0 %v2842
  %3851 = vmatpush1.bf16.msra.mxu0 %v2841
  %3852 = vmatprep.subr.bf16.mxu0 %v2846
  %3853 = vmatpush1.bf16.msra.mxu0 %v2845
  %3854 = vmatprep.mubr.bf16.mxu0 %v695
  %3855 = vmatmul.mubr.bf16.gmra.mrb[0].mxu0 %v693
  %v3856 = vpop.f32.mrb[0].mxu0
  %v3857 = vadd.f32 %v3816, %v3856
  %v3858 = vpop.f32.mrb[0].mxu0
  %v3859 = vadd.f32 %v3818, %v3858
  %v3860 = vpop.f32.mrb[0].mxu0
  %v3861 = vpop.f32.mrb[0].mxu0
  %3862 = vdwg.mxu0
  %3863 = vmatprep.subr.bf16.mxu0 %v2850
  %3864 = vmatpush1.bf16.msra.mxu0 %v2849
  %3865 = vmatprep.subr.bf16.mxu0 %v2854
  %3866 = vmatpush1.bf16.msra.mxu0 %v2853
  %3867 = vmatprep.subr.bf16.mxu0 %v2858
  %3868 = vmatpush1.bf16.msra.mxu0 %v2857
  %3869 = vmatprep.subr.bf16.mxu0 %v2862
  %3870 = vmatpush1.bf16.msra.mxu0 %v2861
  %3871 = vmatprep.subr.bf16.mxu0 %v2866
  %3872 = vmatpush1.bf16.msra.mxu0 %v2865
  %3873 = vmatprep.subr.bf16.mxu0 %v2870
  %3874 = vmatpush1.bf16.msra.mxu0 %v2869
  %3875 = vmatprep.subr.bf16.mxu0 %v2874
  %3876 = vmatpush1.bf16.msra.mxu0 %v2873
  %3877 = vmatprep.subr.bf16.mxu0 %v2878
  %3878 = vmatpush1.bf16.msra.mxu0 %v2877
  %3879 = vmatprep.subr.bf16.mxu0 %v2882
  %3880 = vmatpush1.bf16.msra.mxu0 %v2881
  %3881 = vmatprep.subr.bf16.mxu0 %v2886
  %3882 = vmatpush1.bf16.msra.mxu0 %v2885
  %3883 = vmatprep.subr.bf16.mxu0 %v2890
  %3884 = vmatpush1.bf16.msra.mxu0 %v2889
  %3885 = vmatprep.subr.bf16.mxu0 %v2894
  %3886 = vmatpush1.bf16.msra.mxu0 %v2893
  %3887 = vmatprep.subr.bf16.mxu0 %v2898
  %3888 = vmatpush1.bf16.msra.mxu0 %v2897
  %3889 = vmatprep.subr.bf16.mxu0 %v2902
  %3890 = vmatpush1.bf16.msra.mxu0 %v2901
  %3891 = vmatprep.subr.bf16.mxu0 %v2906
  %3892 = vmatpush1.bf16.msra.mxu0 %v2905
  %3893 = vmatprep.subr.bf16.mxu0 %v2910
  %3894 = vmatpush1.bf16.msra.mxu0 %v2909
  %3895 = vmatprep.mubr.bf16.mxu0 %v692
  %3896 = vmatmul.mubr.bf16.gmra.mrb[0].mxu0 %v678
  %v3897 = vpop.f32.mrb[0].mxu0
  %v3898 = vadd.f32 %v3857, %v3897
  %v3899 = vpop.f32.mrb[0].mxu0
  %v3900 = vadd.f32 %v3859, %v3899
  %v3901 = vpop.f32.mrb[0].mxu0
  %v3902 = vpop.f32.mrb[0].mxu0
  %3903 = vdwg.mxu0
  %3904 = vmatprep.subr.bf16.mxu0 %v2914
  %3905 = vmatpush1.bf16.msra.mxu0 %v2913
  %3906 = vmatprep.subr.bf16.mxu0 %v2918
  %3907 = vmatpush1.bf16.msra.mxu0 %v2917
  %3908 = vmatprep.subr.bf16.mxu0 %v2922
  %3909 = vmatpush1.bf16.msra.mxu0 %v2921
  %3910 = vmatprep.subr.bf16.mxu0 %v2926
  %3911 = vmatpush1.bf16.msra.mxu0 %v2925
  %3912 = vmatprep.subr.bf16.mxu0 %v2930
  %3913 = vmatpush1.bf16.msra.mxu0 %v2929
  %3914 = vmatprep.subr.bf16.mxu0 %v2934
  %3915 = vmatpush1.bf16.msra.mxu0 %v2933
  %3916 = vmatprep.subr.bf16.mxu0 %v2938
  %3917 = vmatpush1.bf16.msra.mxu0 %v2937
  %3918 = vmatprep.subr.bf16.mxu0 %v2942
  %3919 = vmatpush1.bf16.msra.mxu0 %v2941
  %3920 = vmatprep.subr.bf16.mxu0 %v2946
  %3921 = vmatpush1.bf16.msra.mxu0 %v2945
  %3922 = vmatprep.subr.bf16.mxu0 %v2950
  %3923 = vmatpush1.bf16.msra.mxu0 %v2949
  %3924 = vmatprep.subr.bf16.mxu0 %v2954
  %3925 = vmatpush1.bf16.msra.mxu0 %v2953
  %3926 = vmatprep.subr.bf16.mxu0 %v2958
  %3927 = vmatpush1.bf16.msra.mxu0 %v2957
  %3928 = vmatprep.subr.bf16.mxu0 %v2962
  %3929 = vmatpush1.bf16.msra.mxu0 %v2961
  %3930 = vmatprep.subr.bf16.mxu0 %v2966
  %3931 = vmatpush1.bf16.msra.mxu0 %v2965
  %3932 = vmatprep.subr.bf16.mxu0 %v2970
  %3933 = vmatpush1.bf16.msra.mxu0 %v2969
  %3934 = vmatprep.subr.bf16.mxu0 %v2974
  %3935 = vmatpush1.bf16.msra.mxu0 %v2973
  %3936 = vmatprep.mubr.bf16.mxu0 %v696
  %3937 = vmatmul.mubr.bf16.gmra.mrb[0].mxu0 %v694
  %v3938 = vpop.f32.mrb[0].mxu0
  %v3939 = vadd.f32 %v3898, %v3938
  %v3940 = vpop.f32.mrb[0].mxu0
  %v3941 = vadd.f32 %v3900, %v3940
  %v3942 = vpop.f32.mrb[0].mxu0
  %v3943 = vpop.f32.mrb[0].mxu0
  %3944 = vdwg.mxu0
  %3945 = vmatprep.subr.bf16.mxu0 %v2978
  %3946 = vmatpush1.bf16.msra.mxu0 %v2977
  %3947 = vmatprep.subr.bf16.mxu0 %v2982
  %3948 = vmatpush1.bf16.msra.mxu0 %v2981
  %3949 = vmatprep.subr.bf16.mxu0 %v2986
  %3950 = vmatpush1.bf16.msra.mxu0 %v2985
  %3951 = vmatprep.subr.bf16.mxu0 %v2990
  %3952 = vmatpush1.bf16.msra.mxu0 %v2989
  %3953 = vmatprep.subr.bf16.mxu0 %v2994
  %3954 = vmatpush1.bf16.msra.mxu0 %v2993
  %3955 = vmatprep.subr.bf16.mxu0 %v2998
  %3956 = vmatpush1.bf16.msra.mxu0 %v2997
  %3957 = vmatprep.subr.bf16.mxu0 %v3002
  %3958 = vmatpush1.bf16.msra.mxu0 %v3001
  %3959 = vmatprep.subr.bf16.mxu0 %v3006
  %3960 = vmatpush1.bf16.msra.mxu0 %v3005
  %3961 = vmatprep.subr.bf16.mxu0 %v3010
  %3962 = vmatpush1.bf16.msra.mxu0 %v3009
  %3963 = vmatprep.subr.bf16.mxu0 %v3014
  %3964 = vmatpush1.bf16.msra.mxu0 %v3013
  %3965 = vmatprep.subr.bf16.mxu0 %v3018
  %3966 = vmatpush1.bf16.msra.mxu0 %v3017
  %3967 = vmatprep.subr.bf16.mxu0 %v3022
  %3968 = vmatpush1.bf16.msra.mxu0 %v3021
  %3969 = vmatprep.subr.bf16.mxu0 %v3026
  %3970 = vmatpush1.bf16.msra.mxu0 %v3025
  %3971 = vmatprep.subr.bf16.mxu0 %v3030
  %3972 = vmatpush1.bf16.msra.mxu0 %v3029
  %3973 = vmatprep.subr.bf16.mxu0 %v3034
  %3974 = vmatpush1.bf16.msra.mxu0 %v3033
  %3975 = vmatprep.subr.bf16.mxu0 %v3038
  %3976 = vmatpush1.bf16.msra.mxu0 %v3037
  %3977 = vmatprep.mubr.bf16.mxu0 %v718
  %3978 = vmatmul.mubr.bf16.gmra.mrb[0].mxu0 %v711
  %v3979 = vpop.f32.mrb[0].mxu0
  %v3980 = vadd.f32 %v3939, %v3979
  %v3981 = vpop.f32.mrb[0].mxu0
  %v3982 = vadd.f32 %v3941, %v3981
  %v3983 = vpop.f32.mrb[0].mxu0
  %v3984 = vpop.f32.mrb[0].mxu0
  %3985 = vdwg.mxu0
  %3986 = vmatprep.subr.bf16.mxu0 %v2468
  %3987 = vmatpush1.bf16.msra.mxu0 %v2467
  %3988 = vmatprep.subr.bf16.mxu0 %v2472
  %3989 = vmatpush1.bf16.msra.mxu0 %v2471
  %3990 = vmatprep.subr.bf16.mxu0 %v2476
  %3991 = vmatpush1.bf16.msra.mxu0 %v2475
  %3992 = vmatprep.subr.bf16.mxu0 %v2480
  %3993 = vmatpush1.bf16.msra.mxu0 %v2479
  %3994 = vmatprep.subr.bf16.mxu0 %v2484
  %3995 = vmatpush1.bf16.msra.mxu0 %v2483
  %3996 = vmatprep.subr.bf16.mxu0 %v2488
  %3997 = vmatpush1.bf16.msra.mxu0 %v2487
  %3998 = vmatprep.subr.bf16.mxu0 %v2492
  %3999 = vmatpush1.bf16.msra.mxu0 %v2491
  %4000 = vmatprep.subr.bf16.mxu0 %v2496
  %4001 = vmatpush1.bf16.msra.mxu0 %v2495
  %4002 = vmatprep.subr.bf16.mxu0 %v2500
  %4003 = vmatpush1.bf16.msra.mxu0 %v2499
  %4004 = vmatprep.subr.bf16.mxu0 %v2504
  %4005 = vmatpush1.bf16.msra.mxu0 %v2503
  %4006 = vmatprep.subr.bf16.mxu0 %v2508
  %4007 = vmatpush1.bf16.msra.mxu0 %v2507
  %4008 = vmatprep.subr.bf16.mxu0 %v2512
  %4009 = vmatpush1.bf16.msra.mxu0 %v2511
  %4010 = vmatprep.subr.bf16.mxu0 %v2516
  %4011 = vmatpush1.bf16.msra.mxu0 %v2515
  %4012 = vmatprep.subr.bf16.mxu0 %v2520
  %4013 = vmatpush1.bf16.msra.mxu0 %v2519
  %4014 = vmatprep.subr.bf16.mxu0 %v2524
  %4015 = vmatpush1.bf16.msra.mxu0 %v2523
  %4016 = vmatprep.subr.bf16.mxu0 %v2528
  %4017 = vmatpush1.bf16.msra.mxu0 %v2527
  %4018 = vmatprep.mubr.bf16.mxu0 %v636
  %4019 = vmatmul.mubr.bf16.gmra.mrb[0].mxu0 %v622
  %v4020 = vpop.f32.mrb[0].mxu0
  %v4021 = vadd.f32 0.0, %v4020
  %v4022 = vpop.f32.mrb[0].mxu0
  %v4023 = vadd.f32 0.0, %v4022
  %v4024 = vpop.f32.mrb[0].mxu0
  %v4025 = vpop.f32.mrb[0].mxu0
  %4026 = vdwg.mxu0
  %4027 = vmatprep.subr.bf16.mxu0 %v2532
  %4028 = vmatpush1.bf16.msra.mxu0 %v2531
  %4029 = vmatprep.subr.bf16.mxu0 %v2536
  %4030 = vmatpush1.bf16.msra.mxu0 %v2535
  %4031 = vmatprep.subr.bf16.mxu0 %v2540
  %4032 = vmatpush1.bf16.msra.mxu0 %v2539
  %4033 = vmatprep.subr.bf16.mxu0 %v2544
  %4034 = vmatpush1.bf16.msra.mxu0 %v2543
  %4035 = vmatprep.subr.bf16.mxu0 %v2548
  %4036 = vmatpush1.bf16.msra.mxu0 %v2547
  %4037 = vmatprep.subr.bf16.mxu0 %v2552
  %4038 = vmatpush1.bf16.msra.mxu0 %v2551
  %4039 = vmatprep.subr.bf16.mxu0 %v2556
  %4040 = vmatpush1.bf16.msra.mxu0 %v2555
  %4041 = vmatprep.subr.bf16.mxu0 %v2560
  %4042 = vmatpush1.bf16.msra.mxu0 %v2559
  %4043 = vmatprep.subr.bf16.mxu0 %v2564
  %4044 = vmatpush1.bf16.msra.mxu0 %v2563
  %4045 = vmatprep.subr.bf16.mxu0 %v2568
  %4046 = vmatpush1.bf16.msra.mxu0 %v2567
  %4047 = vmatprep.subr.bf16.mxu0 %v2572
  %4048 = vmatpush1.bf16.msra.mxu0 %v2571
  %4049 = vmatprep.subr.bf16.mxu0 %v2576
  %4050 = vmatpush1.bf16.msra.mxu0 %v2575
  %4051 = vmatprep.subr.bf16.mxu0 %v2580
  %4052 = vmatpush1.bf16.msra.mxu0 %v2579
  %4053 = vmatprep.subr.bf16.mxu0 %v2584
  %4054 = vmatpush1.bf16.msra.mxu0 %v2583
  %4055 = vmatprep.subr.bf16.mxu0 %v2588
  %4056 = vmatpush1.bf16.msra.mxu0 %v2587
  %4057 = vmatprep.subr.bf16.mxu0 %v2592
  %4058 = vmatpush1.bf16.msra.mxu0 %v2591
  %4059 = vmatprep.mubr.bf16.mxu0 %v646
  %4060 = vmatmul.mubr.bf16.gmra.mrb[0].mxu0 %v644
  %v4061 = vpop.f32.mrb[0].mxu0
  %v4062 = vadd.f32 %v4021, %v4061
  %v4063 = vpop.f32.mrb[0].mxu0
  %v4064 = vadd.f32 %v4023, %v4063
  %v4065 = vpop.f32.mrb[0].mxu0
  %v4066 = vpop.f32.mrb[0].mxu0
  %4067 = vdwg.mxu0
  %4068 = vmatprep.subr.bf16.mxu0 %v2596
  %4069 = vmatpush1.bf16.msra.mxu0 %v2595
  %4070 = vmatprep.subr.bf16.mxu0 %v2600
  %4071 = vmatpush1.bf16.msra.mxu0 %v2599
  %4072 = vmatprep.subr.bf16.mxu0 %v2604
  %4073 = vmatpush1.bf16.msra.mxu0 %v2603
  %4074 = vmatprep.subr.bf16.mxu0 %v2608
  %4075 = vmatpush1.bf16.msra.mxu0 %v2607
  %4076 = vmatprep.subr.bf16.mxu0 %v2612
  %4077 = vmatpush1.bf16.msra.mxu0 %v2611
  %4078 = vmatprep.subr.bf16.mxu0 %v2616
  %4079 = vmatpush1.bf16.msra.mxu0 %v2615
  %4080 = vmatprep.subr.bf16.mxu0 %v2620
  %4081 = vmatpush1.bf16.msra.mxu0 %v2619
  %4082 = vmatprep.subr.bf16.mxu0 %v2624
  %4083 = vmatpush1.bf16.msra.mxu0 %v2623
  %4084 = vmatprep.subr.bf16.mxu0 %v2628
  %4085 = vmatpush1.bf16.msra.mxu0 %v2627
  %4086 = vmatprep.subr.bf16.mxu0 %v2632
  %4087 = vmatpush1.bf16.msra.mxu0 %v2631
  %4088 = vmatprep.subr.bf16.mxu0 %v2636
  %4089 = vmatpush1.bf16.msra.mxu0 %v2635
  %4090 = vmatprep.subr.bf16.mxu0 %v2640
  %4091 = vmatpush1.bf16.msra.mxu0 %v2639
  %4092 = vmatprep.subr.bf16.mxu0 %v2644
  %4093 = vmatpush1.bf16.msra.mxu0 %v2643
  %4094 = vmatprep.subr.bf16.mxu0 %v2648
  %4095 = vmatpush1.bf16.msra.mxu0 %v2647
  %4096 = vmatprep.subr.bf16.mxu0 %v2652
  %4097 = vmatpush1.bf16.msra.mxu0 %v2651
  %4098 = vmatprep.subr.bf16.mxu0 %v2656
  %4099 = vmatpush1.bf16.msra.mxu0 %v2655
  %4100 = vmatprep.mubr.bf16.mxu0 %v643
  %4101 = vmatmul.mubr.bf16.gmra.mrb[0].mxu0 %v629
  %v4102 = vpop.f32.mrb[0].mxu0
  %v4103 = vadd.f32 %v4062, %v4102
  %v4104 = vpop.f32.mrb[0].mxu0
  %v4105 = vadd.f32 %v4064, %v4104
  %v4106 = vpop.f32.mrb[0].mxu0
  %v4107 = vpop.f32.mrb[0].mxu0
  %4108 = vdwg.mxu0
  %4109 = vmatprep.subr.bf16.mxu0 %v2660
  %4110 = vmatpush1.bf16.msra.mxu0 %v2659
  %4111 = vmatprep.subr.bf16.mxu0 %v2664
  %4112 = vmatpush1.bf16.msra.mxu0 %v2663
  %4113 = vmatprep.subr.bf16.mxu0 %v2668
  %4114 = vmatpush1.bf16.msra.mxu0 %v2667
  %4115 = vmatprep.subr.bf16.mxu0 %v2672
  %4116 = vmatpush1.bf16.msra.mxu0 %v2671
  %4117 = vmatprep.subr.bf16.mxu0 %v2676
  %4118 = vmatpush1.bf16.msra.mxu0 %v2675
  %4119 = vmatprep.subr.bf16.mxu0 %v2680
  %4120 = vmatpush1.bf16.msra.mxu0 %v2679
  %4121 = vmatprep.subr.bf16.mxu0 %v2684
  %4122 = vmatpush1.bf16.msra.mxu0 %v2683
  %4123 = vmatprep.subr.bf16.mxu0 %v2688
  %4124 = vmatpush1.bf16.msra.mxu0 %v2687
  %4125 = vmatprep.subr.bf16.mxu0 %v2692
  %4126 = vmatpush1.bf16.msra.mxu0 %v2691
  %4127 = vmatprep.subr.bf16.mxu0 %v2696
  %4128 = vmatpush1.bf16.msra.mxu0 %v2695
  %4129 = vmatprep.subr.bf16.mxu0 %v2700
  %4130 = vmatpush1.bf16.msra.mxu0 %v2699
  %4131 = vmatprep.subr.bf16.mxu0 %v2704
  %4132 = vmatpush1.bf16.msra.mxu0 %v2703
  %4133 = vmatprep.subr.bf16.mxu0 %v2708
  %4134 = vmatpush1.bf16.msra.mxu0 %v2707
  %4135 = vmatprep.subr.bf16.mxu0 %v2712
  %4136 = vmatpush1.bf16.msra.mxu0 %v2711
  %4137 = vmatprep.subr.bf16.mxu0 %v2716
  %4138 = vmatpush1.bf16.msra.mxu0 %v2715
  %4139 = vmatprep.subr.bf16.mxu0 %v2720
  %4140 = vmatpush1.bf16.msra.mxu0 %v2719
  %4141 = vmatprep.mubr.bf16.mxu0 %v647
  %4142 = vmatmul.mubr.bf16.gmra.mrb[0].mxu0 %v645
  %v4143 = vpop.f32.mrb[0].mxu0
  %v4144 = vadd.f32 %v4103, %v4143
  %v4145 = vpop.f32.mrb[0].mxu0
  %v4146 = vadd.f32 %v4105, %v4145
  %v4147 = vpop.f32.mrb[0].mxu0
  %v4148 = vpop.f32.mrb[0].mxu0
  %4149 = vdwg.mxu0
  %4150 = vmatprep.subr.bf16.mxu0 %v2724
  %4151 = vmatpush1.bf16.msra.mxu0 %v2723
  %4152 = vmatprep.subr.bf16.mxu0 %v2728
  %4153 = vmatpush1.bf16.msra.mxu0 %v2727
  %4154 = vmatprep.subr.bf16.mxu0 %v2732
  %4155 = vmatpush1.bf16.msra.mxu0 %v2731
  %4156 = vmatprep.subr.bf16.mxu0 %v2736
  %4157 = vmatpush1.bf16.msra.mxu0 %v2735
  %4158 = vmatprep.subr.bf16.mxu0 %v2740
  %4159 = vmatpush1.bf16.msra.mxu0 %v2739
  %4160 = vmatprep.subr.bf16.mxu0 %v2744
  %4161 = vmatpush1.bf16.msra.mxu0 %v2743
  %4162 = vmatprep.subr.bf16.mxu0 %v2748
  %4163 = vmatpush1.bf16.msra.mxu0 %v2747
  %4164 = vmatprep.subr.bf16.mxu0 %v2752
  %4165 = vmatpush1.bf16.msra.mxu0 %v2751
  %4166 = vmatprep.subr.bf16.mxu0 %v2756
  %4167 = vmatpush1.bf16.msra.mxu0 %v2755
  %4168 = vmatprep.subr.bf16.mxu0 %v2760
  %4169 = vmatpush1.bf16.msra.mxu0 %v2759
  %4170 = vmatprep.subr.bf16.mxu0 %v2764
  %4171 = vmatpush1.bf16.msra.mxu0 %v2763
  %4172 = vmatprep.subr.bf16.mxu0 %v2768
  %4173 = vmatpush1.bf16.msra.mxu0 %v2767
  %4174 = vmatprep.subr.bf16.mxu0 %v2772
  %4175 = vmatpush1.bf16.msra.mxu0 %v2771
  %4176 = vmatprep.subr.bf16.mxu0 %v2776
  %4177 = vmatpush1.bf16.msra.mxu0 %v2775
  %4178 = vmatprep.subr.bf16.mxu0 %v2780
  %4179 = vmatpush1.bf16.msra.mxu0 %v2779
  %4180 = vmatprep.subr.bf16.mxu0 %v2784
  %4181 = vmatpush1.bf16.msra.mxu0 %v2783
  %4182 = vmatprep.mubr.bf16.mxu0 %v685
  %4183 = vmatmul.mubr.bf16.gmra.mrb[0].mxu0 %v671
  %v4184 = vpop.f32.mrb[0].mxu0
  %v4185 = vadd.f32 %v4144, %v4184
  %v4186 = vpop.f32.mrb[0].mxu0
  %v4187 = vadd.f32 %v4146, %v4186
  %v4188 = vpop.f32.mrb[0].mxu0
  %v4189 = vpop.f32.mrb[0].mxu0
  %4190 = vdwg.mxu0
  %4191 = vmatprep.subr.bf16.mxu0 %v2788
  %4192 = vmatpush1.bf16.msra.mxu0 %v2787
  %4193 = vmatprep.subr.bf16.mxu0 %v2792
  %4194 = vmatpush1.bf16.msra.mxu0 %v2791
  %4195 = vmatprep.subr.bf16.mxu0 %v2796
  %4196 = vmatpush1.bf16.msra.mxu0 %v2795
  %4197 = vmatprep.subr.bf16.mxu0 %v2800
  %4198 = vmatpush1.bf16.msra.mxu0 %v2799
  %4199 = vmatprep.subr.bf16.mxu0 %v2804
  %4200 = vmatpush1.bf16.msra.mxu0 %v2803
  %4201 = vmatprep.subr.bf16.mxu0 %v2808
  %4202 = vmatpush1.bf16.msra.mxu0 %v2807
  %4203 = vmatprep.subr.bf16.mxu0 %v2812
  %4204 = vmatpush1.bf16.msra.mxu0 %v2811
  %4205 = vmatprep.subr.bf16.mxu0 %v2816
  %4206 = vmatpush1.bf16.msra.mxu0 %v2815
  %4207 = vmatprep.subr.bf16.mxu0 %v2820
  %4208 = vmatpush1.bf16.msra.mxu0 %v2819
  %4209 = vmatprep.subr.bf16.mxu0 %v2824
  %4210 = vmatpush1.bf16.msra.mxu0 %v2823
  %4211 = vmatprep.subr.bf16.mxu0 %v2828
  %4212 = vmatpush1.bf16.msra.mxu0 %v2827
  %4213 = vmatprep.subr.bf16.mxu0 %v2832
  %4214 = vmatpush1.bf16.msra.mxu0 %v2831
  %4215 = vmatprep.subr.bf16.mxu0 %v2836
  %4216 = vmatpush1.bf16.msra.mxu0 %v2835
  %4217 = vmatprep.subr.bf16.mxu0 %v2840
  %4218 = vmatpush1.bf16.msra.mxu0 %v2839
  %4219 = vmatprep.subr.bf16.mxu0 %v2844
  %4220 = vmatpush1.bf16.msra.mxu0 %v2843
  %4221 = vmatprep.subr.bf16.mxu0 %v2848
  %4222 = vmatpush1.bf16.msra.mxu0 %v2847
  %4223 = vmatprep.mubr.bf16.mxu0 %v695
  %4224 = vmatmul.mubr.bf16.gmra.mrb[0].mxu0 %v693
  %v4225 = vpop.f32.mrb[0].mxu0
  %v4226 = vadd.f32 %v4185, %v4225
  %v4227 = vpop.f32.mrb[0].mxu0
  %v4228 = vadd.f32 %v4187, %v4227
  %v4229 = vpop.f32.mrb[0].mxu0
  %v4230 = vpop.f32.mrb[0].mxu0
  %4231 = vdwg.mxu0
  %4232 = vmatprep.subr.bf16.mxu0 %v2852
  %4233 = vmatpush1.bf16.msra.mxu0 %v2851
  %4234 = vmatprep.subr.bf16.mxu0 %v2856
  %4235 = vmatpush1.bf16.msra.mxu0 %v2855
  %4236 = vmatprep.subr.bf16.mxu0 %v2860
  %4237 = vmatpush1.bf16.msra.mxu0 %v2859
  %4238 = vmatprep.subr.bf16.mxu0 %v2864
  %4239 = vmatpush1.bf16.msra.mxu0 %v2863
  %4240 = vmatprep.subr.bf16.mxu0 %v2868
  %4241 = vmatpush1.bf16.msra.mxu0 %v2867
  %4242 = vmatprep.subr.bf16.mxu0 %v2872
  %4243 = vmatpush1.bf16.msra.mxu0 %v2871
  %4244 = vmatprep.subr.bf16.mxu0 %v2876
  %4245 = vmatpush1.bf16.msra.mxu0 %v2875
  %4246 = vmatprep.subr.bf16.mxu0 %v2880
  %4247 = vmatpush1.bf16.msra.mxu0 %v2879
  %4248 = vmatprep.subr.bf16.mxu0 %v2884
  %4249 = vmatpush1.bf16.msra.mxu0 %v2883
  %4250 = vmatprep.subr.bf16.mxu0 %v2888
  %4251 = vmatpush1.bf16.msra.mxu0 %v2887
  %4252 = vmatprep.subr.bf16.mxu0 %v2892
  %4253 = vmatpush1.bf16.msra.mxu0 %v2891
  %4254 = vmatprep.subr.bf16.mxu0 %v2896
  %4255 = vmatpush1.bf16.msra.mxu0 %v2895
  %4256 = vmatprep.subr.bf16.mxu0 %v2900
  %4257 = vmatpush1.bf16.msra.mxu0 %v2899
  %4258 = vmatprep.subr.bf16.mxu0 %v2904
  %4259 = vmatpush1.bf16.msra.mxu0 %v2903
  %4260 = vmatprep.subr.bf16.mxu0 %v2908
  %4261 = vmatpush1.bf16.msra.mxu0 %v2907
  %4262 = vmatprep.subr.bf16.mxu0 %v2912
  %4263 = vmatpush1.bf16.msra.mxu0 %v2911
  %4264 = vmatprep.mubr.bf16.mxu0 %v692
  %4265 = vmatmul.mubr.bf16.gmra.mrb[0].mxu0 %v678
  %v4266 = vpop.f32.mrb[0].mxu0
  %v4267 = vadd.f32 %v4226, %v4266
  %v4268 = vpop.f32.mrb[0].mxu0
  %v4269 = vadd.f32 %v4228, %v4268
  %v4270 = vpop.f32.mrb[0].mxu0
  %v4271 = vpop.f32.mrb[0].mxu0
  %4272 = vdwg.mxu0
  %4273 = vmatprep.subr.bf16.mxu0 %v2916
  %4274 = vmatpush1.bf16.msra.mxu0 %v2915
  %4275 = vmatprep.subr.bf16.mxu0 %v2920
  %4276 = vmatpush1.bf16.msra.mxu0 %v2919
  %4277 = vmatprep.subr.bf16.mxu0 %v2924
  %4278 = vmatpush1.bf16.msra.mxu0 %v2923
  %4279 = vmatprep.subr.bf16.mxu0 %v2928
  %4280 = vmatpush1.bf16.msra.mxu0 %v2927
  %4281 = vmatprep.subr.bf16.mxu0 %v2932
  %4282 = vmatpush1.bf16.msra.mxu0 %v2931
  %4283 = vmatprep.subr.bf16.mxu0 %v2936
  %4284 = vmatpush1.bf16.msra.mxu0 %v2935
  %4285 = vmatprep.subr.bf16.mxu0 %v2940
  %4286 = vmatpush1.bf16.msra.mxu0 %v2939
  %4287 = vmatprep.subr.bf16.mxu0 %v2944
  %4288 = vmatpush1.bf16.msra.mxu0 %v2943
  %4289 = vmatprep.subr.bf16.mxu0 %v2948
  %4290 = vmatpush1.bf16.msra.mxu0 %v2947
  %4291 = vmatprep.subr.bf16.mxu0 %v2952
  %4292 = vmatpush1.bf16.msra.mxu0 %v2951
  %4293 = vmatprep.subr.bf16.mxu0 %v2956
  %4294 = vmatpush1.bf16.msra.mxu0 %v2955
  %4295 = vmatprep.subr.bf16.mxu0 %v2960
  %4296 = vmatpush1.bf16.msra.mxu0 %v2959
  %4297 = vmatprep.subr.bf16.mxu0 %v2964
  %4298 = vmatpush1.bf16.msra.mxu0 %v2963
  %4299 = vmatprep.subr.bf16.mxu0 %v2968
  %4300 = vmatpush1.bf16.msra.mxu0 %v2967
  %4301 = vmatprep.subr.bf16.mxu0 %v2972
  %4302 = vmatpush1.bf16.msra.mxu0 %v2971
  %4303 = vmatprep.subr.bf16.mxu0 %v2976
  %4304 = vmatpush1.bf16.msra.mxu0 %v2975
  %4305 = vmatprep.mubr.bf16.mxu0 %v696
  %4306 = vmatmul.mubr.bf16.gmra.mrb[0].mxu0 %v694
  %v4307 = vpop.f32.mrb[0].mxu0
  %v4308 = vadd.f32 %v4267, %v4307
  %v4309 = vpop.f32.mrb[0].mxu0
  %v4310 = vadd.f32 %v4269, %v4309
  %v4311 = vpop.f32.mrb[0].mxu0
  %v4312 = vpop.f32.mrb[0].mxu0
  %4313 = vdwg.mxu0
  %4314 = vmatprep.subr.bf16.mxu0 %v2980
  %4315 = vmatpush1.bf16.msra.mxu0 %v2979
  %4316 = vmatprep.subr.bf16.mxu0 %v2984
  %4317 = vmatpush1.bf16.msra.mxu0 %v2983
  %4318 = vmatprep.subr.bf16.mxu0 %v2988
  %4319 = vmatpush1.bf16.msra.mxu0 %v2987
  %4320 = vmatprep.subr.bf16.mxu0 %v2992
  %4321 = vmatpush1.bf16.msra.mxu0 %v2991
  %4322 = vmatprep.subr.bf16.mxu0 %v2996
  %4323 = vmatpush1.bf16.msra.mxu0 %v2995
  %4324 = vmatprep.subr.bf16.mxu0 %v3000
  %4325 = vmatpush1.bf16.msra.mxu0 %v2999
  %4326 = vmatprep.subr.bf16.mxu0 %v3004
  %4327 = vmatpush1.bf16.msra.mxu0 %v3003
  %4328 = vmatprep.subr.bf16.mxu0 %v3008
  %4329 = vmatpush1.bf16.msra.mxu0 %v3007
  %4330 = vmatprep.subr.bf16.mxu0 %v3012
  %4331 = vmatpush1.bf16.msra.mxu0 %v3011
  %4332 = vmatprep.subr.bf16.mxu0 %v3016
  %4333 = vmatpush1.bf16.msra.mxu0 %v3015
  %4334 = vmatprep.subr.bf16.mxu0 %v3020
  %4335 = vmatpush1.bf16.msra.mxu0 %v3019
  %4336 = vmatprep.subr.bf16.mxu0 %v3024
  %4337 = vmatpush1.bf16.msra.mxu0 %v3023
  %4338 = vmatprep.subr.bf16.mxu0 %v3028
  %4339 = vmatpush1.bf16.msra.mxu0 %v3027
  %4340 = vmatprep.subr.bf16.mxu0 %v3032
  %4341 = vmatpush1.bf16.msra.mxu0 %v3031
  %4342 = vmatprep.subr.bf16.mxu0 %v3036
  %4343 = vmatpush1.bf16.msra.mxu0 %v3035
  %4344 = vmatprep.subr.bf16.mxu0 %v3040
  %4345 = vmatpush1.bf16.msra.mxu0 %v3039
  %4346 = vmatprep.mubr.bf16.mxu0 %v718
  %4347 = vmatmul.mubr.bf16.gmra.mrb[0].mxu0 %v711
  %v4348 = vpop.f32.mrb[0].mxu0
  %v4349 = vadd.f32 %v4308, %v4348
  %v4350 = vpop.f32.mrb[0].mxu0
  %v4351 = vadd.f32 %v4310, %v4350
  %v4352 = vpop.f32.mrb[0].mxu0
  %v4353 = vpop.f32.mrb[0].mxu0
  %4354 = vdwg.mxu0
  %vm4355 = vcmask 1041408
  %v4356 = vsel %vm4355, %v3980, 0.0
  %v4357 = vrot.slane %v4356, 4
  %v4358 = vadd.f32 %v4356, %v4357
  %v4359 = vrot.slane %v4358, 2
  %v4360 = vadd.f32 %v4358, %v4359
  %v4361 = vrot.slane %v4360, 1
  %v4362 = vadd.f32 %v4360, %v4361
  %v4363 = vsel %vm4355, %v3982, 0.0
  %v4364 = vrot.slane %v4363, 4
  %v4365 = vadd.f32 %v4363, %v4364
  %v4366 = vrot.slane %v4365, 2
  %v4367 = vadd.f32 %v4365, %v4366
  %v4368 = vrot.slane %v4367, 1
  %v4369 = vadd.f32 %v4367, %v4368
  %v4370 = vsel %vm4355, %v4349, 0.0
  %v4371 = vrot.slane %v4370, 4
  %v4372 = vadd.f32 %v4370, %v4371
  %v4373 = vrot.slane %v4372, 2
  %v4374 = vadd.f32 %v4372, %v4373
  %v4375 = vrot.slane %v4374, 1
  %v4376 = vadd.f32 %v4374, %v4375
  %v4377 = vsel %vm4355, %v4351, 0.0
  %v4378 = vrot.slane %v4377, 4
  %v4379 = vadd.f32 %v4377, %v4378
  %v4380 = vrot.slane %v4379, 2
  %v4381 = vadd.f32 %v4379, %v4380
  %v4382 = vrot.slane %v4381, 1
  %v4383 = vadd.f32 %v4381, %v4382
  %v4384 = vmul.f32 %v4362, 0.5
  %v4385 = vmul.f32 %v4369, 0.5
  %v4386 = vmul.f32 %v4376, 0.5
  %v4387 = vmul.f32 %v4383, 0.5
  %v4388 = vsub.f32 %v3980, %v4384
  %v4389 = vsub.f32 %v3982, %v4385
  %v4390 = vsub.f32 %v4349, %v4386
  %v4391 = vsub.f32 %v4351, %v4387
  %v4392 = vmul.f32 %v4388, %v4388
  %v4393 = vmul.f32 %v4389, %v4389
  %v4394 = vmul.f32 %v4390, %v4390
  %v4395 = vmul.f32 %v4391, %v4391
  %v4396 = vsel %vm4355, %v4392, 0.0
  %v4397 = vrot.slane %v4396, 4
  %v4398 = vadd.f32 %v4396, %v4397
  %v4399 = vrot.slane %v4398, 2
  %v4400 = vadd.f32 %v4398, %v4399
  %v4401 = vrot.slane %v4400, 1
  %v4402 = vadd.f32 %v4400, %v4401
  %v4403 = vsel %vm4355, %v4393, 0.0
  %v4404 = vrot.slane %v4403, 4
  %v4405 = vadd.f32 %v4403, %v4404
  %v4406 = vrot.slane %v4405, 2
  %v4407 = vadd.f32 %v4405, %v4406
  %v4408 = vrot.slane %v4407, 1
  %v4409 = vadd.f32 %v4407, %v4408
  %v4410 = vsel %vm4355, %v4394, 0.0
  %v4411 = vrot.slane %v4410, 4
  %v4412 = vadd.f32 %v4410, %v4411
  %v4413 = vrot.slane %v4412, 2
  %v4414 = vadd.f32 %v4412, %v4413
  %v4415 = vrot.slane %v4414, 1
  %v4416 = vadd.f32 %v4414, %v4415
  %v4417 = vsel %vm4355, %v4395, 0.0
  %v4418 = vrot.slane %v4417, 4
  %v4419 = vadd.f32 %v4417, %v4418
  %v4420 = vrot.slane %v4419, 2
  %v4421 = vadd.f32 %v4419, %v4420
  %v4422 = vrot.slane %v4421, 1
  %v4423 = vadd.f32 %v4421, %v4422
  %v4424 = vmul.f32 %v4402, 0.5
  %v4425 = vmul.f32 %v4409, 0.5
  %v4426 = vmul.f32 %v4416, 0.5
  %v4427 = vmul.f32 %v4423, 0.5
  %v4428 = vadd.f32 %v4424, 1e-05
  %v4429 = vadd.f32 %v4425, 1e-05
  %v4430 = vadd.f32 %v4426, 1e-05
  %v4431 = vadd.f32 %v4427, 1e-05
  %v4432 = vrsqrt.pop %v4428
  %v4433 = vrsqrt.pop %v4429
  %v4434 = vrsqrt.pop %v4430
  %v4435 = vrsqrt.pop %v4431
  %v4436 = vmul.f32 %v4388, %v4432
  %v4437 = vmul.f32 %v4389, %v4433
  %v4438 = vmul.f32 %v4390, %v4434
  %v4439 = vmul.f32 %v4391, %v4435
  %v4440 = vld [vmem:[%s2] sm:$0xf]
  %v4442 = vlaneseq
  %v4443 = vshrl.u32 %v4442, 7
  %v4444 = vsub.s32 0, %v4443
  %v4445 = vrot.slane %v4440, %v4444
  %v4446 = vlaneseq
  %v4447 = vshrl.u32 %v4446, 7
  %v4448 = vsub.s32 1, %v4447
  %v4449 = vrot.slane %v4440, %v4448
  %v4450 = vlaneseq
  %v4451 = vshrl.u32 %v4450, 7
  %v4452 = vsub.s32 2, %v4451
  %v4453 = vrot.slane %v4440, %v4452
  %v4454 = vlaneseq
  %v4455 = vshrl.u32 %v4454, 7
  %v4456 = vsub.s32 3, %v4455
  %v4457 = vrot.slane %v4440, %v4456
  %v4462 = vmul.f32 %v4436, %v4445
  %v4463 = vmul.f32 %v4437, %v4449
  %v4464 = vmul.f32 %v4438, %v4453
  %v4465 = vmul.f32 %v4439, %v4457
  %v4466 = vld [vmem:[%s3] sm:$0xf]
  %v4468 = vlaneseq
  %v4469 = vshrl.u32 %v4468, 7
  %v4470 = vsub.s32 0, %v4469
  %v4471 = vrot.slane %v4466, %v4470
  %v4472 = vlaneseq
  %v4473 = vshrl.u32 %v4472, 7
  %v4474 = vsub.s32 1, %v4473
  %v4475 = vrot.slane %v4466, %v4474
  %v4476 = vlaneseq
  %v4477 = vshrl.u32 %v4476, 7
  %v4478 = vsub.s32 2, %v4477
  %v4479 = vrot.slane %v4466, %v4478
  %v4480 = vlaneseq
  %v4481 = vshrl.u32 %v4480, 7
  %v4482 = vsub.s32 3, %v4481
  %v4483 = vrot.slane %v4466, %v4482
  %v4488 = vadd.f32 %v4462, %v4471
  %v4489 = vadd.f32 %v4463, %v4475
  %v4490 = vadd.f32 %v4464, %v4479
  %v4491 = vadd.f32 %v4465, %v4483
  %vm4492 = vcmp.ge.f32.partialorder %v4488, 0.0
  %vm4493 = vcmp.ge.f32.partialorder %v4489, 0.0
  %vm4494 = vcmp.ge.f32.partialorder %v4490, 0.0
  %vm4495 = vcmp.ge.f32.partialorder %v4491, 0.0
  %v4496 = vmul.f32 %v4488, 0.01
  %v4497 = vmul.f32 %v4489, 0.01
  %v4498 = vmul.f32 %v4490, 0.01
  %v4499 = vmul.f32 %v4491, 0.01
  %v4500 = vsel %vm4492, %v4488, %v4496
  %v4501 = vsel %vm4493, %v4489, %v4497
  %v4502 = vsel %vm4494, %v4490, %v4498
  %v4503 = vsel %vm4495, %v4491, %v4499
  %v4508 = vcombine.low %v4500, %v4501
  %v4509 = vcombine.low %v4502, %v4503
  %v4511 = vunpack.c.l.s4 1983009808
  %v4512 = vunpack.c.0.s8 %v4511
  %v4513 = vlaneseq
  %v4514 = vshrl.u32 %v4513, 7
  %v4515 = vsub.s32 %v4512, %v4514
  %v4516 = vrot.slane %v4508, %v4515
  %v4518 = vunpack.c.l.s4 1983009808
  %v4519 = vunpack.c.0.s8 %v4518
  %v4520 = vlaneseq
  %v4521 = vshrl.u32 %v4520, 7
  %v4522 = vsub.s32 %v4519, %v4521
  %v4523 = vrot.slane %v4509, %v4522
  %v4524 = vcombine.low %v4516, %v4523
  %4526 = vst [vmem:[%s4] sm:$0xff] %v4524
  // Predicated region
  $region18: #{encoder_forward.9} parent=0 // pred_check
    _
  $region19: #{encoder_forward.9} parent=0 // pred_check_branch
    %4528 = sbr.rel (0) target = $region21
  $region20: #{encoder_forward.9} parent=0 // pred_region
    _
  $region21: #{encoder_forward.9} parent=0 // pred_fallthru
    _
  // Predicated region
  $region22: #{encoder_forward.9} parent=0 // pred_check
    _
  $region23: #{encoder_forward.9} parent=0 // pred_check_branch
    %4530 = sbr.rel (0) target = $region25
  $region24: #{encoder_forward.9} parent=0 // pred_region
    _
  $region25: #{encoder_forward.9} parent=0 // pred_fallthru
    _

</llo_original>
